<compile_context>
chip_gen: v6e
topology: v6e:2x2x1
jax: 0.10.0
libtpu: 0.0.40
codegen_flags: <defaults>
</compile_context>

<pallas_src>
import functools

import jax
import jax.numpy as jnp
from jax.experimental import pallas as pl
from jax.experimental.pallas import tpu as pltpu

EPS = 1e-5  # PyTorch BatchNorm1d default eps


# ----------------------------- in-kernel helpers -----------------------------

def _bn(x, bn_ref):
    # Training-mode BatchNorm1d, single-pass stats (E[x^2] - mean^2).
    # x: (M, C) f32; bn_ref: (2, C) f32 (row 0 = gamma, row 1 = beta).
    gamma = bn_ref[0:1, :]
    beta = bn_ref[1:2, :]
    mean = jnp.mean(x, axis=0, keepdims=True)
    var = jnp.mean(x * x, axis=0, keepdims=True) - mean * mean
    return (x - mean) * jax.lax.rsqrt(var + EPS) * gamma + beta


# ----------------------------- Pallas kernels -----------------------------

def _part1_kernel(x_ref, bn2_ref, w2_ref, b2_ref, bn3_ref, w3_ref, b3_ref,
                  o_ref, h_ref):
    # bn2 -> gated ConvT(k=5,s=5) -> bn3 -> gated ConvT(k=3,s=3), all in VMEM.
    # x_ref: (M, C) with M = B*L0.
    # w2_ref: (C, K1*2C) bf16, tap k1 columns = [main_k1 || gate_k1];
    # w3_ref: (C, K2*2C) bf16 likewise.  b2/b3: (1, K*2C) (bias tiled per tap).
    # o_ref: (M, K1*K2*C) bf16; lane block t = k1*K2+k2 holds sequence position
    #        l*K1*K2 + k1*K2 + k2, so a row-major reshape outside is free.
    # h_ref: (K1*M, C) f32 VMEM scratch (tap-major stack of ConvT-2 outputs).
    M, C = x_ref.shape
    K1 = w2_ref.shape[1] // (2 * C)
    K2 = w3_ref.shape[1] // (2 * C)

    # Layer 2: one wide matmul (N = K1*2C); taps sliced out at static
    # 128-multiple lane offsets and stored straight into the tap-major scratch.
    x = _bn(x_ref[...].astype(jnp.float32), bn2_ref)
    y = jnp.dot(x.astype(jnp.bfloat16), w2_ref[...],
                preferred_element_type=jnp.float32) + b2_ref[...]
    for k1 in range(K1):                       # static; stride==K -> no overlap
        o = k1 * 2 * C
        h_ref[k1 * M:(k1 + 1) * M, :] = (
            y[:, o:o + C] * jax.nn.sigmoid(y[:, o + C:o + 2 * C]))

    # Layer 3: one wide matmul over all K1*M rows (N = K2*2C).
    h = _bn(h_ref[...], bn3_ref)               # per-channel stats: order-free
    y3 = jnp.dot(h.astype(jnp.bfloat16), w3_ref[...],
                 preferred_element_type=jnp.float32) + b3_ref[...]

    # Emit interleaved layout via direct lane-block stores (no concatenate).
    for k2 in range(K2):
        o = k2 * 2 * C
        g = y3[:, o:o + C] * jax.nn.sigmoid(y3[:, o + C:o + 2 * C])  # (K1*M, C)
        for k1 in range(K1):
            t = k1 * K2 + k2
            o_ref[:, t * C:(t + 1) * C] = (
                g[k1 * M:(k1 + 1) * M, :].astype(o_ref.dtype))


def _part2_kernel(x_ref,
                  bn4_ref, w4_ref, b4_ref,
                  bn5_ref, w5_ref, b5_ref,
                  bn6_ref, w6_ref, b6_ref,
                  bn7_ref, w7_ref, b7_ref,
                  o_ref, *, seq_len):
    # 3x (bn -> gated Conv1d(k=3,pad=1)) -> bn -> gated Conv1d(k=1), in VMEM.
    # x_ref: (M, C) bf16 with M = batch*seq_len, rows ordered (b, position).
    # w4..w6: (C, 3*2C) bf16 (taps packed along Cout); b4..b6: (1, 2C).
    # w7: (C, 2*Cpad) bf16 (zero-padded to 128 lanes per half); b7: (1, 2*Cpad).
    M, C = x_ref.shape
    N2 = 2 * C

    # (M, 1) position column; batch-boundary masks broadcast across lanes.
    pos = jax.lax.broadcasted_iota(jnp.int32, (M, 1), 0) % seq_len
    first = pos == 0
    last = pos == (seq_len - 1)

    def conv3_gated(h, bn_ref, w_ref, b_ref):
        # One wide matmul (N = 3*2C); the +-1 halo is realized with sublane
        # rolls (XLU, off the VALU/vst critical path) + boundary masks.
        h = _bn(h, bn_ref)
        y = jnp.dot(h.astype(jnp.bfloat16), w_ref[...],
                    preferred_element_type=jnp.float32)      # (M, 3*2C)
        y0 = y[:, 0:N2]            # tap applied to x[l-1]
        y1 = y[:, N2:2 * N2]       # tap applied to x[l]
        y2 = y[:, 2 * N2:3 * N2]   # tap applied to x[l+1]
        sd = jnp.where(first, 0.0, pltpu.roll(y0, 1, axis=0))       # y0[l-1]
        su = jnp.where(last, 0.0, pltpu.roll(y2, M - 1, axis=0))    # y2[l+1]
        yy = y1 + sd + su + b_ref[...]
        return yy[:, :C] * jax.nn.sigmoid(yy[:, C:])

    h = x_ref[...].astype(jnp.float32)
    h = conv3_gated(h, bn4_ref, w4_ref, b4_ref)
    h = conv3_gated(h, bn5_ref, w5_ref, b5_ref)
    h = conv3_gated(h, bn6_ref, w6_ref, b6_ref)

    h = _bn(h, bn7_ref)
    y = jnp.dot(h.astype(jnp.bfloat16), w7_ref[...],
                preferred_element_type=jnp.float32) + b7_ref[...]
    Cp = y.shape[1] // 2
    o_ref[...] = (y[:, :Cp] * jax.nn.sigmoid(y[:, Cp:])).astype(o_ref.dtype)


# ----------------------------- parameter packing -----------------------------

def _pack_bn(gamma, beta):
    return jnp.stack([gamma, beta]).astype(jnp.float32)          # (2, C)


def _pack_wide(w, wg, b, bg, *, tile_bias):
    # w, wg: (K, Cin, Cout) -> (Cin, K*2*Cout), tap k cols = [main_k || gate_k].
    # tile_bias=True  (ConvT, bias added inside the wide dot, once per tap)
    # tile_bias=False (Conv k=3, bias added once after the tap sum) -> (1, 2*Cout).
    K = w.shape[0]
    blocks = []
    for k in range(K):
        blocks.append(w[k])
        blocks.append(wg[k])
    wcat = jnp.concatenate(blocks, axis=-1).astype(jnp.bfloat16)
    bpair = jnp.concatenate([b, bg])
    if tile_bias:
        bcat = jnp.tile(bpair, (K,)).reshape(1, -1).astype(jnp.float32)
    else:
        bcat = bpair.reshape(1, -1).astype(jnp.float32)
    return wcat, bcat


def _pack_conv1_padded(w, wg, b, bg, cpad):
    # Pad the k=1 conv's narrow Cout (n=64) to a lane-dense 128 with zeros.
    cin, n = w.shape
    wp = jnp.zeros((cin, cpad), jnp.float32).at[:, :n].set(w)
    wpg = jnp.zeros((cin, cpad), jnp.float32).at[:, :n].set(wg)
    bp = jnp.zeros((cpad,), jnp.float32).at[:n].set(b)
    bpg = jnp.zeros((cpad,), jnp.float32).at[:n].set(bg)
    wcat = jnp.concatenate([wp, wpg], axis=-1).astype(jnp.bfloat16)
    bcat = jnp.concatenate([bp, bpg]).reshape(1, -1).astype(jnp.float32)
    return wcat, bcat


# ----------------------------- Decoder forward -----------------------------

def decoder_forward(x, p, *, out_pad=128):
    B, L0, C = x.shape
    K1 = p["w2"].shape[0]      # 5
    K2 = p["w3"].shape[0]      # 3
    n_out = p["b7"].shape[0]
    L_out = L0 * K1 * K2

    bn2 = _pack_bn(p["bn2_g"], p["bn2_b"])
    bn3 = _pack_bn(p["bn3_g"], p["bn3_b"])
    bn4 = _pack_bn(p["bn4_g"], p["bn4_b"])
    bn5 = _pack_bn(p["bn5_g"], p["bn5_b"])
    bn6 = _pack_bn(p["bn6_g"], p["bn6_b"])
    bn7 = _pack_bn(p["bn7_g"], p["bn7_b"])
    w2, b2 = _pack_wide(p["w2"], p["w2g"], p["b2"], p["b2g"], tile_bias=True)
    w3, b3 = _pack_wide(p["w3"], p["w3g"], p["b3"], p["b3g"], tile_bias=True)
    w4, b4 = _pack_wide(p["w4"], p["w4g"], p["b4"], p["b4g"], tile_bias=False)
    w5, b5 = _pack_wide(p["w5"], p["w5g"], p["b5"], p["b5g"], tile_bias=False)
    w6, b6 = _pack_wide(p["w6"], p["w6g"], p["b6"], p["b6g"], tile_bias=False)
    w7, b7 = _pack_conv1_padded(p["w7"], p["w7g"], p["b7"], p["b7g"], out_pad)

    # TODO(synk): at real C=1024 raise this on v6e/v5e (keep weights resident)
    #             and switch to streamed weights + M-tiled grid on v7x.
    cparams = pltpu.CompilerParams(vmem_limit_bytes=32 * 1024 * 1024)

    x_flat = x.reshape(B * L0, C)   # fold batch into the matmul M axis (free view)

    part1 = pl.pallas_call(
        _part1_kernel,
        out_shape=jax.ShapeDtypeStruct((B * L0, K1 * K2 * C), jnp.bfloat16),
        scratch_shapes=[pltpu.VMEM((K1 * B * L0, C), jnp.float32)],
        compiler_params=cparams,
    )
    h = part1(x_flat, bn2, w2, b2, bn3, w3, b3)

    # Free row-major view: (B*L0, K1*K2*C) -> (B*L_out, C); row = b*L_out + pos.
    # Stored/reloaded as bf16 (only activation HBM round trip in the pass).
    h = h.reshape(B * L_out, C)

    part2 = pl.pallas_call(
        functools.partial(_part2_kernel, seq_len=L_out),
        out_shape=jax.ShapeDtypeStruct((B * L_out, out_pad), jnp.float32),
        compiler_params=cparams,
    )
    y = part2(h, bn4, w4, b4, bn5, w5, b5, bn6, w6, b6, bn7, w7, b7)
    return y[:, :n_out].reshape(B, L_out, n_out)


def init_params(key, C, n):
    keys = jax.random.split(key, 40)
    it = iter(keys)

    def nrm(shape, scale):
        return (scale * jax.random.normal(next(it), shape)).astype(jnp.float32)

    p = {}
    for name in ("bn2", "bn3", "bn4", "bn5", "bn6", "bn7"):
        p[name + "_g"] = 1.0 + nrm((C,), 0.1)
        p[name + "_b"] = nrm((C,), 0.1)
    s = 0.05
    p["w2"], p["b2"] = nrm((5, C, C), s), nrm((C,), s)        # cnn2
    p["w2g"], p["b2g"] = nrm((5, C, C), s), nrm((C,), s)      # cnn2_g
    p["w3"], p["b3"] = nrm((3, C, C), s), nrm((C,), s)        # cnn3
    p["w3g"], p["b3g"] = nrm((3, C, C), s), nrm((C,), s)      # cnn3_g
    for name in ("4", "5", "6"):                              # cnn4..cnn6 (+ gates)
        p["w" + name], p["b" + name] = nrm((3, C, C), s), nrm((C,), s)
        p["w" + name + "g"], p["b" + name + "g"] = nrm((3, C, C), s), nrm((C,), s)
    p["w7"], p["b7"] = nrm((C, n), s), nrm((n,), s)           # cnn7
    p["w7g"], p["b7g"] = nrm((C, n), s), nrm((n,), s)         # cnn7_g
    return p


# ----------------------------- pure-JAX reference -----------------------------
# Matmul operands are cast to bf16 (f32 accumulation) to match the kernel's
# MXU precision; BN / sigmoid / gating are f32 like the kernel.  The bf16
# round-trip of the inter-kernel activation is mirrored explicitly.

def _ref_dot(x, w):
    return jnp.einsum("blc,cd->bld", x.astype(jnp.bfloat16), w.astype(jnp.bfloat16),
                      preferred_element_type=jnp.float32)


def _ref_bn(x, gamma, beta):
    mean = x.mean(axis=(0, 1), keepdims=True)
    var = ((x - mean) ** 2).mean(axis=(0, 1), keepdims=True)
    return (x - mean) / jnp.sqrt(var + EPS) * gamma.reshape(1, 1, -1) + beta.reshape(1, 1, -1)


def _ref_gated_convT(x, w, b, wg, bg):
    B, L, _ = x.shape
    K = w.shape[0]
    outs = []
    for k in range(K):
        y = _ref_dot(x, w[k]) + b
        g = _ref_dot(x, wg[k]) + bg
        outs.append(y * jax.nn.sigmoid(g))
    y = jnp.stack(outs, axis=2)                   # (B, L, K, Cout)
    return y.reshape(B, L * K, -1)                # position = l*K + k


def _ref_gated_conv3(x, w, b, wg, bg):
    L = x.shape[1]
    xp = jnp.pad(x, ((0, 0), (1, 1), (0, 0)))
    y = sum(_ref_dot(xp[:, k:k + L], w[k]) for k in range(3)) + b
    g = sum(_ref_dot(xp[:, k:k + L], wg[k]) for k in range(3)) + bg
    return y * jax.nn.sigmoid(g)


def _ref_gated_conv1(x, w, b, wg, bg):
    y = _ref_dot(x, w) + b
    g = _ref_dot(x, wg) + bg
    return y * jax.nn.sigmoid(g)


def ref_forward(x, p):
    y = _ref_bn(x, p["bn2_g"], p["bn2_b"])
    y = _ref_gated_convT(y, p["w2"], p["b2"], p["w2g"], p["b2g"])
    y = _ref_bn(y, p["bn3_g"], p["bn3_b"])
    y = _ref_gated_convT(y, p["w3"], p["b3"], p["w3g"], p["b3g"])
    y = y.astype(jnp.bfloat16).astype(jnp.float32)  # mirror bf16 HBM intermediate
    y = _ref_bn(y, p["bn4_g"], p["bn4_b"])
    y = _ref_gated_conv3(y, p["w4"], p["b4"], p["w4g"], p["b4g"])
    y = _ref_bn(y, p["bn5_g"], p["bn5_b"])
    y = _ref_gated_conv3(y, p["w5"], p["b5"], p["w5g"], p["b5g"])
    y = _ref_bn(y, p["bn6_g"], p["bn6_b"])
    y = _ref_gated_conv3(y, p["w6"], p["b6"], p["w6g"], p["b6g"])
    y = _ref_bn(y, p["bn7_g"], p["bn7_b"])
    y = _ref_gated_conv1(y, p["w7"], p["b7"], p["w7g"], p["b7g"])
    return y


# ----------------------------- main -----------------------------

if __name__ == "__main__":
    B, L0, C, N_OUT = 2, 4, 128, 64  # scaled-down stand-in for the 1024-channel module

    key = jax.random.PRNGKey(0)
    kx, kp = jax.random.split(key)
    x = jax.random.normal(kx, (B, L0, C), dtype=jnp.float32)  # (B, L, C) channels-last
    params = init_params(kp, C, N_OUT)

    fwd = jax.jit(decoder_forward)
    out = jax.block_until_ready(fwd(x, params))
    assert out.shape == (B, L0 * 5 * 3, N_OUT), out.shape      # (2, 60, 64)

    ref = jax.block_until_ready(ref_forward(x, params))
    if not jnp.allclose(out, ref, atol=2e-2, rtol=2e-2):
        raise AssertionError(
            "mismatch vs reference: max abs diff = %g" % float(jnp.max(jnp.abs(out - ref)))
        )

    print("KERNEL_OK")
</pallas_src>

<mosaic_0001>
module attributes {stable_mosaic.version = 11 : i64} {
  func.func @_part1_kernel(%arg0: memref<8x128xf32, #tpu.memory_space<vmem>>, %arg1: memref<2x128xf32, #tpu.memory_space<vmem>>, %arg2: memref<128x1280xbf16, #tpu.memory_space<vmem>>, %arg3: memref<1x1280xf32, #tpu.memory_space<vmem>>, %arg4: memref<2x128xf32, #tpu.memory_space<vmem>>, %arg5: memref<128x768xbf16, #tpu.memory_space<vmem>>, %arg6: memref<1x768xf32, #tpu.memory_space<vmem>>, %arg7: memref<8x1920xbf16, #tpu.memory_space<vmem>>, %arg8: memref<40x128xf32, #tpu.memory_space<vmem>>) attributes {dimension_semantics = [], scalar_prefetch = 0 : i64, scratch_operands = 1 : i64, tpu.core_type = #tpu.core_type<tc>} {
    %c0 = arith.constant 0 : index
    %c0_0 = arith.constant 0 : index
    %0 = vector.load %arg0[%c0, %c0_0] : memref<8x128xf32, #tpu.memory_space<vmem>>, vector<8x128xf32>
    %c0_1 = arith.constant 0 : index
    %c0_2 = arith.constant 0 : index
    %1 = vector.load %arg1[%c0_1, %c0_2] : memref<2x128xf32, #tpu.memory_space<vmem>>, vector<1x128xf32>
    %c1 = arith.constant 1 : index
    %c0_3 = arith.constant 0 : index
    %2 = vector.load %arg1[%c1, %c0_3] : memref<2x128xf32, #tpu.memory_space<vmem>>, vector<1x128xf32>
    %cst = arith.constant dense<0.000000e+00> : vector<128xf32>
    %3 = vector.multi_reduction <add>, %0, %cst [0] : vector<8x128xf32> to vector<128xf32>
    %4 = vector.shape_cast %3 : vector<128xf32> to vector<1x128xf32>
    %cst_4 = arith.constant 8.000000e+00 : f32
    %5 = vector.broadcast %cst_4 : f32 to vector<1x128xf32>
    %6 = arith.divf %4, %5 : vector<1x128xf32>
    %7 = arith.mulf %0, %0 : vector<8x128xf32>
    %cst_5 = arith.constant dense<0.000000e+00> : vector<128xf32>
    %8 = vector.multi_reduction <add>, %7, %cst_5 [0] : vector<8x128xf32> to vector<128xf32>
    %9 = vector.shape_cast %8 : vector<128xf32> to vector<1x128xf32>
    %cst_6 = arith.constant 8.000000e+00 : f32
    %10 = vector.broadcast %cst_6 : f32 to vector<1x128xf32>
    %11 = arith.divf %9, %10 : vector<1x128xf32>
    %12 = arith.mulf %6, %6 : vector<1x128xf32>
    %13 = arith.subf %11, %12 : vector<1x128xf32>
    %14 = vector.broadcast %6 : vector<1x128xf32> to vector<8x128xf32>
    %15 = arith.subf %0, %14 : vector<8x128xf32>
    %cst_7 = arith.constant 9.99999974E-6 : f32
    %16 = vector.broadcast %cst_7 : f32 to vector<1x128xf32>
    %17 = arith.addf %13, %16 : vector<1x128xf32>
    %18 = math.rsqrt %17 : vector<1x128xf32>
    %19 = vector.broadcast %18 : vector<1x128xf32> to vector<8x128xf32>
    %20 = arith.mulf %15, %19 : vector<8x128xf32>
    %21 = vector.broadcast %1 : vector<1x128xf32> to vector<8x128xf32>
    %22 = arith.mulf %20, %21 : vector<8x128xf32>
    %23 = vector.broadcast %2 : vector<1x128xf32> to vector<8x128xf32>
    %24 = arith.addf %22, %23 : vector<8x128xf32>
    %25 = arith.truncf %24 : vector<8x128xf32> to vector<8x128xbf16>
    %c0_8 = arith.constant 0 : index
    %c0_9 = arith.constant 0 : index
    %26 = vector.load %arg2[%c0_8, %c0_9] : memref<128x1280xbf16, #tpu.memory_space<vmem>>, vector<128x1280xbf16>
    %cst_10 = arith.constant dense<0.000000e+00> : vector<8x1280xf32>
    %27 = tpu.matmul %25, %26, %cst_10 {dimension_numbers = #tpu.dot_dimension_numbers<[1], [0], [0], [1], [0, 0, 1, 1], [], []>} : vector<8x128xbf16>, vector<128x1280xbf16>, vector<8x1280xf32> -> vector<8x1280xf32>
    %c0_11 = arith.constant 0 : index
    %c0_12 = arith.constant 0 : index
    %28 = vector.load %arg3[%c0_11, %c0_12] : memref<1x1280xf32, #tpu.memory_space<vmem>>, vector<1x1280xf32>
    %29 = vector.broadcast %28 : vector<1x1280xf32> to vector<8x1280xf32>
    %30 = arith.addf %27, %29 : vector<8x1280xf32>
    %31 = vector.extract_strided_slice %30 {offsets = [0, 0], sizes = [8, 128], strides = [1, 1]} : vector<8x1280xf32> to vector<8x128xf32>
    %32 = vector.extract_strided_slice %30 {offsets = [0, 128], sizes = [8, 128], strides = [1, 1]} : vector<8x1280xf32> to vector<8x128xf32>
    %33 = arith.negf %32 : vector<8x128xf32>
    %34 = math.exp %33 : vector<8x128xf32>
    %cst_13 = arith.constant 1.000000e+00 : f32
    %35 = vector.broadcast %cst_13 : f32 to vector<8x128xf32>
    %36 = arith.addf %35, %34 : vector<8x128xf32>
    %37 = arith.divf %35, %36 : vector<8x128xf32>
    %38 = arith.mulf %31, %37 : vector<8x128xf32>
    %c0_14 = arith.constant 0 : index
    %c0_15 = arith.constant 0 : index
    %39 = vector.load %arg8[%c0_14, %c0_15] : memref<40x128xf32, #tpu.memory_space<vmem>>, vector<8x128xf32>
    tpu.vector_store %arg8[%c0_14, %c0_15], %38 {strides = array<i32>} : memref<40x128xf32, #tpu.memory_space<vmem>>, vector<8x128xf32>,
    %40 = vector.extract_strided_slice %30 {offsets = [0, 256], sizes = [8, 128], strides = [1, 1]} : vector<8x1280xf32> to vector<8x128xf32>
    %41 = vector.extract_strided_slice %30 {offsets = [0, 384], sizes = [8, 128], strides = [1, 1]} : vector<8x1280xf32> to vector<8x128xf32>
    %42 = arith.negf %41 : vector<8x128xf32>
    %43 = math.exp %42 : vector<8x128xf32>
    %cst_16 = arith.constant 1.000000e+00 : f32
    %44 = vector.broadcast %cst_16 : f32 to vector<8x128xf32>
    %45 = arith.addf %44, %43 : vector<8x128xf32>
    %46 = arith.divf %44, %45 : vector<8x128xf32>
    %47 = arith.mulf %40, %46 : vector<8x128xf32>
    %c8 = arith.constant 8 : index
    %c0_17 = arith.constant 0 : index
    %48 = vector.load %arg8[%c8, %c0_17] : memref<40x128xf32, #tpu.memory_space<vmem>>, vector<8x128xf32>
    tpu.vector_store %arg8[%c8, %c0_17], %47 {strides = array<i32>} : memref<40x128xf32, #tpu.memory_space<vmem>>, vector<8x128xf32>,
    %49 = vector.extract_strided_slice %30 {offsets = [0, 512], sizes = [8, 128], strides = [1, 1]} : vector<8x1280xf32> to vector<8x128xf32>
    %50 = vector.extract_strided_slice %30 {offsets = [0, 640], sizes = [8, 128], strides = [1, 1]} : vector<8x1280xf32> to vector<8x128xf32>
    %51 = arith.negf %50 : vector<8x128xf32>
    %52 = math.exp %51 : vector<8x128xf32>
    %cst_18 = arith.constant 1.000000e+00 : f32
    %53 = vector.broadcast %cst_18 : f32 to vector<8x128xf32>
    %54 = arith.addf %53, %52 : vector<8x128xf32>
    %55 = arith.divf %53, %54 : vector<8x128xf32>
    %56 = arith.mulf %49, %55 : vector<8x128xf32>
    %c16 = arith.constant 16 : index
    %c0_19 = arith.constant 0 : index
    %57 = vector.load %arg8[%c16, %c0_19] : memref<40x128xf32, #tpu.memory_space<vmem>>, vector<8x128xf32>
    tpu.vector_store %arg8[%c16, %c0_19], %56 {strides = array<i32>} : memref<40x128xf32, #tpu.memory_space<vmem>>, vector<8x128xf32>,
    %58 = vector.extract_strided_slice %30 {offsets = [0, 768], sizes = [8, 128], strides = [1, 1]} : vector<8x1280xf32> to vector<8x128xf32>
    %59 = vector.extract_strided_slice %30 {offsets = [0, 896], sizes = [8, 128], strides = [1, 1]} : vector<8x1280xf32> to vector<8x128xf32>
    %60 = arith.negf %59 : vector<8x128xf32>
    %61 = math.exp %60 : vector<8x128xf32>
    %cst_20 = arith.constant 1.000000e+00 : f32
    %62 = vector.broadcast %cst_20 : f32 to vector<8x128xf32>
    %63 = arith.addf %62, %61 : vector<8x128xf32>
    %64 = arith.divf %62, %63 : vector<8x128xf32>
    %65 = arith.mulf %58, %64 : vector<8x128xf32>
    %c24 = arith.constant 24 : index
    %c0_21 = arith.constant 0 : index
    %66 = vector.load %arg8[%c24, %c0_21] : memref<40x128xf32, #tpu.memory_space<vmem>>, vector<8x128xf32>
    tpu.vector_store %arg8[%c24, %c0_21], %65 {strides = array<i32>} : memref<40x128xf32, #tpu.memory_space<vmem>>, vector<8x128xf32>,
    %67 = vector.extract_strided_slice %30 {offsets = [0, 1024], sizes = [8, 128], strides = [1, 1]} : vector<8x1280xf32> to vector<8x128xf32>
    %68 = vector.extract_strided_slice %30 {offsets = [0, 1152], sizes = [8, 128], strides = [1, 1]} : vector<8x1280xf32> to vector<8x128xf32>
    %69 = arith.negf %68 : vector<8x128xf32>
    %70 = math.exp %69 : vector<8x128xf32>
    %cst_22 = arith.constant 1.000000e+00 : f32
    %71 = vector.broadcast %cst_22 : f32 to vector<8x128xf32>
    %72 = arith.addf %71, %70 : vector<8x128xf32>
    %73 = arith.divf %71, %72 : vector<8x128xf32>
    %74 = arith.mulf %67, %73 : vector<8x128xf32>
    %c32 = arith.constant 32 : index
    %c0_23 = arith.constant 0 : index
    %75 = vector.load %arg8[%c32, %c0_23] : memref<40x128xf32, #tpu.memory_space<vmem>>, vector<8x128xf32>
    tpu.vector_store %arg8[%c32, %c0_23], %74 {strides = array<i32>} : memref<40x128xf32, #tpu.memory_space<vmem>>, vector<8x128xf32>,
    %c0_24 = arith.constant 0 : index
    %c0_25 = arith.constant 0 : index
    %76 = vector.load %arg8[%c0_24, %c0_25] : memref<40x128xf32, #tpu.memory_space<vmem>>, vector<40x128xf32>
    %c0_26 = arith.constant 0 : index
    %c0_27 = arith.constant 0 : index
    %77 = vector.load %arg4[%c0_26, %c0_27] : memref<2x128xf32, #tpu.memory_space<vmem>>, vector<1x128xf32>
    %c1_28 = arith.constant 1 : index
    %c0_29 = arith.constant 0 : index
    %78 = vector.load %arg4[%c1_28, %c0_29] : memref<2x128xf32, #tpu.memory_space<vmem>>, vector<1x128xf32>
    %cst_30 = arith.constant dense<0.000000e+00> : vector<128xf32>
    %79 = vector.multi_reduction <add>, %76, %cst_30 [0] : vector<40x128xf32> to vector<128xf32>
    %80 = vector.shape_cast %79 : vector<128xf32> to vector<1x128xf32>
    %cst_31 = arith.constant 4.000000e+01 : f32
    %81 = vector.broadcast %cst_31 : f32 to vector<1x128xf32>
    %82 = arith.divf %80, %81 : vector<1x128xf32>
    %83 = arith.mulf %76, %76 : vector<40x128xf32>
    %cst_32 = arith.constant dense<0.000000e+00> : vector<128xf32>
    %84 = vector.multi_reduction <add>, %83, %cst_32 [0] : vector<40x128xf32> to vector<128xf32>
    %85 = vector.shape_cast %84 : vector<128xf32> to vector<1x128xf32>
    %cst_33 = arith.constant 4.000000e+01 : f32
    %86 = vector.broadcast %cst_33 : f32 to vector<1x128xf32>
    %87 = arith.divf %85, %86 : vector<1x128xf32>
    %88 = arith.mulf %82, %82 : vector<1x128xf32>
    %89 = arith.subf %87, %88 : vector<1x128xf32>
    %90 = vector.broadcast %82 : vector<1x128xf32> to vector<40x128xf32>
    %91 = arith.subf %76, %90 : vector<40x128xf32>
    %cst_34 = arith.constant 9.99999974E-6 : f32
    %92 = vector.broadcast %cst_34 : f32 to vector<1x128xf32>
    %93 = arith.addf %89, %92 : vector<1x128xf32>
    %94 = math.rsqrt %93 : vector<1x128xf32>
    %95 = vector.broadcast %94 : vector<1x128xf32> to vector<40x128xf32>
    %96 = arith.mulf %91, %95 : vector<40x128xf32>
    %97 = vector.broadcast %77 : vector<1x128xf32> to vector<40x128xf32>
    %98 = arith.mulf %96, %97 : vector<40x128xf32>
    %99 = vector.broadcast %78 : vector<1x128xf32> to vector<40x128xf32>
    %100 = arith.addf %98, %99 : vector<40x128xf32>
    %101 = arith.truncf %100 : vector<40x128xf32> to vector<40x128xbf16>
    %c0_35 = arith.constant 0 : index
    %c0_36 = arith.constant 0 : index
    %102 = vector.load %arg5[%c0_35, %c0_36] : memref<128x768xbf16, #tpu.memory_space<vmem>>, vector<128x768xbf16>
    %cst_37 = arith.constant dense<0.000000e+00> : vector<40x768xf32>
    %103 = tpu.matmul %101, %102, %cst_37 {dimension_numbers = #tpu.dot_dimension_numbers<[1], [0], [0], [1], [0, 0, 1, 1], [], []>} : vector<40x128xbf16>, vector<128x768xbf16>, vector<40x768xf32> -> vector<40x768xf32>
    %c0_38 = arith.constant 0 : index
    %c0_39 = arith.constant 0 : index
    %104 = vector.load %arg6[%c0_38, %c0_39] : memref<1x768xf32, #tpu.memory_space<vmem>>, vector<1x768xf32>
    %105 = vector.broadcast %104 : vector<1x768xf32> to vector<40x768xf32>
    %106 = arith.addf %103, %105 : vector<40x768xf32>
    %107 = vector.extract_strided_slice %106 {offsets = [0, 0], sizes = [40, 128], strides = [1, 1]} : vector<40x768xf32> to vector<40x128xf32>
    %108 = vector.extract_strided_slice %106 {offsets = [0, 128], sizes = [40, 128], strides = [1, 1]} : vector<40x768xf32> to vector<40x128xf32>
    %109 = arith.negf %108 : vector<40x128xf32>
    %110 = math.exp %109 : vector<40x128xf32>
    %cst_40 = arith.constant 1.000000e+00 : f32
    %111 = vector.broadcast %cst_40 : f32 to vector<40x128xf32>
    %112 = arith.addf %111, %110 : vector<40x128xf32>
    %113 = arith.divf %111, %112 : vector<40x128xf32>
    %114 = arith.mulf %107, %113 : vector<40x128xf32>
    %115 = vector.extract_strided_slice %114 {offsets = [0, 0], sizes = [8, 128], strides = [1, 1]} : vector<40x128xf32> to vector<8x128xf32>
    %116 = arith.truncf %115 : vector<8x128xf32> to vector<8x128xbf16>
    %c0_41 = arith.constant 0 : index
    %c0_42 = arith.constant 0 : index
    %117 = vector.load %arg7[%c0_41, %c0_42] : memref<8x1920xbf16, #tpu.memory_space<vmem>>, vector<8x128xbf16>
    tpu.vector_store %arg7[%c0_41, %c0_42], %116 {strides = array<i32>} : memref<8x1920xbf16, #tpu.memory_space<vmem>>, vector<8x128xbf16>,
    %118 = vector.extract_strided_slice %114 {offsets = [8, 0], sizes = [8, 128], strides = [1, 1]} : vector<40x128xf32> to vector<8x128xf32>
    %119 = arith.truncf %118 : vector<8x128xf32> to vector<8x128xbf16>
    %c0_43 = arith.constant 0 : index
    %c384 = arith.constant 384 : index
    %120 = vector.load %arg7[%c0_43, %c384] : memref<8x1920xbf16, #tpu.memory_space<vmem>>, vector<8x128xbf16>
    tpu.vector_store %arg7[%c0_43, %c384], %119 {strides = array<i32>} : memref<8x1920xbf16, #tpu.memory_space<vmem>>, vector<8x128xbf16>,
    %121 = vector.extract_strided_slice %114 {offsets = [16, 0], sizes = [8, 128], strides = [1, 1]} : vector<40x128xf32> to vector<8x128xf32>
    %122 = arith.truncf %121 : vector<8x128xf32> to vector<8x128xbf16>
    %c0_44 = arith.constant 0 : index
    %c768 = arith.constant 768 : index
    %123 = vector.load %arg7[%c0_44, %c768] : memref<8x1920xbf16, #tpu.memory_space<vmem>>, vector<8x128xbf16>
    tpu.vector_store %arg7[%c0_44, %c768], %122 {strides = array<i32>} : memref<8x1920xbf16, #tpu.memory_space<vmem>>, vector<8x128xbf16>,
    %124 = vector.extract_strided_slice %114 {offsets = [24, 0], sizes = [8, 128], strides = [1, 1]} : vector<40x128xf32> to vector<8x128xf32>
    %125 = arith.truncf %124 : vector<8x128xf32> to vector<8x128xbf16>
    %c0_45 = arith.constant 0 : index
    %c1152 = arith.constant 1152 : index
    %126 = vector.load %arg7[%c0_45, %c1152] : memref<8x1920xbf16, #tpu.memory_space<vmem>>, vector<8x128xbf16>
    tpu.vector_store %arg7[%c0_45, %c1152], %125 {strides = array<i32>} : memref<8x1920xbf16, #tpu.memory_space<vmem>>, vector<8x128xbf16>,
    %127 = vector.extract_strided_slice %114 {offsets = [32, 0], sizes = [8, 128], strides = [1, 1]} : vector<40x128xf32> to vector<8x128xf32>
    %128 = arith.truncf %127 : vector<8x128xf32> to vector<8x128xbf16>
    %c0_46 = arith.constant 0 : index
    %c1536 = arith.constant 1536 : index
    %129 = vector.load %arg7[%c0_46, %c1536] : memref<8x1920xbf16, #tpu.memory_space<vmem>>, vector<8x128xbf16>
    tpu.vector_store %arg7[%c0_46, %c1536], %128 {strides = array<i32>} : memref<8x1920xbf16, #tpu.memory_space<vmem>>, vector<8x128xbf16>,
    %130 = vector.extract_strided_slice %106 {offsets = [0, 256], sizes = [40, 128], strides = [1, 1]} : vector<40x768xf32> to vector<40x128xf32>
    %131 = vector.extract_strided_slice %106 {offsets = [0, 384], sizes = [40, 128], strides = [1, 1]} : vector<40x768xf32> to vector<40x128xf32>
    %132 = arith.negf %131 : vector<40x128xf32>
    %133 = math.exp %132 : vector<40x128xf32>
    %cst_47 = arith.constant 1.000000e+00 : f32
    %134 = vector.broadcast %cst_47 : f32 to vector<40x128xf32>
    %135 = arith.addf %134, %133 : vector<40x128xf32>
    %136 = arith.divf %134, %135 : vector<40x128xf32>
    %137 = arith.mulf %130, %136 : vector<40x128xf32>
    %138 = vector.extract_strided_slice %137 {offsets = [0, 0], sizes = [8, 128], strides = [1, 1]} : vector<40x128xf32> to vector<8x128xf32>
    %139 = arith.truncf %138 : vector<8x128xf32> to vector<8x128xbf16>
    %c0_48 = arith.constant 0 : index
    %c128 = arith.constant 128 : index
    %140 = vector.load %arg7[%c0_48, %c128] : memref<8x1920xbf16, #tpu.memory_space<vmem>>, vector<8x128xbf16>
    tpu.vector_store %arg7[%c0_48, %c128], %139 {strides = array<i32>} : memref<8x1920xbf16, #tpu.memory_space<vmem>>, vector<8x128xbf16>,
    %141 = vector.extract_strided_slice %137 {offsets = [8, 0], sizes = [8, 128], strides = [1, 1]} : vector<40x128xf32> to vector<8x128xf32>
    %142 = arith.truncf %141 : vector<8x128xf32> to vector<8x128xbf16>
    %c0_49 = arith.constant 0 : index
    %c512 = arith.constant 512 : index
    %143 = vector.load %arg7[%c0_49, %c512] : memref<8x1920xbf16, #tpu.memory_space<vmem>>, vector<8x128xbf16>
    tpu.vector_store %arg7[%c0_49, %c512], %142 {strides = array<i32>} : memref<8x1920xbf16, #tpu.memory_space<vmem>>, vector<8x128xbf16>,
    %144 = vector.extract_strided_slice %137 {offsets = [16, 0], sizes = [8, 128], strides = [1, 1]} : vector<40x128xf32> to vector<8x128xf32>
    %145 = arith.truncf %144 : vector<8x128xf32> to vector<8x128xbf16>
    %c0_50 = arith.constant 0 : index
    %c896 = arith.constant 896 : index
    %146 = vector.load %arg7[%c0_50, %c896] : memref<8x1920xbf16, #tpu.memory_space<vmem>>, vector<8x128xbf16>
    tpu.vector_store %arg7[%c0_50, %c896], %145 {strides = array<i32>} : memref<8x1920xbf16, #tpu.memory_space<vmem>>, vector<8x128xbf16>,
    %147 = vector.extract_strided_slice %137 {offsets = [24, 0], sizes = [8, 128], strides = [1, 1]} : vector<40x128xf32> to vector<8x128xf32>
    %148 = arith.truncf %147 : vector<8x128xf32> to vector<8x128xbf16>
    %c0_51 = arith.constant 0 : index
    %c1280 = arith.constant 1280 : index
    %149 = vector.load %arg7[%c0_51, %c1280] : memref<8x1920xbf16, #tpu.memory_space<vmem>>, vector<8x128xbf16>
    tpu.vector_store %arg7[%c0_51, %c1280], %148 {strides = array<i32>} : memref<8x1920xbf16, #tpu.memory_space<vmem>>, vector<8x128xbf16>,
    %150 = vector.extract_strided_slice %137 {offsets = [32, 0], sizes = [8, 128], strides = [1, 1]} : vector<40x128xf32> to vector<8x128xf32>
    %151 = arith.truncf %150 : vector<8x128xf32> to vector<8x128xbf16>
    %c0_52 = arith.constant 0 : index
    %c1664 = arith.constant 1664 : index
    %152 = vector.load %arg7[%c0_52, %c1664] : memref<8x1920xbf16, #tpu.memory_space<vmem>>, vector<8x128xbf16>
    tpu.vector_store %arg7[%c0_52, %c1664], %151 {strides = array<i32>} : memref<8x1920xbf16, #tpu.memory_space<vmem>>, vector<8x128xbf16>,
    %153 = vector.extract_strided_slice %106 {offsets = [0, 512], sizes = [40, 128], strides = [1, 1]} : vector<40x768xf32> to vector<40x128xf32>
    %154 = vector.extract_strided_slice %106 {offsets = [0, 640], sizes = [40, 128], strides = [1, 1]} : vector<40x768xf32> to vector<40x128xf32>
    %155 = arith.negf %154 : vector<40x128xf32>
    %156 = math.exp %155 : vector<40x128xf32>
    %cst_53 = arith.constant 1.000000e+00 : f32
    %157 = vector.broadcast %cst_53 : f32 to vector<40x128xf32>
    %158 = arith.addf %157, %156 : vector<40x128xf32>
    %159 = arith.divf %157, %158 : vector<40x128xf32>
    %160 = arith.mulf %153, %159 : vector<40x128xf32>
    %161 = vector.extract_strided_slice %160 {offsets = [0, 0], sizes = [8, 128], strides = [1, 1]} : vector<40x128xf32> to vector<8x128xf32>
    %162 = arith.truncf %161 : vector<8x128xf32> to vector<8x128xbf16>
    %c0_54 = arith.constant 0 : index
    %c256 = arith.constant 256 : index
    %163 = vector.load %arg7[%c0_54, %c256] : memref<8x1920xbf16, #tpu.memory_space<vmem>>, vector<8x128xbf16>
    tpu.vector_store %arg7[%c0_54, %c256], %162 {strides = array<i32>} : memref<8x1920xbf16, #tpu.memory_space<vmem>>, vector<8x128xbf16>,
    %164 = vector.extract_strided_slice %160 {offsets = [8, 0], sizes = [8, 128], strides = [1, 1]} : vector<40x128xf32> to vector<8x128xf32>
    %165 = arith.truncf %164 : vector<8x128xf32> to vector<8x128xbf16>
    %c0_55 = arith.constant 0 : index
    %c640 = arith.constant 640 : index
    %166 = vector.load %arg7[%c0_55, %c640] : memref<8x1920xbf16, #tpu.memory_space<vmem>>, vector<8x128xbf16>
    tpu.vector_store %arg7[%c0_55, %c640], %165 {strides = array<i32>} : memref<8x1920xbf16, #tpu.memory_space<vmem>>, vector<8x128xbf16>,
    %167 = vector.extract_strided_slice %160 {offsets = [16, 0], sizes = [8, 128], strides = [1, 1]} : vector<40x128xf32> to vector<8x128xf32>
    %168 = arith.truncf %167 : vector<8x128xf32> to vector<8x128xbf16>
    %c0_56 = arith.constant 0 : index
    %c1024 = arith.constant 1024 : index
    %169 = vector.load %arg7[%c0_56, %c1024] : memref<8x1920xbf16, #tpu.memory_space<vmem>>, vector<8x128xbf16>
    tpu.vector_store %arg7[%c0_56, %c1024], %168 {strides = array<i32>} : memref<8x1920xbf16, #tpu.memory_space<vmem>>, vector<8x128xbf16>,
    %170 = vector.extract_strided_slice %160 {offsets = [24, 0], sizes = [8, 128], strides = [1, 1]} : vector<40x128xf32> to vector<8x128xf32>
    %171 = arith.truncf %170 : vector<8x128xf32> to vector<8x128xbf16>
    %c0_57 = arith.constant 0 : index
    %c1408 = arith.constant 1408 : index
    %172 = vector.load %arg7[%c0_57, %c1408] : memref<8x1920xbf16, #tpu.memory_space<vmem>>, vector<8x128xbf16>
    tpu.vector_store %arg7[%c0_57, %c1408], %171 {strides = array<i32>} : memref<8x1920xbf16, #tpu.memory_space<vmem>>, vector<8x128xbf16>,
    %173 = vector.extract_strided_slice %160 {offsets = [32, 0], sizes = [8, 128], strides = [1, 1]} : vector<40x128xf32> to vector<8x128xf32>
    %174 = arith.truncf %173 : vector<8x128xf32> to vector<8x128xbf16>
    %c0_58 = arith.constant 0 : index
    %c1792 = arith.constant 1792 : index
    %175 = vector.load %arg7[%c0_58, %c1792] : memref<8x1920xbf16, #tpu.memory_space<vmem>>, vector<8x128xbf16>
    tpu.vector_store %arg7[%c0_58, %c1792], %174 {strides = array<i32>} : memref<8x1920xbf16, #tpu.memory_space<vmem>>, vector<8x128xbf16>,
    return
  }
}

module attributes {stable_mosaic.version = 11 : i64} {
  func.func @_part2_kernel(%arg0: memref<120x128xbf16, #tpu.memory_space<vmem>>, %arg1: memref<2x128xf32, #tpu.memory_space<vmem>>, %arg2: memref<128x768xbf16, #tpu.memory_space<vmem>>, %arg3: memref<1x256xf32, #tpu.memory_space<vmem>>, %arg4: memref<2x128xf32, #tpu.memory_space<vmem>>, %arg5: memref<128x768xbf16, #tpu.memory_space<vmem>>, %arg6: memref<1x256xf32, #tpu.memory_space<vmem>>, %arg7: memref<2x128xf32, #tpu.memory_space<vmem>>, %arg8: memref<128x768xbf16, #tpu.memory_space<vmem>>, %arg9: memref<1x256xf32, #tpu.memory_space<vmem>>, %arg10: memref<2x128xf32, #tpu.memory_space<vmem>>, %arg11: memref<128x256xbf16, #tpu.memory_space<vmem>>, %arg12: memref<1x256xf32, #tpu.memory_space<vmem>>, %arg13: memref<120x128xf32, #tpu.memory_space<vmem>>) attributes {dimension_semantics = [], scalar_prefetch = 0 : i64, scratch_operands = 0 : i64, tpu.core_type = #tpu.core_type<tc>} {
    %0 = tpu.iota {dimensions = array<i32: 0>} : vector<120x1xi32>
    %c60_i32 = arith.constant 60 : i32
    %c0_i32 = arith.constant 0 : i32
    %1 = arith.cmpi eq, %c60_i32, %c0_i32 : i32
    %c1_i32 = arith.constant 1 : i32
    %2 = arith.select %1, %c1_i32, %c60_i32 : i32
    %3 = vector.broadcast %2 : i32 to vector<120x1xi32>
    %4 = arith.remsi %0, %3 : vector<120x1xi32>
    %c0_i32_0 = arith.constant 0 : i32
    %5 = vector.broadcast %c0_i32_0 : i32 to vector<120x1xi32>
    %6 = arith.cmpi ne, %4, %5 : vector<120x1xi32>
    %c0_i32_1 = arith.constant 0 : i32
    %7 = vector.broadcast %c0_i32_1 : i32 to vector<120x1xi32>
    %8 = arith.cmpi slt, %4, %7 : vector<120x1xi32>
    %c0_i32_2 = arith.constant 0 : i32
    %9 = arith.cmpi slt, %2, %c0_i32_2 : i32
    %10 = vector.broadcast %9 : i1 to vector<120x1xi1>
    %11 = vector.broadcast %10 : vector<120x1xi1> to vector<120x1xi1>
    %12 = arith.xori %8, %11 : vector<120x1xi1>
    %13 = arith.andi %12, %6 : vector<120x1xi1>
    %14 = vector.broadcast %2 : i32 to vector<120x1xi32>
    %15 = arith.addi %4, %14 : vector<120x1xi32>
    %16 = arith.select %13, %15, %4 : vector<120x1xi1>, vector<120x1xi32>
    %c0_i32_3 = arith.constant 0 : i32
    %17 = vector.broadcast %c0_i32_3 : i32 to vector<120x1xi32>
    %18 = arith.cmpi eq, %16, %17 : vector<120x1xi32>
    %c59_i32 = arith.constant 59 : i32
    %19 = vector.broadcast %c59_i32 : i32 to vector<120x1xi32>
    %20 = arith.cmpi eq, %16, %19 : vector<120x1xi32>
    %c0 = arith.constant 0 : index
    %c0_4 = arith.constant 0 : index
    %21 = vector.load %arg0[%c0, %c0_4] : memref<120x128xbf16, #tpu.memory_space<vmem>>, vector<120x128xbf16>
    %22 = arith.extf %21 : vector<120x128xbf16> to vector<120x128xf32>
    %c0_5 = arith.constant 0 : index
    %c0_6 = arith.constant 0 : index
    %23 = vector.load %arg1[%c0_5, %c0_6] : memref<2x128xf32, #tpu.memory_space<vmem>>, vector<1x128xf32>
    %c1 = arith.constant 1 : index
    %c0_7 = arith.constant 0 : index
    %24 = vector.load %arg1[%c1, %c0_7] : memref<2x128xf32, #tpu.memory_space<vmem>>, vector<1x128xf32>
    %cst = arith.constant dense<0.000000e+00> : vector<128xf32>
    %25 = vector.multi_reduction <add>, %22, %cst [0] : vector<120x128xf32> to vector<128xf32>
    %26 = vector.shape_cast %25 : vector<128xf32> to vector<1x128xf32>
    %cst_8 = arith.constant 1.200000e+02 : f32
    %27 = vector.broadcast %cst_8 : f32 to vector<1x128xf32>
    %28 = arith.divf %26, %27 : vector<1x128xf32>
    %29 = arith.mulf %22, %22 : vector<120x128xf32>
    %cst_9 = arith.constant dense<0.000000e+00> : vector<128xf32>
    %30 = vector.multi_reduction <add>, %29, %cst_9 [0] : vector<120x128xf32> to vector<128xf32>
    %31 = vector.shape_cast %30 : vector<128xf32> to vector<1x128xf32>
    %cst_10 = arith.constant 1.200000e+02 : f32
    %32 = vector.broadcast %cst_10 : f32 to vector<1x128xf32>
    %33 = arith.divf %31, %32 : vector<1x128xf32>
    %34 = arith.mulf %28, %28 : vector<1x128xf32>
    %35 = arith.subf %33, %34 : vector<1x128xf32>
    %36 = vector.broadcast %28 : vector<1x128xf32> to vector<120x128xf32>
    %37 = arith.subf %22, %36 : vector<120x128xf32>
    %cst_11 = arith.constant 9.99999974E-6 : f32
    %38 = vector.broadcast %cst_11 : f32 to vector<1x128xf32>
    %39 = arith.addf %35, %38 : vector<1x128xf32>
    %40 = math.rsqrt %39 : vector<1x128xf32>
    %41 = vector.broadcast %40 : vector<1x128xf32> to vector<120x128xf32>
    %42 = arith.mulf %37, %41 : vector<120x128xf32>
    %43 = vector.broadcast %23 : vector<1x128xf32> to vector<120x128xf32>
    %44 = arith.mulf %42, %43 : vector<120x128xf32>
    %45 = vector.broadcast %24 : vector<1x128xf32> to vector<120x128xf32>
    %46 = arith.addf %44, %45 : vector<120x128xf32>
    %47 = arith.truncf %46 : vector<120x128xf32> to vector<120x128xbf16>
    %c0_12 = arith.constant 0 : index
    %c0_13 = arith.constant 0 : index
    %48 = vector.load %arg2[%c0_12, %c0_13] : memref<128x768xbf16, #tpu.memory_space<vmem>>, vector<128x768xbf16>
    %cst_14 = arith.constant dense<0.000000e+00> : vector<120x768xf32>
    %49 = tpu.matmul %47, %48, %cst_14 {dimension_numbers = #tpu.dot_dimension_numbers<[1], [0], [0], [1], [0, 0, 1, 1], [], []>} : vector<120x128xbf16>, vector<128x768xbf16>, vector<120x768xf32> -> vector<120x768xf32>
    %50 = vector.extract_strided_slice %49 {offsets = [0, 0], sizes = [120, 256], strides = [1, 1]} : vector<120x768xf32> to vector<120x256xf32>
    %51 = vector.extract_strided_slice %49 {offsets = [0, 256], sizes = [120, 256], strides = [1, 1]} : vector<120x768xf32> to vector<120x256xf32>
    %52 = vector.extract_strided_slice %49 {offsets = [0, 512], sizes = [120, 256], strides = [1, 1]} : vector<120x768xf32> to vector<120x256xf32>
    %c1_i32_15 = arith.constant 1 : i32
    %53 = tpu.dynamic_rotate %50 by %c1_i32_15 dim 0 : vector<120x256xf32>, i32 -> vector<120x256xf32>
    %cst_16 = arith.constant 0.000000e+00 : f32
    %54 = vector.shape_cast %18 : vector<120x1xi1> to vector<120x1xi1>
    %55 = vector.broadcast %54 : vector<120x1xi1> to vector<120x256xi1>
    %56 = vector.broadcast %cst_16 : f32 to vector<120x256xf32>
    %57 = arith.select %55, %56, %53 : vector<120x256xi1>, vector<120x256xf32>
    %c119_i32 = arith.constant 119 : i32
    %58 = tpu.dynamic_rotate %52 by %c119_i32 dim 0 : vector<120x256xf32>, i32 -> vector<120x256xf32>
    %cst_17 = arith.constant 0.000000e+00 : f32
    %59 = vector.shape_cast %20 : vector<120x1xi1> to vector<120x1xi1>
    %60 = vector.broadcast %59 : vector<120x1xi1> to vector<120x256xi1>
    %61 = vector.broadcast %cst_17 : f32 to vector<120x256xf32>
    %62 = arith.select %60, %61, %58 : vector<120x256xi1>, vector<120x256xf32>
    %63 = arith.addf %51, %57 : vector<120x256xf32>
    %64 = arith.addf %63, %62 : vector<120x256xf32>
    %c0_18 = arith.constant 0 : index
    %c0_19 = arith.constant 0 : index
    %65 = vector.load %arg3[%c0_18, %c0_19] : memref<1x256xf32, #tpu.memory_space<vmem>>, vector<1x256xf32>
    %66 = vector.broadcast %65 : vector<1x256xf32> to vector<120x256xf32>
    %67 = arith.addf %64, %66 : vector<120x256xf32>
    %68 = vector.extract_strided_slice %67 {offsets = [0, 0], sizes = [120, 128], strides = [1, 1]} : vector<120x256xf32> to vector<120x128xf32>
    %69 = vector.extract_strided_slice %67 {offsets = [0, 128], sizes = [120, 128], strides = [1, 1]} : vector<120x256xf32> to vector<120x128xf32>
    %70 = arith.negf %69 : vector<120x128xf32>
    %71 = math.exp %70 : vector<120x128xf32>
    %cst_20 = arith.constant 1.000000e+00 : f32
    %72 = vector.broadcast %cst_20 : f32 to vector<120x128xf32>
    %73 = arith.addf %72, %71 : vector<120x128xf32>
    %74 = arith.divf %72, %73 : vector<120x128xf32>
    %75 = arith.mulf %68, %74 : vector<120x128xf32>
    %c0_21 = arith.constant 0 : index
    %c0_22 = arith.constant 0 : index
    %76 = vector.load %arg4[%c0_21, %c0_22] : memref<2x128xf32, #tpu.memory_space<vmem>>, vector<1x128xf32>
    %c1_23 = arith.constant 1 : index
    %c0_24 = arith.constant 0 : index
    %77 = vector.load %arg4[%c1_23, %c0_24] : memref<2x128xf32, #tpu.memory_space<vmem>>, vector<1x128xf32>
    %cst_25 = arith.constant dense<0.000000e+00> : vector<128xf32>
    %78 = vector.multi_reduction <add>, %75, %cst_25 [0] : vector<120x128xf32> to vector<128xf32>
    %79 = vector.shape_cast %78 : vector<128xf32> to vector<1x128xf32>
    %cst_26 = arith.constant 1.200000e+02 : f32
    %80 = vector.broadcast %cst_26 : f32 to vector<1x128xf32>
    %81 = arith.divf %79, %80 : vector<1x128xf32>
    %82 = arith.mulf %75, %75 : vector<120x128xf32>
    %cst_27 = arith.constant dense<0.000000e+00> : vector<128xf32>
    %83 = vector.multi_reduction <add>, %82, %cst_27 [0] : vector<120x128xf32> to vector<128xf32>
    %84 = vector.shape_cast %83 : vector<128xf32> to vector<1x128xf32>
    %cst_28 = arith.constant 1.200000e+02 : f32
    %85 = vector.broadcast %cst_28 : f32 to vector<1x128xf32>
    %86 = arith.divf %84, %85 : vector<1x128xf32>
    %87 = arith.mulf %81, %81 : vector<1x128xf32>
    %88 = arith.subf %86, %87 : vector<1x128xf32>
    %89 = vector.broadcast %81 : vector<1x128xf32> to vector<120x128xf32>
    %90 = arith.subf %75, %89 : vector<120x128xf32>
    %cst_29 = arith.constant 9.99999974E-6 : f32
    %91 = vector.broadcast %cst_29 : f32 to vector<1x128xf32>
    %92 = arith.addf %88, %91 : vector<1x128xf32>
    %93 = math.rsqrt %92 : vector<1x128xf32>
    %94 = vector.broadcast %93 : vector<1x128xf32> to vector<120x128xf32>
    %95 = arith.mulf %90, %94 : vector<120x128xf32>
    %96 = vector.broadcast %76 : vector<1x128xf32> to vector<120x128xf32>
    %97 = arith.mulf %95, %96 : vector<120x128xf32>
    %98 = vector.broadcast %77 : vector<1x128xf32> to vector<120x128xf32>
    %99 = arith.addf %97, %98 : vector<120x128xf32>
    %100 = arith.truncf %99 : vector<120x128xf32> to vector<120x128xbf16>
    %c0_30 = arith.constant 0 : index
    %c0_31 = arith.constant 0 : index
    %101 = vector.load %arg5[%c0_30, %c0_31] : memref<128x768xbf16, #tpu.memory_space<vmem>>, vector<128x768xbf16>
    %cst_32 = arith.constant dense<0.000000e+00> : vector<120x768xf32>
    %102 = tpu.matmul %100, %101, %cst_32 {dimension_numbers = #tpu.dot_dimension_numbers<[1], [0], [0], [1], [0, 0, 1, 1], [], []>} : vector<120x128xbf16>, vector<128x768xbf16>, vector<120x768xf32> -> vector<120x768xf32>
    %103 = vector.extract_strided_slice %102 {offsets = [0, 0], sizes = [120, 256], strides = [1, 1]} : vector<120x768xf32> to vector<120x256xf32>
    %104 = vector.extract_strided_slice %102 {offsets = [0, 256], sizes = [120, 256], strides = [1, 1]} : vector<120x768xf32> to vector<120x256xf32>
    %105 = vector.extract_strided_slice %102 {offsets = [0, 512], sizes = [120, 256], strides = [1, 1]} : vector<120x768xf32> to vector<120x256xf32>
    %c1_i32_33 = arith.constant 1 : i32
    %106 = tpu.dynamic_rotate %103 by %c1_i32_33 dim 0 : vector<120x256xf32>, i32 -> vector<120x256xf32>
    %cst_34 = arith.constant 0.000000e+00 : f32
    %107 = vector.shape_cast %18 : vector<120x1xi1> to vector<120x1xi1>
    %108 = vector.broadcast %107 : vector<120x1xi1> to vector<120x256xi1>
    %109 = vector.broadcast %cst_34 : f32 to vector<120x256xf32>
    %110 = arith.select %108, %109, %106 : vector<120x256xi1>, vector<120x256xf32>
    %c119_i32_35 = arith.constant 119 : i32
    %111 = tpu.dynamic_rotate %105 by %c119_i32_35 dim 0 : vector<120x256xf32>, i32 -> vector<120x256xf32>
    %cst_36 = arith.constant 0.000000e+00 : f32
    %112 = vector.shape_cast %20 : vector<120x1xi1> to vector<120x1xi1>
    %113 = vector.broadcast %112 : vector<120x1xi1> to vector<120x256xi1>
    %114 = vector.broadcast %cst_36 : f32 to vector<120x256xf32>
    %115 = arith.select %113, %114, %111 : vector<120x256xi1>, vector<120x256xf32>
    %116 = arith.addf %104, %110 : vector<120x256xf32>
    %117 = arith.addf %116, %115 : vector<120x256xf32>
    %c0_37 = arith.constant 0 : index
    %c0_38 = arith.constant 0 : index
    %118 = vector.load %arg6[%c0_37, %c0_38] : memref<1x256xf32, #tpu.memory_space<vmem>>, vector<1x256xf32>
    %119 = vector.broadcast %118 : vector<1x256xf32> to vector<120x256xf32>
    %120 = arith.addf %117, %119 : vector<120x256xf32>
    %121 = vector.extract_strided_slice %120 {offsets = [0, 0], sizes = [120, 128], strides = [1, 1]} : vector<120x256xf32> to vector<120x128xf32>
    %122 = vector.extract_strided_slice %120 {offsets = [0, 128], sizes = [120, 128], strides = [1, 1]} : vector<120x256xf32> to vector<120x128xf32>
    %123 = arith.negf %122 : vector<120x128xf32>
    %124 = math.exp %123 : vector<120x128xf32>
    %cst_39 = arith.constant 1.000000e+00 : f32
    %125 = vector.broadcast %cst_39 : f32 to vector<120x128xf32>
    %126 = arith.addf %125, %124 : vector<120x128xf32>
    %127 = arith.divf %125, %126 : vector<120x128xf32>
    %128 = arith.mulf %121, %127 : vector<120x128xf32>
    %c0_40 = arith.constant 0 : index
    %c0_41 = arith.constant 0 : index
    %129 = vector.load %arg7[%c0_40, %c0_41] : memref<2x128xf32, #tpu.memory_space<vmem>>, vector<1x128xf32>
    %c1_42 = arith.constant 1 : index
    %c0_43 = arith.constant 0 : index
    %130 = vector.load %arg7[%c1_42, %c0_43] : memref<2x128xf32, #tpu.memory_space<vmem>>, vector<1x128xf32>
    %cst_44 = arith.constant dense<0.000000e+00> : vector<128xf32>
    %131 = vector.multi_reduction <add>, %128, %cst_44 [0] : vector<120x128xf32> to vector<128xf32>
    %132 = vector.shape_cast %131 : vector<128xf32> to vector<1x128xf32>
    %cst_45 = arith.constant 1.200000e+02 : f32
    %133 = vector.broadcast %cst_45 : f32 to vector<1x128xf32>
    %134 = arith.divf %132, %133 : vector<1x128xf32>
    %135 = arith.mulf %128, %128 : vector<120x128xf32>
    %cst_46 = arith.constant dense<0.000000e+00> : vector<128xf32>
    %136 = vector.multi_reduction <add>, %135, %cst_46 [0] : vector<120x128xf32> to vector<128xf32>
    %137 = vector.shape_cast %136 : vector<128xf32> to vector<1x128xf32>
    %cst_47 = arith.constant 1.200000e+02 : f32
    %138 = vector.broadcast %cst_47 : f32 to vector<1x128xf32>
    %139 = arith.divf %137, %138 : vector<1x128xf32>
    %140 = arith.mulf %134, %134 : vector<1x128xf32>
    %141 = arith.subf %139, %140 : vector<1x128xf32>
    %142 = vector.broadcast %134 : vector<1x128xf32> to vector<120x128xf32>
    %143 = arith.subf %128, %142 : vector<120x128xf32>
    %cst_48 = arith.constant 9.99999974E-6 : f32
    %144 = vector.broadcast %cst_48 : f32 to vector<1x128xf32>
    %145 = arith.addf %141, %144 : vector<1x128xf32>
    %146 = math.rsqrt %145 : vector<1x128xf32>
    %147 = vector.broadcast %146 : vector<1x128xf32> to vector<120x128xf32>
    %148 = arith.mulf %143, %147 : vector<120x128xf32>
    %149 = vector.broadcast %129 : vector<1x128xf32> to vector<120x128xf32>
    %150 = arith.mulf %148, %149 : vector<120x128xf32>
    %151 = vector.broadcast %130 : vector<1x128xf32> to vector<120x128xf32>
    %152 = arith.addf %150, %151 : vector<120x128xf32>
    %153 = arith.truncf %152 : vector<120x128xf32> to vector<120x128xbf16>
    %c0_49 = arith.constant 0 : index
    %c0_50 = arith.constant 0 : index
    %154 = vector.load %arg8[%c0_49, %c0_50] : memref<128x768xbf16, #tpu.memory_space<vmem>>, vector<128x768xbf16>
    %cst_51 = arith.constant dense<0.000000e+00> : vector<120x768xf32>
    %155 = tpu.matmul %153, %154, %cst_51 {dimension_numbers = #tpu.dot_dimension_numbers<[1], [0], [0], [1], [0, 0, 1, 1], [], []>} : vector<120x128xbf16>, vector<128x768xbf16>, vector<120x768xf32> -> vector<120x768xf32>
    %156 = vector.extract_strided_slice %155 {offsets = [0, 0], sizes = [120, 256], strides = [1, 1]} : vector<120x768xf32> to vector<120x256xf32>
    %157 = vector.extract_strided_slice %155 {offsets = [0, 256], sizes = [120, 256], strides = [1, 1]} : vector<120x768xf32> to vector<120x256xf32>
    %158 = vector.extract_strided_slice %155 {offsets = [0, 512], sizes = [120, 256], strides = [1, 1]} : vector<120x768xf32> to vector<120x256xf32>
    %c1_i32_52 = arith.constant 1 : i32
    %159 = tpu.dynamic_rotate %156 by %c1_i32_52 dim 0 : vector<120x256xf32>, i32 -> vector<120x256xf32>
    %cst_53 = arith.constant 0.000000e+00 : f32
    %160 = vector.shape_cast %18 : vector<120x1xi1> to vector<120x1xi1>
    %161 = vector.broadcast %160 : vector<120x1xi1> to vector<120x256xi1>
    %162 = vector.broadcast %cst_53 : f32 to vector<120x256xf32>
    %163 = arith.select %161, %162, %159 : vector<120x256xi1>, vector<120x256xf32>
    %c119_i32_54 = arith.constant 119 : i32
    %164 = tpu.dynamic_rotate %158 by %c119_i32_54 dim 0 : vector<120x256xf32>, i32 -> vector<120x256xf32>
    %cst_55 = arith.constant 0.000000e+00 : f32
    %165 = vector.shape_cast %20 : vector<120x1xi1> to vector<120x1xi1>
    %166 = vector.broadcast %165 : vector<120x1xi1> to vector<120x256xi1>
    %167 = vector.broadcast %cst_55 : f32 to vector<120x256xf32>
    %168 = arith.select %166, %167, %164 : vector<120x256xi1>, vector<120x256xf32>
    %169 = arith.addf %157, %163 : vector<120x256xf32>
    %170 = arith.addf %169, %168 : vector<120x256xf32>
    %c0_56 = arith.constant 0 : index
    %c0_57 = arith.constant 0 : index
    %171 = vector.load %arg9[%c0_56, %c0_57] : memref<1x256xf32, #tpu.memory_space<vmem>>, vector<1x256xf32>
    %172 = vector.broadcast %171 : vector<1x256xf32> to vector<120x256xf32>
    %173 = arith.addf %170, %172 : vector<120x256xf32>
    %174 = vector.extract_strided_slice %173 {offsets = [0, 0], sizes = [120, 128], strides = [1, 1]} : vector<120x256xf32> to vector<120x128xf32>
    %175 = vector.extract_strided_slice %173 {offsets = [0, 128], sizes = [120, 128], strides = [1, 1]} : vector<120x256xf32> to vector<120x128xf32>
    %176 = arith.negf %175 : vector<120x128xf32>
    %177 = math.exp %176 : vector<120x128xf32>
    %cst_58 = arith.constant 1.000000e+00 : f32
    %178 = vector.broadcast %cst_58 : f32 to vector<120x128xf32>
    %179 = arith.addf %178, %177 : vector<120x128xf32>
    %180 = arith.divf %178, %179 : vector<120x128xf32>
    %181 = arith.mulf %174, %180 : vector<120x128xf32>
    %c0_59 = arith.constant 0 : index
    %c0_60 = arith.constant 0 : index
    %182 = vector.load %arg10[%c0_59, %c0_60] : memref<2x128xf32, #tpu.memory_space<vmem>>, vector<1x128xf32>
    %c1_61 = arith.constant 1 : index
    %c0_62 = arith.constant 0 : index
    %183 = vector.load %arg10[%c1_61, %c0_62] : memref<2x128xf32, #tpu.memory_space<vmem>>, vector<1x128xf32>
    %cst_63 = arith.constant dense<0.000000e+00> : vector<128xf32>
    %184 = vector.multi_reduction <add>, %181, %cst_63 [0] : vector<120x128xf32> to vector<128xf32>
    %185 = vector.shape_cast %184 : vector<128xf32> to vector<1x128xf32>
    %cst_64 = arith.constant 1.200000e+02 : f32
    %186 = vector.broadcast %cst_64 : f32 to vector<1x128xf32>
    %187 = arith.divf %185, %186 : vector<1x128xf32>
    %188 = arith.mulf %181, %181 : vector<120x128xf32>
    %cst_65 = arith.constant dense<0.000000e+00> : vector<128xf32>
    %189 = vector.multi_reduction <add>, %188, %cst_65 [0] : vector<120x128xf32> to vector<128xf32>
    %190 = vector.shape_cast %189 : vector<128xf32> to vector<1x128xf32>
    %cst_66 = arith.constant 1.200000e+02 : f32
    %191 = vector.broadcast %cst_66 : f32 to vector<1x128xf32>
    %192 = arith.divf %190, %191 : vector<1x128xf32>
    %193 = arith.mulf %187, %187 : vector<1x128xf32>
    %194 = arith.subf %192, %193 : vector<1x128xf32>
    %195 = vector.broadcast %187 : vector<1x128xf32> to vector<120x128xf32>
    %196 = arith.subf %181, %195 : vector<120x128xf32>
    %cst_67 = arith.constant 9.99999974E-6 : f32
    %197 = vector.broadcast %cst_67 : f32 to vector<1x128xf32>
    %198 = arith.addf %194, %197 : vector<1x128xf32>
    %199 = math.rsqrt %198 : vector<1x128xf32>
    %200 = vector.broadcast %199 : vector<1x128xf32> to vector<120x128xf32>
    %201 = arith.mulf %196, %200 : vector<120x128xf32>
    %202 = vector.broadcast %182 : vector<1x128xf32> to vector<120x128xf32>
    %203 = arith.mulf %201, %202 : vector<120x128xf32>
    %204 = vector.broadcast %183 : vector<1x128xf32> to vector<120x128xf32>
    %205 = arith.addf %203, %204 : vector<120x128xf32>
    %206 = arith.truncf %205 : vector<120x128xf32> to vector<120x128xbf16>
    %c0_68 = arith.constant 0 : index
    %c0_69 = arith.constant 0 : index
    %207 = vector.load %arg11[%c0_68, %c0_69] : memref<128x256xbf16, #tpu.memory_space<vmem>>, vector<128x256xbf16>
    %cst_70 = arith.constant dense<0.000000e+00> : vector<120x256xf32>
    %208 = tpu.matmul %206, %207, %cst_70 {dimension_numbers = #tpu.dot_dimension_numbers<[1], [0], [0], [1], [0, 0, 1, 1], [], []>} : vector<120x128xbf16>, vector<128x256xbf16>, vector<120x256xf32> -> vector<120x256xf32>
    %c0_71 = arith.constant 0 : index
    %c0_72 = arith.constant 0 : index
    %209 = vector.load %arg12[%c0_71, %c0_72] : memref<1x256xf32, #tpu.memory_space<vmem>>, vector<1x256xf32>
    %210 = vector.broadcast %209 : vector<1x256xf32> to vector<120x256xf32>
    %211 = arith.addf %208, %210 : vector<120x256xf32>
    %212 = vector.extract_strided_slice %211 {offsets = [0, 0], sizes = [120, 128], strides = [1, 1]} : vector<120x256xf32> to vector<120x128xf32>
    %213 = vector.extract_strided_slice %211 {offsets = [0, 128], sizes = [120, 128], strides = [1, 1]} : vector<120x256xf32> to vector<120x128xf32>
    %214 = arith.negf %213 : vector<120x128xf32>
    %215 = math.exp %214 : vector<120x128xf32>
    %cst_73 = arith.constant 1.000000e+00 : f32
    %216 = vector.broadcast %cst_73 : f32 to vector<120x128xf32>
    %217 = arith.addf %216, %215 : vector<120x128xf32>
    %218 = arith.divf %216, %217 : vector<120x128xf32>
    %219 = arith.mulf %212, %218 : vector<120x128xf32>
    %c0_74 = arith.constant 0 : index
    %c0_75 = arith.constant 0 : index
    %220 = vector.load %arg13[%c0_74, %c0_75] : memref<120x128xf32, #tpu.memory_space<vmem>>, vector<120x128xf32>
    tpu.vector_store %arg13[%c0_74, %c0_75], %219 {strides = array<i32>} : memref<120x128xf32, #tpu.memory_space<vmem>>, vector<120x128xf32>,
    return
  }
}

</mosaic_0001>

<llo_original>
// kernel: decoder_forward.2
$region0: #{decoder_forward.2}
  #allocation0 [shape = 'u32[]', space=smem, size = 0x4, offset = 0x4, fixed_abs, tag = 'smem constant byte address 0x4 - core index']
  #allocation1 [shape = 'u32[144,128]{1,0:T(1,128)}', space=vmem, size = 0x12000, scoped, tag = 'internal scratch']
  #allocation2 [shape = 'f32[40,128]{1,0:T(8,128)}', space=vmem, size = 0x5000, scoped, tag = 'scratch operand']
  %s0 = inlined_call_operand.vmem [shape: f32[8,128], index: 0, kind: input, shape index: {}]
  %s1 = inlined_call_operand.vmem [shape: f32[2,128], index: 1, kind: input, shape index: {}]
  %s2 = inlined_call_operand.vmem [shape: bf16[128,1280], index: 2, kind: input, shape index: {}]
  %s3 = inlined_call_operand.vmem [shape: f32[1,1280], index: 3, kind: input, shape index: {}]
  %s4 = inlined_call_operand.vmem [shape: f32[2,128], index: 4, kind: input, shape index: {}]
  %s5 = inlined_call_operand.vmem [shape: bf16[128,768], index: 5, kind: input, shape index: {}]
  %s6 = inlined_call_operand.vmem [shape: f32[1,768], index: 6, kind: input, shape index: {}]
  %s7 = inlined_call_operand.vmem [shape: bf16[8,1920], index: 7, kind: output, shape index: {}]
  %s8 = sld [smem:[#allocation0]]
  $region38: #{decoder_forward.2} parent=0
    _
  %s10 = ssub.s32 1, %s8
  %s11 = scalar_select 0, %s10, %s8
  // Predicated region
  $region2: #{decoder_forward.2} parent=0 // pred_check
    _
  $region3: #{decoder_forward.2} parent=0 // pred_check_branch
    %13 = sbr.rel (0) target = $region5
  $region4: #{decoder_forward.2} parent=0 // pred_region
    _
  $region5: #{decoder_forward.2} parent=0 // pred_fallthru
    _
  // Predicated region
  $region6: #{decoder_forward.2} parent=0 // pred_check
    _
  $region7: #{decoder_forward.2} parent=0 // pred_check_branch
    %15 = sbr.rel (0) target = $region9
  $region8: #{decoder_forward.2} parent=0 // pred_region
    _
  $region9: #{decoder_forward.2} parent=0 // pred_fallthru
    _
  // Predicated region
  $region10: #{decoder_forward.2} parent=0 // pred_check
    _
  $region11: #{decoder_forward.2} parent=0 // pred_check_branch
    %17 = sbr.rel (0) target = $region13
  $region12: #{decoder_forward.2} parent=0 // pred_region
    _
  $region13: #{decoder_forward.2} parent=0 // pred_fallthru
    _
  // Predicated region
  $region14: #{decoder_forward.2} parent=0 // pred_check
    _
  $region15: #{decoder_forward.2} parent=0 // pred_check_branch
    %19 = sbr.rel (0) target = $region17
  $region16: #{decoder_forward.2} parent=0 // pred_region
    _
  $region17: #{decoder_forward.2} parent=0 // pred_fallthru
    _
  // Predicated region
  $region18: #{decoder_forward.2} parent=0 // pred_check
    _
  $region19: #{decoder_forward.2} parent=0 // pred_check_branch
    %21 = sbr.rel (0) target = $region21
  $region20: #{decoder_forward.2} parent=0 // pred_region
    _
  $region21: #{decoder_forward.2} parent=0 // pred_fallthru
    _
  // Predicated region
  $region22: #{decoder_forward.2} parent=0 // pred_check
    _
  $region23: #{decoder_forward.2} parent=0 // pred_check_branch
    %23 = sbr.rel (0) target = $region25
  $region24: #{decoder_forward.2} parent=0 // pred_region
    _
  $region25: #{decoder_forward.2} parent=0 // pred_fallthru
    _
  // Predicated region
  $region26: #{decoder_forward.2} parent=0 // pred_check
    _
  $region27: #{decoder_forward.2} parent=0 // pred_check_branch
    %25 = sbr.rel (0) target = $region29
  $region28: #{decoder_forward.2} parent=0 // pred_region
    _
  $region29: #{decoder_forward.2} parent=0 // pred_fallthru
    _
  %v27 = vld [vmem:[%s0] sm:$0xff]
  %v28 = vld [vmem:[%s1] sm:$0x1]
  %v29 = vld [vmem:[%s1 + $0x1] sm:$0x1]
  %v30 = vrot.slane %v27, 4
  %v31 = vadd.f32 %v27, %v30
  %v32 = vrot.slane %v31, 2
  %v33 = vadd.f32 %v31, %v32
  %v34 = vrot.slane %v33, 1
  %v35 = vadd.f32 %v33, %v34
  %v36 = vrcp.pop 8.0
  %v37 = vmul.f32 %v35, %v36
  %v38 = vmul.f32 %v27, %v27
  %v39 = vrot.slane %v38, 4
  %v40 = vadd.f32 %v38, %v39
  %v41 = vrot.slane %v40, 2
  %v42 = vadd.f32 %v40, %v41
  %v43 = vrot.slane %v42, 1
  %v44 = vadd.f32 %v42, %v43
  %v45 = vmul.f32 %v44, %v36
  %v46 = vmul.f32 %v37, %v37
  %v47 = vsub.f32 %v45, %v46
  %v48 = vsub.f32 %v27, %v37
  %v49 = vadd.f32 %v47, 1e-05
  %v50 = vrsqrt.pop %v49
  %v51 = vmul.f32 %v48, %v50
  %v52 = vlaneseq
  %v53 = vshrl.u32 %v52, 7
  %v54 = vsub.s32 0, %v53
  %v55 = vrot.slane %v28, %v54
  %v56 = vmul.f32 %v51, %v55
  %v57 = vlaneseq
  %v58 = vshrl.u32 %v57, 7
  %v59 = vsub.s32 0, %v58
  %v60 = vrot.slane %v29, %v59
  %v61 = vadd.f32 %v56, %v60
  %v62 = vpack.c.bf16 %v61, %v61
  %v63 = vld [vmem:[%s2] sm:$0xff]
  %v64 = vld [vmem:[%s2 + $0x8] sm:$0xff]
  %v65 = vld [vmem:[%s2 + $0x10] sm:$0xff]
  %v66 = vld [vmem:[%s2 + $0x18] sm:$0xff]
  %v67 = vld [vmem:[%s2 + $0x20] sm:$0xff]
  %v68 = vld [vmem:[%s2 + $0x28] sm:$0xff]
  %v69 = vld [vmem:[%s2 + $0x30] sm:$0xff]
  %v70 = vld [vmem:[%s2 + $0x38] sm:$0xff]
  %v71 = vld [vmem:[%s2 + $0x40] sm:$0xff]
  %v72 = vld [vmem:[%s2 + $0x48] sm:$0xff]
  %v73 = vld [vmem:[%s2 + $0x50] sm:$0xff]
  %v74 = vld [vmem:[%s2 + $0x58] sm:$0xff]
  %v75 = vld [vmem:[%s2 + $0x60] sm:$0xff]
  %v76 = vld [vmem:[%s2 + $0x68] sm:$0xff]
  %v77 = vld [vmem:[%s2 + $0x70] sm:$0xff]
  %v78 = vld [vmem:[%s2 + $0x78] sm:$0xff]
  %v79 = vld [vmem:[%s2 + $0x80] sm:$0xff]
  %v80 = vld [vmem:[%s2 + $0x88] sm:$0xff]
  %v81 = vld [vmem:[%s2 + $0x90] sm:$0xff]
  %v82 = vld [vmem:[%s2 + $0x98] sm:$0xff]
  %v83 = vld [vmem:[%s2 + $0xa0] sm:$0xff]
  %v84 = vld [vmem:[%s2 + $0xa8] sm:$0xff]
  %v85 = vld [vmem:[%s2 + $0xb0] sm:$0xff]
  %v86 = vld [vmem:[%s2 + $0xb8] sm:$0xff]
  %v87 = vld [vmem:[%s2 + $0xc0] sm:$0xff]
  %v88 = vld [vmem:[%s2 + $0xc8] sm:$0xff]
  %v89 = vld [vmem:[%s2 + $0xd0] sm:$0xff]
  %v90 = vld [vmem:[%s2 + $0xd8] sm:$0xff]
  %v91 = vld [vmem:[%s2 + $0xe0] sm:$0xff]
  %v92 = vld [vmem:[%s2 + $0xe8] sm:$0xff]
  %v93 = vld [vmem:[%s2 + $0xf0] sm:$0xff]
  %v94 = vld [vmem:[%s2 + $0xf8] sm:$0xff]
  %v95 = vld [vmem:[%s2 + $0x100] sm:$0xff]
  %v96 = vld [vmem:[%s2 + $0x108] sm:$0xff]
  %v97 = vld [vmem:[%s2 + $0x110] sm:$0xff]
  %v98 = vld [vmem:[%s2 + $0x118] sm:$0xff]
  %v99 = vld [vmem:[%s2 + $0x120] sm:$0xff]
  %v100 = vld [vmem:[%s2 + $0x128] sm:$0xff]
  %v101 = vld [vmem:[%s2 + $0x130] sm:$0xff]
  %v102 = vld [vmem:[%s2 + $0x138] sm:$0xff]
  %v103 = vld [vmem:[%s2 + $0x140] sm:$0xff]
  %v104 = vld [vmem:[%s2 + $0x148] sm:$0xff]
  %v105 = vld [vmem:[%s2 + $0x150] sm:$0xff]
  %v106 = vld [vmem:[%s2 + $0x158] sm:$0xff]
  %v107 = vld [vmem:[%s2 + $0x160] sm:$0xff]
  %v108 = vld [vmem:[%s2 + $0x168] sm:$0xff]
  %v109 = vld [vmem:[%s2 + $0x170] sm:$0xff]
  %v110 = vld [vmem:[%s2 + $0x178] sm:$0xff]
  %v111 = vld [vmem:[%s2 + $0x180] sm:$0xff]
  %v112 = vld [vmem:[%s2 + $0x188] sm:$0xff]
  %v113 = vld [vmem:[%s2 + $0x190] sm:$0xff]
  %v114 = vld [vmem:[%s2 + $0x198] sm:$0xff]
  %v115 = vld [vmem:[%s2 + $0x1a0] sm:$0xff]
  %v116 = vld [vmem:[%s2 + $0x1a8] sm:$0xff]
  %v117 = vld [vmem:[%s2 + $0x1b0] sm:$0xff]
  %v118 = vld [vmem:[%s2 + $0x1b8] sm:$0xff]
  %v119 = vld [vmem:[%s2 + $0x1c0] sm:$0xff]
  %v120 = vld [vmem:[%s2 + $0x1c8] sm:$0xff]
  %v121 = vld [vmem:[%s2 + $0x1d0] sm:$0xff]
  %v122 = vld [vmem:[%s2 + $0x1d8] sm:$0xff]
  %v123 = vld [vmem:[%s2 + $0x1e0] sm:$0xff]
  %v124 = vld [vmem:[%s2 + $0x1e8] sm:$0xff]
  %v125 = vld [vmem:[%s2 + $0x1f0] sm:$0xff]
  %v126 = vld [vmem:[%s2 + $0x1f8] sm:$0xff]
  %v127 = vld [vmem:[%s2 + $0x200] sm:$0xff]
  %v128 = vld [vmem:[%s2 + $0x208] sm:$0xff]
  %v129 = vld [vmem:[%s2 + $0x210] sm:$0xff]
  %v130 = vld [vmem:[%s2 + $0x218] sm:$0xff]
  %v131 = vld [vmem:[%s2 + $0x220] sm:$0xff]
  %v132 = vld [vmem:[%s2 + $0x228] sm:$0xff]
  %v133 = vld [vmem:[%s2 + $0x230] sm:$0xff]
  %v134 = vld [vmem:[%s2 + $0x238] sm:$0xff]
  %v135 = vld [vmem:[%s2 + $0x240] sm:$0xff]
  %v136 = vld [vmem:[%s2 + $0x248] sm:$0xff]
  %v137 = vld [vmem:[%s2 + $0x250] sm:$0xff]
  %v138 = vld [vmem:[%s2 + $0x258] sm:$0xff]
  %v139 = vld [vmem:[%s2 + $0x260] sm:$0xff]
  %v140 = vld [vmem:[%s2 + $0x268] sm:$0xff]
  %v141 = vld [vmem:[%s2 + $0x270] sm:$0xff]
  %v142 = vld [vmem:[%s2 + $0x278] sm:$0xff]
  %v143 = vld [vmem:[%s3] sm:$0xff]
  %v144 = vld [vmem:[%s3 + $0x8] sm:$0x3]
  %v147 = vlaneseq
  %v148 = vshrl.u32 %v147, 7
  %v149 = vsub.s32 0, %v148
  %v150 = vrot.slane %v143, %v149
  %v151 = vlaneseq
  %v152 = vshrl.u32 %v151, 7
  %v153 = vsub.s32 1, %v152
  %v154 = vrot.slane %v143, %v153
  %v155 = vlaneseq
  %v156 = vshrl.u32 %v155, 7
  %v157 = vsub.s32 2, %v156
  %v158 = vrot.slane %v143, %v157
  %v159 = vlaneseq
  %v160 = vshrl.u32 %v159, 7
  %v161 = vsub.s32 3, %v160
  %v162 = vrot.slane %v143, %v161
  %v163 = vlaneseq
  %v164 = vshrl.u32 %v163, 7
  %v165 = vsub.s32 4, %v164
  %v166 = vrot.slane %v143, %v165
  %v167 = vlaneseq
  %v168 = vshrl.u32 %v167, 7
  %v169 = vsub.s32 5, %v168
  %v170 = vrot.slane %v143, %v169
  %v171 = vlaneseq
  %v172 = vshrl.u32 %v171, 7
  %v173 = vsub.s32 6, %v172
  %v174 = vrot.slane %v143, %v173
  %v175 = vlaneseq
  %v176 = vshrl.u32 %v175, 7
  %v177 = vsub.s32 7, %v176
  %v178 = vrot.slane %v143, %v177
  %v179 = vlaneseq
  %v180 = vshrl.u32 %v179, 7
  %v181 = vsub.s32 0, %v180
  %v182 = vrot.slane %v144, %v181
  %v183 = vlaneseq
  %v184 = vshrl.u32 %v183, 7
  %v185 = vsub.s32 1, %v184
  %v186 = vrot.slane %v144, %v185
  %v277 = vunpack.c.l.b16 %v63
  %v278 = vunpack.c.h.b16 %v63
  %v279 = vunpack.c.l.b16 %v64
  %v280 = vunpack.c.h.b16 %v64
  %v281 = vunpack.c.l.b16 %v65
  %v282 = vunpack.c.h.b16 %v65
  %v283 = vunpack.c.l.b16 %v66
  %v284 = vunpack.c.h.b16 %v66
  %v285 = vunpack.c.l.b16 %v67
  %v286 = vunpack.c.h.b16 %v67
  %v287 = vunpack.c.l.b16 %v68
  %v288 = vunpack.c.h.b16 %v68
  %v289 = vunpack.c.l.b16 %v69
  %v290 = vunpack.c.h.b16 %v69
  %v291 = vunpack.c.l.b16 %v70
  %v292 = vunpack.c.h.b16 %v70
  %v293 = vunpack.c.l.b16 %v71
  %v294 = vunpack.c.h.b16 %v71
  %v295 = vunpack.c.l.b16 %v72
  %v296 = vunpack.c.h.b16 %v72
  %v297 = vunpack.c.l.b16 %v73
  %v298 = vunpack.c.h.b16 %v73
  %v299 = vunpack.c.l.b16 %v74
  %v300 = vunpack.c.h.b16 %v74
  %v301 = vunpack.c.l.b16 %v75
  %v302 = vunpack.c.h.b16 %v75
  %v303 = vunpack.c.l.b16 %v76
  %v304 = vunpack.c.h.b16 %v76
  %v305 = vunpack.c.l.b16 %v77
  %v306 = vunpack.c.h.b16 %v77
  %v307 = vunpack.c.l.b16 %v78
  %v308 = vunpack.c.h.b16 %v78
  %v309 = vunpack.c.l.b16 %v79
  %v310 = vunpack.c.h.b16 %v79
  %v311 = vunpack.c.l.b16 %v80
  %v312 = vunpack.c.h.b16 %v80
  %v313 = vunpack.c.l.b16 %v81
  %v314 = vunpack.c.h.b16 %v81
  %v315 = vunpack.c.l.b16 %v82
  %v316 = vunpack.c.h.b16 %v82
  %v317 = vunpack.c.l.b16 %v83
  %v318 = vunpack.c.h.b16 %v83
  %v319 = vunpack.c.l.b16 %v84
  %v320 = vunpack.c.h.b16 %v84
  %v321 = vunpack.c.l.b16 %v85
  %v322 = vunpack.c.h.b16 %v85
  %v323 = vunpack.c.l.b16 %v86
  %v324 = vunpack.c.h.b16 %v86
  %v325 = vunpack.c.l.b16 %v87
  %v326 = vunpack.c.h.b16 %v87
  %v327 = vunpack.c.l.b16 %v88
  %v328 = vunpack.c.h.b16 %v88
  %v329 = vunpack.c.l.b16 %v89
  %v330 = vunpack.c.h.b16 %v89
  %v331 = vunpack.c.l.b16 %v90
  %v332 = vunpack.c.h.b16 %v90
  %v333 = vunpack.c.l.b16 %v91
  %v334 = vunpack.c.h.b16 %v91
  %v335 = vunpack.c.l.b16 %v92
  %v336 = vunpack.c.h.b16 %v92
  %v337 = vunpack.c.l.b16 %v93
  %v338 = vunpack.c.h.b16 %v93
  %v339 = vunpack.c.l.b16 %v94
  %v340 = vunpack.c.h.b16 %v94
  %v341 = vunpack.c.l.b16 %v95
  %v342 = vunpack.c.h.b16 %v95
  %v343 = vunpack.c.l.b16 %v96
  %v344 = vunpack.c.h.b16 %v96
  %v345 = vunpack.c.l.b16 %v97
  %v346 = vunpack.c.h.b16 %v97
  %v347 = vunpack.c.l.b16 %v98
  %v348 = vunpack.c.h.b16 %v98
  %v349 = vunpack.c.l.b16 %v99
  %v350 = vunpack.c.h.b16 %v99
  %v351 = vunpack.c.l.b16 %v100
  %v352 = vunpack.c.h.b16 %v100
  %v353 = vunpack.c.l.b16 %v101
  %v354 = vunpack.c.h.b16 %v101
  %v355 = vunpack.c.l.b16 %v102
  %v356 = vunpack.c.h.b16 %v102
  %v357 = vunpack.c.l.b16 %v103
  %v358 = vunpack.c.h.b16 %v103
  %v359 = vunpack.c.l.b16 %v104
  %v360 = vunpack.c.h.b16 %v104
  %v361 = vunpack.c.l.b16 %v105
  %v362 = vunpack.c.h.b16 %v105
  %v363 = vunpack.c.l.b16 %v106
  %v364 = vunpack.c.h.b16 %v106
  %v365 = vunpack.c.l.b16 %v107
  %v366 = vunpack.c.h.b16 %v107
  %v367 = vunpack.c.l.b16 %v108
  %v368 = vunpack.c.h.b16 %v108
  %v369 = vunpack.c.l.b16 %v109
  %v370 = vunpack.c.h.b16 %v109
  %v371 = vunpack.c.l.b16 %v110
  %v372 = vunpack.c.h.b16 %v110
  %v373 = vunpack.c.l.b16 %v111
  %v374 = vunpack.c.h.b16 %v111
  %v375 = vunpack.c.l.b16 %v112
  %v376 = vunpack.c.h.b16 %v112
  %v377 = vunpack.c.l.b16 %v113
  %v378 = vunpack.c.h.b16 %v113
  %v379 = vunpack.c.l.b16 %v114
  %v380 = vunpack.c.h.b16 %v114
  %v381 = vunpack.c.l.b16 %v115
  %v382 = vunpack.c.h.b16 %v115
  %v383 = vunpack.c.l.b16 %v116
  %v384 = vunpack.c.h.b16 %v116
  %v385 = vunpack.c.l.b16 %v117
  %v386 = vunpack.c.h.b16 %v117
  %v387 = vunpack.c.l.b16 %v118
  %v388 = vunpack.c.h.b16 %v118
  %v389 = vunpack.c.l.b16 %v119
  %v390 = vunpack.c.h.b16 %v119
  %v391 = vunpack.c.l.b16 %v120
  %v392 = vunpack.c.h.b16 %v120
  %v393 = vunpack.c.l.b16 %v121
  %v394 = vunpack.c.h.b16 %v121
  %v395 = vunpack.c.l.b16 %v122
  %v396 = vunpack.c.h.b16 %v122
  %v397 = vunpack.c.l.b16 %v123
  %v398 = vunpack.c.h.b16 %v123
  %v399 = vunpack.c.l.b16 %v124
  %v400 = vunpack.c.h.b16 %v124
  %v401 = vunpack.c.l.b16 %v125
  %v402 = vunpack.c.h.b16 %v125
  %v403 = vunpack.c.l.b16 %v126
  %v404 = vunpack.c.h.b16 %v126
  %v405 = vunpack.c.l.b16 %v127
  %v406 = vunpack.c.h.b16 %v127
  %v407 = vunpack.c.l.b16 %v128
  %v408 = vunpack.c.h.b16 %v128
  %v409 = vunpack.c.l.b16 %v129
  %v410 = vunpack.c.h.b16 %v129
  %v411 = vunpack.c.l.b16 %v130
  %v412 = vunpack.c.h.b16 %v130
  %v413 = vunpack.c.l.b16 %v131
  %v414 = vunpack.c.h.b16 %v131
  %v415 = vunpack.c.l.b16 %v132
  %v416 = vunpack.c.h.b16 %v132
  %v417 = vunpack.c.l.b16 %v133
  %v418 = vunpack.c.h.b16 %v133
  %v419 = vunpack.c.l.b16 %v134
  %v420 = vunpack.c.h.b16 %v134
  %v421 = vunpack.c.l.b16 %v135
  %v422 = vunpack.c.h.b16 %v135
  %v423 = vunpack.c.l.b16 %v136
  %v424 = vunpack.c.h.b16 %v136
  %v425 = vunpack.c.l.b16 %v137
  %v426 = vunpack.c.h.b16 %v137
  %v427 = vunpack.c.l.b16 %v138
  %v428 = vunpack.c.h.b16 %v138
  %v429 = vunpack.c.l.b16 %v139
  %v430 = vunpack.c.h.b16 %v139
  %v431 = vunpack.c.l.b16 %v140
  %v432 = vunpack.c.h.b16 %v140
  %v433 = vunpack.c.l.b16 %v141
  %v434 = vunpack.c.h.b16 %v141
  %v435 = vunpack.c.l.b16 %v142
  %v436 = vunpack.c.h.b16 %v142
  %v437 = vpack.c.b16 %v287, %v277
  %v438 = vpack.c.b16 %v288, %v278
  %v439 = vpack.c.b16 %v289, %v279
  %v440 = vpack.c.b16 %v290, %v280
  %v441 = vpack.c.b16 %v291, %v281
  %v442 = vpack.c.b16 %v292, %v282
  %v443 = vpack.c.b16 %v293, %v283
  %v444 = vpack.c.b16 %v294, %v284
  %v445 = vpack.c.b16 %v295, %v285
  %v446 = vpack.c.b16 %v296, %v286
  %v447 = vpack.c.b16 %v307, %v297
  %v448 = vpack.c.b16 %v308, %v298
  %v449 = vpack.c.b16 %v309, %v299
  %v450 = vpack.c.b16 %v310, %v300
  %v451 = vpack.c.b16 %v311, %v301
  %v452 = vpack.c.b16 %v312, %v302
  %v453 = vpack.c.b16 %v313, %v303
  %v454 = vpack.c.b16 %v314, %v304
  %v455 = vpack.c.b16 %v315, %v305
  %v456 = vpack.c.b16 %v316, %v306
  %v457 = vpack.c.b16 %v327, %v317
  %v458 = vpack.c.b16 %v328, %v318
  %v459 = vpack.c.b16 %v329, %v319
  %v460 = vpack.c.b16 %v330, %v320
  %v461 = vpack.c.b16 %v331, %v321
  %v462 = vpack.c.b16 %v332, %v322
  %v463 = vpack.c.b16 %v333, %v323
  %v464 = vpack.c.b16 %v334, %v324
  %v465 = vpack.c.b16 %v335, %v325
  %v466 = vpack.c.b16 %v336, %v326
  %v467 = vpack.c.b16 %v347, %v337
  %v468 = vpack.c.b16 %v348, %v338
  %v469 = vpack.c.b16 %v349, %v339
  %v470 = vpack.c.b16 %v350, %v340
  %v471 = vpack.c.b16 %v351, %v341
  %v472 = vpack.c.b16 %v352, %v342
  %v473 = vpack.c.b16 %v353, %v343
  %v474 = vpack.c.b16 %v354, %v344
  %v475 = vpack.c.b16 %v355, %v345
  %v476 = vpack.c.b16 %v356, %v346
  %v477 = vpack.c.b16 %v367, %v357
  %v478 = vpack.c.b16 %v368, %v358
  %v479 = vpack.c.b16 %v369, %v359
  %v480 = vpack.c.b16 %v370, %v360
  %v481 = vpack.c.b16 %v371, %v361
  %v482 = vpack.c.b16 %v372, %v362
  %v483 = vpack.c.b16 %v373, %v363
  %v484 = vpack.c.b16 %v374, %v364
  %v485 = vpack.c.b16 %v375, %v365
  %v486 = vpack.c.b16 %v376, %v366
  %v487 = vpack.c.b16 %v387, %v377
  %v488 = vpack.c.b16 %v388, %v378
  %v489 = vpack.c.b16 %v389, %v379
  %v490 = vpack.c.b16 %v390, %v380
  %v491 = vpack.c.b16 %v391, %v381
  %v492 = vpack.c.b16 %v392, %v382
  %v493 = vpack.c.b16 %v393, %v383
  %v494 = vpack.c.b16 %v394, %v384
  %v495 = vpack.c.b16 %v395, %v385
  %v496 = vpack.c.b16 %v396, %v386
  %v497 = vpack.c.b16 %v407, %v397
  %v498 = vpack.c.b16 %v408, %v398
  %v499 = vpack.c.b16 %v409, %v399
  %v500 = vpack.c.b16 %v410, %v400
  %v501 = vpack.c.b16 %v411, %v401
  %v502 = vpack.c.b16 %v412, %v402
  %v503 = vpack.c.b16 %v413, %v403
  %v504 = vpack.c.b16 %v414, %v404
  %v505 = vpack.c.b16 %v415, %v405
  %v506 = vpack.c.b16 %v416, %v406
  %v507 = vpack.c.b16 %v427, %v417
  %v508 = vpack.c.b16 %v428, %v418
  %v509 = vpack.c.b16 %v429, %v419
  %v510 = vpack.c.b16 %v430, %v420
  %v511 = vpack.c.b16 %v431, %v421
  %v512 = vpack.c.b16 %v432, %v422
  %v513 = vpack.c.b16 %v433, %v423
  %v514 = vpack.c.b16 %v434, %v424
  %v515 = vpack.c.b16 %v435, %v425
  %v516 = vpack.c.b16 %v436, %v426
  %597 = vmatprep.subr.bf16.mxu0 %v508
  %598 = vmatpush1.bf16.msra.mxu0 %v507
  %599 = vmatprep.subr.bf16.mxu0 %v498
  %600 = vmatpush1.bf16.msra.mxu0 %v497
  %601 = vmatprep.subr.bf16.mxu0 %v488
  %602 = vmatpush1.bf16.msra.mxu0 %v487
  %603 = vmatprep.subr.bf16.mxu0 %v478
  %604 = vmatpush1.bf16.msra.mxu0 %v477
  %605 = vmatprep.subr.bf16.mxu0 %v468
  %606 = vmatpush1.bf16.msra.mxu0 %v467
  %607 = vmatprep.subr.bf16.mxu0 %v458
  %608 = vmatpush1.bf16.msra.mxu0 %v457
  %609 = vmatprep.subr.bf16.mxu0 %v448
  %610 = vmatpush1.bf16.msra.mxu0 %v447
  %611 = vmatprep.subr.bf16.mxu0 %v438
  %612 = vmatpush1.bf16.msra.mxu0 %v437
  %613 = vmatprep.subr.bf16.mxu0 0
  %614 = vmatpush2.bf16.msra.mxu0 0
  %615 = vmatprep.subr.bf16.mxu0 0
  %616 = vmatpush2.bf16.msra.mxu0 0
  %617 = vmatprep.subr.bf16.mxu0 0
  %618 = vmatpush2.bf16.msra.mxu0 0
  %619 = vmatprep.subr.bf16.mxu0 0
  %620 = vmatpush2.bf16.msra.mxu0 0
  %621 = vmatprep.subr.bf16.mxu0 0
  %622 = vmatpush2.bf16.msra.mxu0 0
  %623 = vmatprep.subr.bf16.mxu0 0
  %624 = vmatpush2.bf16.msra.mxu0 0
  %625 = vmatprep.subr.bf16.mxu0 0
  %626 = vmatpush2.bf16.msra.mxu0 0
  %627 = vmatprep.subr.bf16.mxu0 0
  %628 = vmatpush2.bf16.msra.mxu0 0
  %629 = vmatprep.mubr.bf16.mxu0 0
  %630 = vmatmul.mubr.bf16.gmra.mxu0 %v62
  %v631 = vpop.f32.mrf.mxu0
  %v632 = vadd.f32 %v150, %v631
  %v633 = vpop.f32.mrf.mxu0
  %v634 = vadd.f32 %v154, %v633
  %v635 = vpop.f32.mrf.mxu0
  %v636 = vpop.f32.mrf.mxu0
  %637 = vdwg.mxu0
  %638 = vmatprep.subr.bf16.mxu0 %v510
  %639 = vmatpush1.bf16.msra.mxu0 %v509
  %640 = vmatprep.subr.bf16.mxu0 %v500
  %641 = vmatpush1.bf16.msra.mxu0 %v499
  %642 = vmatprep.subr.bf16.mxu0 %v490
  %643 = vmatpush1.bf16.msra.mxu0 %v489
  %644 = vmatprep.subr.bf16.mxu0 %v480
  %645 = vmatpush1.bf16.msra.mxu0 %v479
  %646 = vmatprep.subr.bf16.mxu0 %v470
  %647 = vmatpush1.bf16.msra.mxu0 %v469
  %648 = vmatprep.subr.bf16.mxu0 %v460
  %649 = vmatpush1.bf16.msra.mxu0 %v459
  %650 = vmatprep.subr.bf16.mxu0 %v450
  %651 = vmatpush1.bf16.msra.mxu0 %v449
  %652 = vmatprep.subr.bf16.mxu0 %v440
  %653 = vmatpush1.bf16.msra.mxu0 %v439
  %654 = vmatprep.subr.bf16.mxu0 0
  %655 = vmatpush2.bf16.msra.mxu0 0
  %656 = vmatprep.subr.bf16.mxu0 0
  %657 = vmatpush2.bf16.msra.mxu0 0
  %658 = vmatprep.subr.bf16.mxu0 0
  %659 = vmatpush2.bf16.msra.mxu0 0
  %660 = vmatprep.subr.bf16.mxu0 0
  %661 = vmatpush2.bf16.msra.mxu0 0
  %662 = vmatprep.subr.bf16.mxu0 0
  %663 = vmatpush2.bf16.msra.mxu0 0
  %664 = vmatprep.subr.bf16.mxu0 0
  %665 = vmatpush2.bf16.msra.mxu0 0
  %666 = vmatprep.subr.bf16.mxu0 0
  %667 = vmatpush2.bf16.msra.mxu0 0
  %668 = vmatprep.subr.bf16.mxu0 0
  %669 = vmatpush2.bf16.msra.mxu0 0
  %670 = vmatprep.mubr.bf16.mxu0 0
  %671 = vmatmul.mubr.bf16.gmra.mxu0 %v62
  %v672 = vpop.f32.mrf.mxu0
  %v673 = vadd.f32 %v158, %v672
  %v674 = vpop.f32.mrf.mxu0
  %v675 = vadd.f32 %v162, %v674
  %v676 = vpop.f32.mrf.mxu0
  %v677 = vpop.f32.mrf.mxu0
  %678 = vdwg.mxu0
  %679 = vmatprep.subr.bf16.mxu0 %v512
  %680 = vmatpush1.bf16.msra.mxu0 %v511
  %681 = vmatprep.subr.bf16.mxu0 %v502
  %682 = vmatpush1.bf16.msra.mxu0 %v501
  %683 = vmatprep.subr.bf16.mxu0 %v492
  %684 = vmatpush1.bf16.msra.mxu0 %v491
  %685 = vmatprep.subr.bf16.mxu0 %v482
  %686 = vmatpush1.bf16.msra.mxu0 %v481
  %687 = vmatprep.subr.bf16.mxu0 %v472
  %688 = vmatpush1.bf16.msra.mxu0 %v471
  %689 = vmatprep.subr.bf16.mxu0 %v462
  %690 = vmatpush1.bf16.msra.mxu0 %v461
  %691 = vmatprep.subr.bf16.mxu0 %v452
  %692 = vmatpush1.bf16.msra.mxu0 %v451
  %693 = vmatprep.subr.bf16.mxu0 %v442
  %694 = vmatpush1.bf16.msra.mxu0 %v441
  %695 = vmatprep.subr.bf16.mxu0 0
  %696 = vmatpush2.bf16.msra.mxu0 0
  %697 = vmatprep.subr.bf16.mxu0 0
  %698 = vmatpush2.bf16.msra.mxu0 0
  %699 = vmatprep.subr.bf16.mxu0 0
  %700 = vmatpush2.bf16.msra.mxu0 0
  %701 = vmatprep.subr.bf16.mxu0 0
  %702 = vmatpush2.bf16.msra.mxu0 0
  %703 = vmatprep.subr.bf16.mxu0 0
  %704 = vmatpush2.bf16.msra.mxu0 0
  %705 = vmatprep.subr.bf16.mxu0 0
  %706 = vmatpush2.bf16.msra.mxu0 0
  %707 = vmatprep.subr.bf16.mxu0 0
  %708 = vmatpush2.bf16.msra.mxu0 0
  %709 = vmatprep.subr.bf16.mxu0 0
  %710 = vmatpush2.bf16.msra.mxu0 0
  %711 = vmatprep.mubr.bf16.mxu0 0
  %712 = vmatmul.mubr.bf16.gmra.mxu0 %v62
  %v713 = vpop.f32.mrf.mxu0
  %v714 = vadd.f32 %v166, %v713
  %v715 = vpop.f32.mrf.mxu0
  %v716 = vadd.f32 %v170, %v715
  %v717 = vpop.f32.mrf.mxu0
  %v718 = vpop.f32.mrf.mxu0
  %719 = vdwg.mxu0
  %720 = vmatprep.subr.bf16.mxu0 %v514
  %721 = vmatpush1.bf16.msra.mxu0 %v513
  %722 = vmatprep.subr.bf16.mxu0 %v504
  %723 = vmatpush1.bf16.msra.mxu0 %v503
  %724 = vmatprep.subr.bf16.mxu0 %v494
  %725 = vmatpush1.bf16.msra.mxu0 %v493
  %726 = vmatprep.subr.bf16.mxu0 %v484
  %727 = vmatpush1.bf16.msra.mxu0 %v483
  %728 = vmatprep.subr.bf16.mxu0 %v474
  %729 = vmatpush1.bf16.msra.mxu0 %v473
  %730 = vmatprep.subr.bf16.mxu0 %v464
  %731 = vmatpush1.bf16.msra.mxu0 %v463
  %732 = vmatprep.subr.bf16.mxu0 %v454
  %733 = vmatpush1.bf16.msra.mxu0 %v453
  %734 = vmatprep.subr.bf16.mxu0 %v444
  %735 = vmatpush1.bf16.msra.mxu0 %v443
  %736 = vmatprep.subr.bf16.mxu0 0
  %737 = vmatpush2.bf16.msra.mxu0 0
  %738 = vmatprep.subr.bf16.mxu0 0
  %739 = vmatpush2.bf16.msra.mxu0 0
  %740 = vmatprep.subr.bf16.mxu0 0
  %741 = vmatpush2.bf16.msra.mxu0 0
  %742 = vmatprep.subr.bf16.mxu0 0
  %743 = vmatpush2.bf16.msra.mxu0 0
  %744 = vmatprep.subr.bf16.mxu0 0
  %745 = vmatpush2.bf16.msra.mxu0 0
  %746 = vmatprep.subr.bf16.mxu0 0
  %747 = vmatpush2.bf16.msra.mxu0 0
  %748 = vmatprep.subr.bf16.mxu0 0
  %749 = vmatpush2.bf16.msra.mxu0 0
  %750 = vmatprep.subr.bf16.mxu0 0
  %751 = vmatpush2.bf16.msra.mxu0 0
  %752 = vmatprep.mubr.bf16.mxu0 0
  %753 = vmatmul.mubr.bf16.gmra.mxu0 %v62
  %v754 = vpop.f32.mrf.mxu0
  %v755 = vadd.f32 %v174, %v754
  %v756 = vpop.f32.mrf.mxu0
  %v757 = vadd.f32 %v178, %v756
  %v758 = vpop.f32.mrf.mxu0
  %v759 = vpop.f32.mrf.mxu0
  %760 = vdwg.mxu0
  %761 = vmatprep.subr.bf16.mxu0 %v516
  %762 = vmatpush1.bf16.msra.mxu0 %v515
  %763 = vmatprep.subr.bf16.mxu0 %v506
  %764 = vmatpush1.bf16.msra.mxu0 %v505
  %765 = vmatprep.subr.bf16.mxu0 %v496
  %766 = vmatpush1.bf16.msra.mxu0 %v495
  %767 = vmatprep.subr.bf16.mxu0 %v486
  %768 = vmatpush1.bf16.msra.mxu0 %v485
  %769 = vmatprep.subr.bf16.mxu0 %v476
  %770 = vmatpush1.bf16.msra.mxu0 %v475
  %771 = vmatprep.subr.bf16.mxu0 %v466
  %772 = vmatpush1.bf16.msra.mxu0 %v465
  %773 = vmatprep.subr.bf16.mxu0 %v456
  %774 = vmatpush1.bf16.msra.mxu0 %v455
  %775 = vmatprep.subr.bf16.mxu0 %v446
  %776 = vmatpush1.bf16.msra.mxu0 %v445
  %777 = vmatprep.subr.bf16.mxu0 0
  %778 = vmatpush2.bf16.msra.mxu0 0
  %779 = vmatprep.subr.bf16.mxu0 0
  %780 = vmatpush2.bf16.msra.mxu0 0
  %781 = vmatprep.subr.bf16.mxu0 0
  %782 = vmatpush2.bf16.msra.mxu0 0
  %783 = vmatprep.subr.bf16.mxu0 0
  %784 = vmatpush2.bf16.msra.mxu0 0
  %785 = vmatprep.subr.bf16.mxu0 0
  %786 = vmatpush2.bf16.msra.mxu0 0
  %787 = vmatprep.subr.bf16.mxu0 0
  %788 = vmatpush2.bf16.msra.mxu0 0
  %789 = vmatprep.subr.bf16.mxu0 0
  %790 = vmatpush2.bf16.msra.mxu0 0
  %791 = vmatprep.subr.bf16.mxu0 0
  %792 = vmatpush2.bf16.msra.mxu0 0
  %793 = vmatprep.mubr.bf16.mxu0 0
  %794 = vmatmul.mubr.bf16.gmra.mxu0 %v62
  %v795 = vpop.f32.mrf.mxu0
  %v796 = vadd.f32 %v182, %v795
  %v797 = vpop.f32.mrf.mxu0
  %v798 = vadd.f32 %v186, %v797
  %v799 = vpop.f32.mrf.mxu0
  %v800 = vpop.f32.mrf.mxu0
  %801 = vdwg.mxu0
  %v802 = vxor.u32 %v634, 2147483648
  %v803 = vmul.f32 %v802, 1.442695
  %v804 = vpow.pop %v803
  %v805 = vadd.f32 %v804, 1.0
  %v806 = vrcp.pop %v805
  %v807 = vmul.f32 1.0, %v806
  %v808 = vmul.f32 %v632, %v807
  %809 = vst [vmem:[#allocation2] sm:$0xff] %v808
  %v810 = vxor.u32 %v675, 2147483648
  %v811 = vmul.f32 %v810, 1.442695
  %v812 = vpow.pop %v811
  %v813 = vadd.f32 %v812, 1.0
  %v814 = vrcp.pop %v813
  %v815 = vmul.f32 1.0, %v814
  %v816 = vmul.f32 %v673, %v815
  %817 = vst [vmem:[#allocation2 + $0x8] sm:$0xff] %v816
  %v818 = vxor.u32 %v716, 2147483648
  %v819 = vmul.f32 %v818, 1.442695
  %v820 = vpow.pop %v819
  %v821 = vadd.f32 %v820, 1.0
  %v822 = vrcp.pop %v821
  %v823 = vmul.f32 1.0, %v822
  %v824 = vmul.f32 %v714, %v823
  %825 = vst [vmem:[#allocation2 + $0x10] sm:$0xff] %v824
  %v826 = vxor.u32 %v757, 2147483648
  %v827 = vmul.f32 %v826, 1.442695
  %v828 = vpow.pop %v827
  %v829 = vadd.f32 %v828, 1.0
  %v830 = vrcp.pop %v829
  %v831 = vmul.f32 1.0, %v830
  %v832 = vmul.f32 %v755, %v831
  %833 = vst [vmem:[#allocation2 + $0x18] sm:$0xff] %v832
  %v834 = vxor.u32 %v798, 2147483648
  %v835 = vmul.f32 %v834, 1.442695
  %v836 = vpow.pop %v835
  %v837 = vadd.f32 %v836, 1.0
  %v838 = vrcp.pop %v837
  %v839 = vmul.f32 1.0, %v838
  %v840 = vmul.f32 %v796, %v839
  %841 = vst [vmem:[#allocation2 + $0x20] sm:$0xff] %v840
  %v842 = vld [vmem:[#allocation2] sm:$0xff]
  %v843 = vld [vmem:[#allocation2 + $0x8] sm:$0xff]
  %v844 = vld [vmem:[#allocation2 + $0x10] sm:$0xff]
  %v845 = vld [vmem:[#allocation2 + $0x18] sm:$0xff]
  %v846 = vld [vmem:[#allocation2 + $0x20] sm:$0xff]
  %v847 = vld [vmem:[%s4] sm:$0x1]
  %v848 = vld [vmem:[%s4 + $0x1] sm:$0x1]
  %v849 = vadd.f32 %v842, %v843
  %v850 = vadd.f32 %v849, %v844
  %v851 = vadd.f32 %v850, %v845
  %v852 = vadd.f32 %v851, %v846
  %v853 = vrot.slane %v852, 4
  %v854 = vadd.f32 %v852, %v853
  %v855 = vrot.slane %v854, 2
  %v856 = vadd.f32 %v854, %v855
  %v857 = vrot.slane %v856, 1
  %v858 = vadd.f32 %v856, %v857
  %v859 = vrcp.pop 40.0
  %v860 = vmul.f32 %v858, %v859
  %v861 = vmul.f32 %v842, %v842
  %v862 = vmul.f32 %v843, %v843
  %v863 = vmul.f32 %v844, %v844
  %v864 = vmul.f32 %v845, %v845
  %v865 = vmul.f32 %v846, %v846
  %v866 = vadd.f32 %v861, %v862
  %v867 = vadd.f32 %v866, %v863
  %v868 = vadd.f32 %v867, %v864
  %v869 = vadd.f32 %v868, %v865
  %v870 = vrot.slane %v869, 4
  %v871 = vadd.f32 %v869, %v870
  %v872 = vrot.slane %v871, 2
  %v873 = vadd.f32 %v871, %v872
  %v874 = vrot.slane %v873, 1
  %v875 = vadd.f32 %v873, %v874
  %v876 = vmul.f32 %v875, %v859
  %v877 = vmul.f32 %v860, %v860
  %v878 = vsub.f32 %v876, %v877
  %v879 = vsub.f32 %v842, %v860
  %v880 = vsub.f32 %v843, %v860
  %v881 = vsub.f32 %v844, %v860
  %v882 = vsub.f32 %v845, %v860
  %v883 = vsub.f32 %v846, %v860
  %v884 = vadd.f32 %v878, 1e-05
  %v885 = vrsqrt.pop %v884
  %v886 = vmul.f32 %v879, %v885
  %v887 = vmul.f32 %v880, %v885
  %v888 = vmul.f32 %v881, %v885
  %v889 = vmul.f32 %v882, %v885
  %v890 = vmul.f32 %v883, %v885
  %v891 = vlaneseq
  %v892 = vshrl.u32 %v891, 7
  %v893 = vsub.s32 0, %v892
  %v894 = vrot.slane %v847, %v893
  %v895 = vmul.f32 %v886, %v894
  %v896 = vmul.f32 %v887, %v894
  %v897 = vmul.f32 %v888, %v894
  %v898 = vmul.f32 %v889, %v894
  %v899 = vmul.f32 %v890, %v894
  %v900 = vlaneseq
  %v901 = vshrl.u32 %v900, 7
  %v902 = vsub.s32 0, %v901
  %v903 = vrot.slane %v848, %v902
  %v904 = vadd.f32 %v895, %v903
  %v905 = vadd.f32 %v896, %v903
  %v906 = vadd.f32 %v897, %v903
  %v907 = vadd.f32 %v898, %v903
  %v908 = vadd.f32 %v899, %v903
  %v909 = vpack.c.bf16 %v905, %v904
  %v910 = vpack.c.bf16 %v907, %v906
  %v911 = vpack.c.bf16 %v908, %v908
  %v912 = vld [vmem:[%s5] sm:$0xff]
  %v913 = vld [vmem:[%s5 + $0x8] sm:$0xff]
  %v914 = vld [vmem:[%s5 + $0x10] sm:$0xff]
  %v915 = vld [vmem:[%s5 + $0x18] sm:$0xff]
  %v916 = vld [vmem:[%s5 + $0x20] sm:$0xff]
  %v917 = vld [vmem:[%s5 + $0x28] sm:$0xff]
  %v918 = vld [vmem:[%s5 + $0x30] sm:$0xff]
  %v919 = vld [vmem:[%s5 + $0x38] sm:$0xff]
  %v920 = vld [vmem:[%s5 + $0x40] sm:$0xff]
  %v921 = vld [vmem:[%s5 + $0x48] sm:$0xff]
  %v922 = vld [vmem:[%s5 + $0x50] sm:$0xff]
  %v923 = vld [vmem:[%s5 + $0x58] sm:$0xff]
  %v924 = vld [vmem:[%s5 + $0x60] sm:$0xff]
  %v925 = vld [vmem:[%s5 + $0x68] sm:$0xff]
  %v926 = vld [vmem:[%s5 + $0x70] sm:$0xff]
  %v927 = vld [vmem:[%s5 + $0x78] sm:$0xff]
  %v928 = vld [vmem:[%s5 + $0x80] sm:$0xff]
  %v929 = vld [vmem:[%s5 + $0x88] sm:$0xff]
  %v930 = vld [vmem:[%s5 + $0x90] sm:$0xff]
  %v931 = vld [vmem:[%s5 + $0x98] sm:$0xff]
  %v932 = vld [vmem:[%s5 + $0xa0] sm:$0xff]
  %v933 = vld [vmem:[%s5 + $0xa8] sm:$0xff]
  %v934 = vld [vmem:[%s5 + $0xb0] sm:$0xff]
  %v935 = vld [vmem:[%s5 + $0xb8] sm:$0xff]
  %v936 = vld [vmem:[%s5 + $0xc0] sm:$0xff]
  %v937 = vld [vmem:[%s5 + $0xc8] sm:$0xff]
  %v938 = vld [vmem:[%s5 + $0xd0] sm:$0xff]
  %v939 = vld [vmem:[%s5 + $0xd8] sm:$0xff]
  %v940 = vld [vmem:[%s5 + $0xe0] sm:$0xff]
  %v941 = vld [vmem:[%s5 + $0xe8] sm:$0xff]
  %v942 = vld [vmem:[%s5 + $0xf0] sm:$0xff]
  %v943 = vld [vmem:[%s5 + $0xf8] sm:$0xff]
  %v944 = vld [vmem:[%s5 + $0x100] sm:$0xff]
  %v945 = vld [vmem:[%s5 + $0x108] sm:$0xff]
  %v946 = vld [vmem:[%s5 + $0x110] sm:$0xff]
  %v947 = vld [vmem:[%s5 + $0x118] sm:$0xff]
  %v948 = vld [vmem:[%s5 + $0x120] sm:$0xff]
  %v949 = vld [vmem:[%s5 + $0x128] sm:$0xff]
  %v950 = vld [vmem:[%s5 + $0x130] sm:$0xff]
  %v951 = vld [vmem:[%s5 + $0x138] sm:$0xff]
  %v952 = vld [vmem:[%s5 + $0x140] sm:$0xff]
  %v953 = vld [vmem:[%s5 + $0x148] sm:$0xff]
  %v954 = vld [vmem:[%s5 + $0x150] sm:$0xff]
  %v955 = vld [vmem:[%s5 + $0x158] sm:$0xff]
  %v956 = vld [vmem:[%s5 + $0x160] sm:$0xff]
  %v957 = vld [vmem:[%s5 + $0x168] sm:$0xff]
  %v958 = vld [vmem:[%s5 + $0x170] sm:$0xff]
  %v959 = vld [vmem:[%s5 + $0x178] sm:$0xff]
  %v960 = vld [vmem:[%s6] sm:$0x3f]
  %v962 = vlaneseq
  %v963 = vshrl.u32 %v962, 7
  %v964 = vsub.s32 0, %v963
  %v965 = vrot.slane %v960, %v964
  %v966 = vlaneseq
  %v967 = vshrl.u32 %v966, 7
  %v968 = vsub.s32 1, %v967
  %v969 = vrot.slane %v960, %v968
  %v970 = vlaneseq
  %v971 = vshrl.u32 %v970, 7
  %v972 = vsub.s32 2, %v971
  %v973 = vrot.slane %v960, %v972
  %v974 = vlaneseq
  %v975 = vshrl.u32 %v974, 7
  %v976 = vsub.s32 3, %v975
  %v977 = vrot.slane %v960, %v976
  %v978 = vlaneseq
  %v979 = vshrl.u32 %v978, 7
  %v980 = vsub.s32 4, %v979
  %v981 = vrot.slane %v960, %v980
  %v982 = vlaneseq
  %v983 = vshrl.u32 %v982, 7
  %v984 = vsub.s32 5, %v983
  %v985 = vrot.slane %v960, %v984
  %v1040 = vunpack.c.l.b16 %v912
  %v1041 = vunpack.c.h.b16 %v912
  %v1042 = vunpack.c.l.b16 %v913
  %v1043 = vunpack.c.h.b16 %v913
  %v1044 = vunpack.c.l.b16 %v914
  %v1045 = vunpack.c.h.b16 %v914
  %v1046 = vunpack.c.l.b16 %v915
  %v1047 = vunpack.c.h.b16 %v915
  %v1048 = vunpack.c.l.b16 %v916
  %v1049 = vunpack.c.h.b16 %v916
  %v1050 = vunpack.c.l.b16 %v917
  %v1051 = vunpack.c.h.b16 %v917
  %v1052 = vunpack.c.l.b16 %v918
  %v1053 = vunpack.c.h.b16 %v918
  %v1054 = vunpack.c.l.b16 %v919
  %v1055 = vunpack.c.h.b16 %v919
  %v1056 = vunpack.c.l.b16 %v920
  %v1057 = vunpack.c.h.b16 %v920
  %v1058 = vunpack.c.l.b16 %v921
  %v1059 = vunpack.c.h.b16 %v921
  %v1060 = vunpack.c.l.b16 %v922
  %v1061 = vunpack.c.h.b16 %v922
  %v1062 = vunpack.c.l.b16 %v923
  %v1063 = vunpack.c.h.b16 %v923
  %v1064 = vunpack.c.l.b16 %v924
  %v1065 = vunpack.c.h.b16 %v924
  %v1066 = vunpack.c.l.b16 %v925
  %v1067 = vunpack.c.h.b16 %v925
  %v1068 = vunpack.c.l.b16 %v926
  %v1069 = vunpack.c.h.b16 %v926
  %v1070 = vunpack.c.l.b16 %v927
  %v1071 = vunpack.c.h.b16 %v927
  %v1072 = vunpack.c.l.b16 %v928
  %v1073 = vunpack.c.h.b16 %v928
  %v1074 = vunpack.c.l.b16 %v929
  %v1075 = vunpack.c.h.b16 %v929
  %v1076 = vunpack.c.l.b16 %v930
  %v1077 = vunpack.c.h.b16 %v930
  %v1078 = vunpack.c.l.b16 %v931
  %v1079 = vunpack.c.h.b16 %v931
  %v1080 = vunpack.c.l.b16 %v932
  %v1081 = vunpack.c.h.b16 %v932
  %v1082 = vunpack.c.l.b16 %v933
  %v1083 = vunpack.c.h.b16 %v933
  %v1084 = vunpack.c.l.b16 %v934
  %v1085 = vunpack.c.h.b16 %v934
  %v1086 = vunpack.c.l.b16 %v935
  %v1087 = vunpack.c.h.b16 %v935
  %v1088 = vunpack.c.l.b16 %v936
  %v1089 = vunpack.c.h.b16 %v936
  %v1090 = vunpack.c.l.b16 %v937
  %v1091 = vunpack.c.h.b16 %v937
  %v1092 = vunpack.c.l.b16 %v938
  %v1093 = vunpack.c.h.b16 %v938
  %v1094 = vunpack.c.l.b16 %v939
  %v1095 = vunpack.c.h.b16 %v939
  %v1096 = vunpack.c.l.b16 %v940
  %v1097 = vunpack.c.h.b16 %v940
  %v1098 = vunpack.c.l.b16 %v941
  %v1099 = vunpack.c.h.b16 %v941
  %v1100 = vunpack.c.l.b16 %v942
  %v1101 = vunpack.c.h.b16 %v942
  %v1102 = vunpack.c.l.b16 %v943
  %v1103 = vunpack.c.h.b16 %v943
  %v1104 = vunpack.c.l.b16 %v944
  %v1105 = vunpack.c.h.b16 %v944
  %v1106 = vunpack.c.l.b16 %v945
  %v1107 = vunpack.c.h.b16 %v945
  %v1108 = vunpack.c.l.b16 %v946
  %v1109 = vunpack.c.h.b16 %v946
  %v1110 = vunpack.c.l.b16 %v947
  %v1111 = vunpack.c.h.b16 %v947
  %v1112 = vunpack.c.l.b16 %v948
  %v1113 = vunpack.c.h.b16 %v948
  %v1114 = vunpack.c.l.b16 %v949
  %v1115 = vunpack.c.h.b16 %v949
  %v1116 = vunpack.c.l.b16 %v950
  %v1117 = vunpack.c.h.b16 %v950
  %v1118 = vunpack.c.l.b16 %v951
  %v1119 = vunpack.c.h.b16 %v951
  %v1120 = vunpack.c.l.b16 %v952
  %v1121 = vunpack.c.h.b16 %v952
  %v1122 = vunpack.c.l.b16 %v953
  %v1123 = vunpack.c.h.b16 %v953
  %v1124 = vunpack.c.l.b16 %v954
  %v1125 = vunpack.c.h.b16 %v954
  %v1126 = vunpack.c.l.b16 %v955
  %v1127 = vunpack.c.h.b16 %v955
  %v1128 = vunpack.c.l.b16 %v956
  %v1129 = vunpack.c.h.b16 %v956
  %v1130 = vunpack.c.l.b16 %v957
  %v1131 = vunpack.c.h.b16 %v957
  %v1132 = vunpack.c.l.b16 %v958
  %v1133 = vunpack.c.h.b16 %v958
  %v1134 = vunpack.c.l.b16 %v959
  %v1135 = vunpack.c.h.b16 %v959
  %v1136 = vpack.c.b16 %v1046, %v1040
  %v1137 = vpack.c.b16 %v1047, %v1041
  %v1138 = vpack.c.b16 %v1048, %v1042
  %v1139 = vpack.c.b16 %v1049, %v1043
  %v1140 = vpack.c.b16 %v1050, %v1044
  %v1141 = vpack.c.b16 %v1051, %v1045
  %v1142 = vpack.c.b16 %v1058, %v1052
  %v1143 = vpack.c.b16 %v1059, %v1053
  %v1144 = vpack.c.b16 %v1060, %v1054
  %v1145 = vpack.c.b16 %v1061, %v1055
  %v1146 = vpack.c.b16 %v1062, %v1056
  %v1147 = vpack.c.b16 %v1063, %v1057
  %v1148 = vpack.c.b16 %v1070, %v1064
  %v1149 = vpack.c.b16 %v1071, %v1065
  %v1150 = vpack.c.b16 %v1072, %v1066
  %v1151 = vpack.c.b16 %v1073, %v1067
  %v1152 = vpack.c.b16 %v1074, %v1068
  %v1153 = vpack.c.b16 %v1075, %v1069
  %v1154 = vpack.c.b16 %v1082, %v1076
  %v1155 = vpack.c.b16 %v1083, %v1077
  %v1156 = vpack.c.b16 %v1084, %v1078
  %v1157 = vpack.c.b16 %v1085, %v1079
  %v1158 = vpack.c.b16 %v1086, %v1080
  %v1159 = vpack.c.b16 %v1087, %v1081
  %v1160 = vpack.c.b16 %v1094, %v1088
  %v1161 = vpack.c.b16 %v1095, %v1089
  %v1162 = vpack.c.b16 %v1096, %v1090
  %v1163 = vpack.c.b16 %v1097, %v1091
  %v1164 = vpack.c.b16 %v1098, %v1092
  %v1165 = vpack.c.b16 %v1099, %v1093
  %v1166 = vpack.c.b16 %v1106, %v1100
  %v1167 = vpack.c.b16 %v1107, %v1101
  %v1168 = vpack.c.b16 %v1108, %v1102
  %v1169 = vpack.c.b16 %v1109, %v1103
  %v1170 = vpack.c.b16 %v1110, %v1104
  %v1171 = vpack.c.b16 %v1111, %v1105
  %v1172 = vpack.c.b16 %v1118, %v1112
  %v1173 = vpack.c.b16 %v1119, %v1113
  %v1174 = vpack.c.b16 %v1120, %v1114
  %v1175 = vpack.c.b16 %v1121, %v1115
  %v1176 = vpack.c.b16 %v1122, %v1116
  %v1177 = vpack.c.b16 %v1123, %v1117
  %v1178 = vpack.c.b16 %v1130, %v1124
  %v1179 = vpack.c.b16 %v1131, %v1125
  %v1180 = vpack.c.b16 %v1132, %v1126
  %v1181 = vpack.c.b16 %v1133, %v1127
  %v1182 = vpack.c.b16 %v1134, %v1128
  %v1183 = vpack.c.b16 %v1135, %v1129
  %1232 = vmatprep.subr.bf16.mxu0 %v1179
  %1233 = vmatpush1.bf16.msra.mxu0 %v1178
  %1234 = vmatprep.subr.bf16.mxu0 %v1173
  %1235 = vmatpush1.bf16.msra.mxu0 %v1172
  %1236 = vmatprep.subr.bf16.mxu0 %v1167
  %1237 = vmatpush1.bf16.msra.mxu0 %v1166
  %1238 = vmatprep.subr.bf16.mxu0 %v1161
  %1239 = vmatpush1.bf16.msra.mxu0 %v1160
  %1240 = vmatprep.subr.bf16.mxu0 %v1155
  %1241 = vmatpush1.bf16.msra.mxu0 %v1154
  %1242 = vmatprep.subr.bf16.mxu0 %v1149
  %1243 = vmatpush1.bf16.msra.mxu0 %v1148
  %1244 = vmatprep.subr.bf16.mxu0 %v1143
  %1245 = vmatpush1.bf16.msra.mxu0 %v1142
  %1246 = vmatprep.subr.bf16.mxu0 %v1137
  %1247 = vmatpush1.bf16.msra.mxu0 %v1136
  %1248 = vmatprep.subr.bf16.mxu0 0
  %1249 = vmatpush2.bf16.msra.mxu0 0
  %1250 = vmatprep.subr.bf16.mxu0 0
  %1251 = vmatpush2.bf16.msra.mxu0 0
  %1252 = vmatprep.subr.bf16.mxu0 0
  %1253 = vmatpush2.bf16.msra.mxu0 0
  %1254 = vmatprep.subr.bf16.mxu0 0
  %1255 = vmatpush2.bf16.msra.mxu0 0
  %1256 = vmatprep.subr.bf16.mxu0 0
  %1257 = vmatpush2.bf16.msra.mxu0 0
  %1258 = vmatprep.subr.bf16.mxu0 0
  %1259 = vmatpush2.bf16.msra.mxu0 0
  %1260 = vmatprep.subr.bf16.mxu0 0
  %1261 = vmatpush2.bf16.msra.mxu0 0
  %1262 = vmatprep.subr.bf16.mxu0 0
  %1263 = vmatpush2.bf16.msra.mxu0 0
  %1264 = vmatprep.mubr.bf16.mxu0 0
  %1265 = vmatmul.mubr.bf16.gmra.mxu0 %v909
  %v1266 = vpop.f32.mrf.mxu0
  %v1267 = vadd.f32 %v965, %v1266
  %v1268 = vpop.f32.mrf.mxu0
  %v1269 = vadd.f32 %v969, %v1268
  %v1270 = vpop.f32.mrf.mxu0
  %v1271 = vadd.f32 %v965, %v1270
  %v1272 = vpop.f32.mrf.mxu0
  %v1273 = vadd.f32 %v969, %v1272
  %1274 = vmatprep.mubr.bf16.mxu0 0
  %1275 = vmatmul.mubr.bf16.gmra.mxu0 %v910
  %v1276 = vpop.f32.mrf.mxu0
  %v1277 = vadd.f32 %v965, %v1276
  %v1278 = vpop.f32.mrf.mxu0
  %v1279 = vadd.f32 %v969, %v1278
  %v1280 = vpop.f32.mrf.mxu0
  %v1281 = vadd.f32 %v965, %v1280
  %v1282 = vpop.f32.mrf.mxu0
  %v1283 = vadd.f32 %v969, %v1282
  %1284 = vmatprep.mubr.bf16.mxu0 0
  %1285 = vmatmul.mubr.bf16.gmra.mxu0 %v911
  %v1286 = vpop.f32.mrf.mxu0
  %v1287 = vadd.f32 %v965, %v1286
  %v1288 = vpop.f32.mrf.mxu0
  %v1289 = vadd.f32 %v969, %v1288
  %v1290 = vpop.f32.mrf.mxu0
  %v1291 = vpop.f32.mrf.mxu0
  %1292 = vdwg.mxu0
  %1293 = vmatprep.subr.bf16.mxu0 %v1181
  %1294 = vmatpush1.bf16.msra.mxu0 %v1180
  %1295 = vmatprep.subr.bf16.mxu0 %v1175
  %1296 = vmatpush1.bf16.msra.mxu0 %v1174
  %1297 = vmatprep.subr.bf16.mxu0 %v1169
  %1298 = vmatpush1.bf16.msra.mxu0 %v1168
  %1299 = vmatprep.subr.bf16.mxu0 %v1163
  %1300 = vmatpush1.bf16.msra.mxu0 %v1162
  %1301 = vmatprep.subr.bf16.mxu0 %v1157
  %1302 = vmatpush1.bf16.msra.mxu0 %v1156
  %1303 = vmatprep.subr.bf16.mxu0 %v1151
  %1304 = vmatpush1.bf16.msra.mxu0 %v1150
  %1305 = vmatprep.subr.bf16.mxu0 %v1145
  %1306 = vmatpush1.bf16.msra.mxu0 %v1144
  %1307 = vmatprep.subr.bf16.mxu0 %v1139
  %1308 = vmatpush1.bf16.msra.mxu0 %v1138
  %1309 = vmatprep.subr.bf16.mxu0 0
  %1310 = vmatpush2.bf16.msra.mxu0 0
  %1311 = vmatprep.subr.bf16.mxu0 0
  %1312 = vmatpush2.bf16.msra.mxu0 0
  %1313 = vmatprep.subr.bf16.mxu0 0
  %1314 = vmatpush2.bf16.msra.mxu0 0
  %1315 = vmatprep.subr.bf16.mxu0 0
  %1316 = vmatpush2.bf16.msra.mxu0 0
  %1317 = vmatprep.subr.bf16.mxu0 0
  %1318 = vmatpush2.bf16.msra.mxu0 0
  %1319 = vmatprep.subr.bf16.mxu0 0
  %1320 = vmatpush2.bf16.msra.mxu0 0
  %1321 = vmatprep.subr.bf16.mxu0 0
  %1322 = vmatpush2.bf16.msra.mxu0 0
  %1323 = vmatprep.subr.bf16.mxu0 0
  %1324 = vmatpush2.bf16.msra.mxu0 0
  %1325 = vmatprep.mubr.bf16.mxu0 0
  %1326 = vmatmul.mubr.bf16.gmra.mxu0 %v909
  %v1327 = vpop.f32.mrf.mxu0
  %v1328 = vadd.f32 %v973, %v1327
  %v1329 = vpop.f32.mrf.mxu0
  %v1330 = vadd.f32 %v977, %v1329
  %v1331 = vpop.f32.mrf.mxu0
  %v1332 = vadd.f32 %v973, %v1331
  %v1333 = vpop.f32.mrf.mxu0
  %v1334 = vadd.f32 %v977, %v1333
  %1335 = vmatprep.mubr.bf16.mxu0 0
  %1336 = vmatmul.mubr.bf16.gmra.mxu0 %v910
  %v1337 = vpop.f32.mrf.mxu0
  %v1338 = vadd.f32 %v973, %v1337
  %v1339 = vpop.f32.mrf.mxu0
  %v1340 = vadd.f32 %v977, %v1339
  %v1341 = vpop.f32.mrf.mxu0
  %v1342 = vadd.f32 %v973, %v1341
  %v1343 = vpop.f32.mrf.mxu0
  %v1344 = vadd.f32 %v977, %v1343
  %1345 = vmatprep.mubr.bf16.mxu0 0
  %1346 = vmatmul.mubr.bf16.gmra.mxu0 %v911
  %v1347 = vpop.f32.mrf.mxu0
  %v1348 = vadd.f32 %v973, %v1347
  %v1349 = vpop.f32.mrf.mxu0
  %v1350 = vadd.f32 %v977, %v1349
  %v1351 = vpop.f32.mrf.mxu0
  %v1352 = vpop.f32.mrf.mxu0
  %1353 = vdwg.mxu0
  %1354 = vmatprep.subr.bf16.mxu0 %v1183
  %1355 = vmatpush1.bf16.msra.mxu0 %v1182
  %1356 = vmatprep.subr.bf16.mxu0 %v1177
  %1357 = vmatpush1.bf16.msra.mxu0 %v1176
  %1358 = vmatprep.subr.bf16.mxu0 %v1171
  %1359 = vmatpush1.bf16.msra.mxu0 %v1170
  %1360 = vmatprep.subr.bf16.mxu0 %v1165
  %1361 = vmatpush1.bf16.msra.mxu0 %v1164
  %1362 = vmatprep.subr.bf16.mxu0 %v1159
  %1363 = vmatpush1.bf16.msra.mxu0 %v1158
  %1364 = vmatprep.subr.bf16.mxu0 %v1153
  %1365 = vmatpush1.bf16.msra.mxu0 %v1152
  %1366 = vmatprep.subr.bf16.mxu0 %v1147
  %1367 = vmatpush1.bf16.msra.mxu0 %v1146
  %1368 = vmatprep.subr.bf16.mxu0 %v1141
  %1369 = vmatpush1.bf16.msra.mxu0 %v1140
  %1370 = vmatprep.subr.bf16.mxu0 0
  %1371 = vmatpush2.bf16.msra.mxu0 0
  %1372 = vmatprep.subr.bf16.mxu0 0
  %1373 = vmatpush2.bf16.msra.mxu0 0
  %1374 = vmatprep.subr.bf16.mxu0 0
  %1375 = vmatpush2.bf16.msra.mxu0 0
  %1376 = vmatprep.subr.bf16.mxu0 0
  %1377 = vmatpush2.bf16.msra.mxu0 0
  %1378 = vmatprep.subr.bf16.mxu0 0
  %1379 = vmatpush2.bf16.msra.mxu0 0
  %1380 = vmatprep.subr.bf16.mxu0 0
  %1381 = vmatpush2.bf16.msra.mxu0 0
  %1382 = vmatprep.subr.bf16.mxu0 0
  %1383 = vmatpush2.bf16.msra.mxu0 0
  %1384 = vmatprep.subr.bf16.mxu0 0
  %1385 = vmatpush2.bf16.msra.mxu0 0
  %1386 = vmatprep.mubr.bf16.mxu0 0
  %1387 = vmatmul.mubr.bf16.gmra.mxu0 %v909
  %v1388 = vpop.f32.mrf.mxu0
  %v1389 = vadd.f32 %v981, %v1388
  %v1390 = vpop.f32.mrf.mxu0
  %v1391 = vadd.f32 %v985, %v1390
  %v1392 = vpop.f32.mrf.mxu0
  %v1393 = vadd.f32 %v981, %v1392
  %v1394 = vpop.f32.mrf.mxu0
  %v1395 = vadd.f32 %v985, %v1394
  %1396 = vmatprep.mubr.bf16.mxu0 0
  %1397 = vmatmul.mubr.bf16.gmra.mxu0 %v910
  %v1398 = vpop.f32.mrf.mxu0
  %v1399 = vadd.f32 %v981, %v1398
  %v1400 = vpop.f32.mrf.mxu0
  %v1401 = vadd.f32 %v985, %v1400
  %v1402 = vpop.f32.mrf.mxu0
  %v1403 = vadd.f32 %v981, %v1402
  %v1404 = vpop.f32.mrf.mxu0
  %v1405 = vadd.f32 %v985, %v1404
  %1406 = vmatprep.mubr.bf16.mxu0 0
  %1407 = vmatmul.mubr.bf16.gmra.mxu0 %v911
  %v1408 = vpop.f32.mrf.mxu0
  %v1409 = vadd.f32 %v981, %v1408
  %v1410 = vpop.f32.mrf.mxu0
  %v1411 = vadd.f32 %v985, %v1410
  %v1412 = vpop.f32.mrf.mxu0
  %v1413 = vpop.f32.mrf.mxu0
  %1414 = vdwg.mxu0
  %v1415 = vxor.u32 %v1269, 2147483648
  %v1416 = vxor.u32 %v1273, 2147483648
  %v1417 = vxor.u32 %v1279, 2147483648
  %v1418 = vxor.u32 %v1283, 2147483648
  %v1419 = vxor.u32 %v1289, 2147483648
  %v1420 = vmul.f32 %v1415, 1.442695
  %v1421 = vpow.pop %v1420
  %v1422 = vmul.f32 %v1416, 1.442695
  %v1423 = vpow.pop %v1422
  %v1424 = vmul.f32 %v1417, 1.442695
  %v1425 = vpow.pop %v1424
  %v1426 = vmul.f32 %v1418, 1.442695
  %v1427 = vpow.pop %v1426
  %v1428 = vmul.f32 %v1419, 1.442695
  %v1429 = vpow.pop %v1428
  %v1430 = vadd.f32 %v1421, 1.0
  %v1431 = vadd.f32 %v1423, 1.0
  %v1432 = vadd.f32 %v1425, 1.0
  %v1433 = vadd.f32 %v1427, 1.0
  %v1434 = vadd.f32 %v1429, 1.0
  %v1435 = vrcp.pop %v1430
  %v1436 = vmul.f32 1.0, %v1435
  %v1437 = vrcp.pop %v1431
  %v1438 = vmul.f32 1.0, %v1437
  %v1439 = vrcp.pop %v1432
  %v1440 = vmul.f32 1.0, %v1439
  %v1441 = vrcp.pop %v1433
  %v1442 = vmul.f32 1.0, %v1441
  %v1443 = vrcp.pop %v1434
  %v1444 = vmul.f32 1.0, %v1443
  %v1445 = vmul.f32 %v1267, %v1436
  %v1446 = vmul.f32 %v1271, %v1438
  %v1447 = vmul.f32 %v1277, %v1440
  %v1448 = vmul.f32 %v1281, %v1442
  %v1449 = vmul.f32 %v1287, %v1444
  %v1450 = vpack.c.bf16 %v1445, %v1445
  %1451 = vst [vmem:[%s7] sm:$0xf] %v1450
  %v1452 = vpack.c.bf16 %v1446, %v1446
  %1453 = vst [vmem:[%s7 + $0xc] sm:$0xf] %v1452
  %v1454 = vpack.c.bf16 %v1447, %v1447
  %1455 = vst [vmem:[%s7 + $0x18] sm:$0xf] %v1454
  %v1456 = vpack.c.bf16 %v1448, %v1448
  %1457 = vst [vmem:[%s7 + $0x24] sm:$0xf] %v1456
  %v1458 = vpack.c.bf16 %v1449, %v1449
  %1459 = vst [vmem:[%s7 + $0x30] sm:$0xf] %v1458
  %v1460 = vxor.u32 %v1330, 2147483648
  %v1461 = vxor.u32 %v1334, 2147483648
  %v1462 = vxor.u32 %v1340, 2147483648
  %v1463 = vxor.u32 %v1344, 2147483648
  %v1464 = vxor.u32 %v1350, 2147483648
  %v1465 = vmul.f32 %v1460, 1.442695
  %v1466 = vpow.pop %v1465
  %v1467 = vmul.f32 %v1461, 1.442695
  %v1468 = vpow.pop %v1467
  %v1469 = vmul.f32 %v1462, 1.442695
  %v1470 = vpow.pop %v1469
  %v1471 = vmul.f32 %v1463, 1.442695
  %v1472 = vpow.pop %v1471
  %v1473 = vmul.f32 %v1464, 1.442695
  %v1474 = vpow.pop %v1473
  %v1475 = vadd.f32 %v1466, 1.0
  %v1476 = vadd.f32 %v1468, 1.0
  %v1477 = vadd.f32 %v1470, 1.0
  %v1478 = vadd.f32 %v1472, 1.0
  %v1479 = vadd.f32 %v1474, 1.0
  %v1480 = vrcp.pop %v1475
  %v1481 = vmul.f32 1.0, %v1480
  %v1482 = vrcp.pop %v1476
  %v1483 = vmul.f32 1.0, %v1482
  %v1484 = vrcp.pop %v1477
  %v1485 = vmul.f32 1.0, %v1484
  %v1486 = vrcp.pop %v1478
  %v1487 = vmul.f32 1.0, %v1486
  %v1488 = vrcp.pop %v1479
  %v1489 = vmul.f32 1.0, %v1488
  %v1490 = vmul.f32 %v1328, %v1481
  %v1491 = vmul.f32 %v1332, %v1483
  %v1492 = vmul.f32 %v1338, %v1485
  %v1493 = vmul.f32 %v1342, %v1487
  %v1494 = vmul.f32 %v1348, %v1489
  %v1495 = vpack.c.bf16 %v1490, %v1490
  %1496 = vst [vmem:[%s7 + $0x4] sm:$0xf] %v1495
  %v1497 = vpack.c.bf16 %v1491, %v1491
  %1498 = vst [vmem:[%s7 + $0x10] sm:$0xf] %v1497
  %v1499 = vpack.c.bf16 %v1492, %v1492
  %1500 = vst [vmem:[%s7 + $0x1c] sm:$0xf] %v1499
  %v1501 = vpack.c.bf16 %v1493, %v1493
  %1502 = vst [vmem:[%s7 + $0x28] sm:$0xf] %v1501
  %v1503 = vpack.c.bf16 %v1494, %v1494
  %1504 = vst [vmem:[%s7 + $0x34] sm:$0xf] %v1503
  %v1505 = vxor.u32 %v1391, 2147483648
  %v1506 = vxor.u32 %v1395, 2147483648
  %v1507 = vxor.u32 %v1401, 2147483648
  %v1508 = vxor.u32 %v1405, 2147483648
  %v1509 = vxor.u32 %v1411, 2147483648
  %v1510 = vmul.f32 %v1505, 1.442695
  %v1511 = vpow.pop %v1510
  %v1512 = vmul.f32 %v1506, 1.442695
  %v1513 = vpow.pop %v1512
  %v1514 = vmul.f32 %v1507, 1.442695
  %v1515 = vpow.pop %v1514
  %v1516 = vmul.f32 %v1508, 1.442695
  %v1517 = vpow.pop %v1516
  %v1518 = vmul.f32 %v1509, 1.442695
  %v1519 = vpow.pop %v1518
  %v1520 = vadd.f32 %v1511, 1.0
  %v1521 = vadd.f32 %v1513, 1.0
  %v1522 = vadd.f32 %v1515, 1.0
  %v1523 = vadd.f32 %v1517, 1.0
  %v1524 = vadd.f32 %v1519, 1.0
  %v1525 = vrcp.pop %v1520
  %v1526 = vmul.f32 1.0, %v1525
  %v1527 = vrcp.pop %v1521
  %v1528 = vmul.f32 1.0, %v1527
  %v1529 = vrcp.pop %v1522
  %v1530 = vmul.f32 1.0, %v1529
  %v1531 = vrcp.pop %v1523
  %v1532 = vmul.f32 1.0, %v1531
  %v1533 = vrcp.pop %v1524
  %v1534 = vmul.f32 1.0, %v1533
  %v1535 = vmul.f32 %v1389, %v1526
  %v1536 = vmul.f32 %v1393, %v1528
  %v1537 = vmul.f32 %v1399, %v1530
  %v1538 = vmul.f32 %v1403, %v1532
  %v1539 = vmul.f32 %v1409, %v1534
  %v1540 = vpack.c.bf16 %v1535, %v1535
  %1541 = vst [vmem:[%s7 + $0x8] sm:$0xf] %v1540
  %v1542 = vpack.c.bf16 %v1536, %v1536
  %1543 = vst [vmem:[%s7 + $0x14] sm:$0xf] %v1542
  %v1544 = vpack.c.bf16 %v1537, %v1537
  %1545 = vst [vmem:[%s7 + $0x20] sm:$0xf] %v1544
  %v1546 = vpack.c.bf16 %v1538, %v1538
  %1547 = vst [vmem:[%s7 + $0x2c] sm:$0xf] %v1546
  %v1548 = vpack.c.bf16 %v1539, %v1539
  %1549 = vst [vmem:[%s7 + $0x38] sm:$0xf] %v1548
  // Predicated region
  $region30: #{decoder_forward.2} parent=0 // pred_check
    _
  $region31: #{decoder_forward.2} parent=0 // pred_check_branch
    %1551 = sbr.rel (0) target = $region33
  $region32: #{decoder_forward.2} parent=0 // pred_region
    _
  $region33: #{decoder_forward.2} parent=0 // pred_fallthru
    _
  // Predicated region
  $region34: #{decoder_forward.2} parent=0 // pred_check
    _
  $region35: #{decoder_forward.2} parent=0 // pred_check_branch
    %1553 = sbr.rel (0) target = $region37
  $region36: #{decoder_forward.2} parent=0 // pred_region
    _
  $region37: #{decoder_forward.2} parent=0 // pred_fallthru
    _

// kernel: decoder_forward.3
$region0: #{decoder_forward.3}
  #allocation0 [shape = 'u32[]', space=smem, size = 0x4, offset = 0x4, fixed_abs, tag = 'smem constant byte address 0x4 - core index']
  #allocation1 [shape = 'u32[144,128]{1,0:T(1,128)}', space=vmem, size = 0x12000, scoped, tag = 'internal scratch']
  %s0 = inlined_call_operand.vmem [shape: bf16[120,128], index: 0, kind: input, shape index: {}]
  %s1 = inlined_call_operand.vmem [shape: f32[2,128], index: 1, kind: input, shape index: {}]
  %s2 = inlined_call_operand.vmem [shape: bf16[128,768], index: 2, kind: input, shape index: {}]
  %s3 = inlined_call_operand.vmem [shape: f32[1,256], index: 3, kind: input, shape index: {}]
  %s4 = inlined_call_operand.vmem [shape: f32[2,128], index: 4, kind: input, shape index: {}]
  %s5 = inlined_call_operand.vmem [shape: bf16[128,768], index: 5, kind: input, shape index: {}]
  %s6 = inlined_call_operand.vmem [shape: f32[1,256], index: 6, kind: input, shape index: {}]
  %s7 = inlined_call_operand.vmem [shape: f32[2,128], index: 7, kind: input, shape index: {}]
  %s8 = inlined_call_operand.vmem [shape: bf16[128,768], index: 8, kind: input, shape index: {}]
  %s9 = inlined_call_operand.vmem [shape: f32[1,256], index: 9, kind: input, shape index: {}]
  %s10 = inlined_call_operand.vmem [shape: f32[2,128], index: 10, kind: input, shape index: {}]
  %s11 = inlined_call_operand.vmem [shape: bf16[128,256], index: 11, kind: input, shape index: {}]
  %s12 = inlined_call_operand.vmem [shape: f32[1,256], index: 12, kind: input, shape index: {}]
  %s13 = inlined_call_operand.vmem [shape: f32[120,128], index: 13, kind: output, shape index: {}]
  %s14 = sld [smem:[#allocation0]]
  $region62: #{decoder_forward.3} parent=0
    _
  %s16 = ssub.s32 1, %s14
  %s17 = scalar_select 0, %s16, %s14
  // Predicated region
  $region2: #{decoder_forward.3} parent=0 // pred_check
    _
  $region3: #{decoder_forward.3} parent=0 // pred_check_branch
    %19 = sbr.rel (0) target = $region5
  $region4: #{decoder_forward.3} parent=0 // pred_region
    _
  $region5: #{decoder_forward.3} parent=0 // pred_fallthru
    _
  // Predicated region
  $region6: #{decoder_forward.3} parent=0 // pred_check
    _
  $region7: #{decoder_forward.3} parent=0 // pred_check_branch
    %21 = sbr.rel (0) target = $region9
  $region8: #{decoder_forward.3} parent=0 // pred_region
    _
  $region9: #{decoder_forward.3} parent=0 // pred_fallthru
    _
  // Predicated region
  $region10: #{decoder_forward.3} parent=0 // pred_check
    _
  $region11: #{decoder_forward.3} parent=0 // pred_check_branch
    %23 = sbr.rel (0) target = $region13
  $region12: #{decoder_forward.3} parent=0 // pred_region
    _
  $region13: #{decoder_forward.3} parent=0 // pred_fallthru
    _
  // Predicated region
  $region14: #{decoder_forward.3} parent=0 // pred_check
    _
  $region15: #{decoder_forward.3} parent=0 // pred_check_branch
    %25 = sbr.rel (0) target = $region17
  $region16: #{decoder_forward.3} parent=0 // pred_region
    _
  $region17: #{decoder_forward.3} parent=0 // pred_fallthru
    _
  // Predicated region
  $region18: #{decoder_forward.3} parent=0 // pred_check
    _
  $region19: #{decoder_forward.3} parent=0 // pred_check_branch
    %27 = sbr.rel (0) target = $region21
  $region20: #{decoder_forward.3} parent=0 // pred_region
    _
  $region21: #{decoder_forward.3} parent=0 // pred_fallthru
    _
  // Predicated region
  $region22: #{decoder_forward.3} parent=0 // pred_check
    _
  $region23: #{decoder_forward.3} parent=0 // pred_check_branch
    %29 = sbr.rel (0) target = $region25
  $region24: #{decoder_forward.3} parent=0 // pred_region
    _
  $region25: #{decoder_forward.3} parent=0 // pred_fallthru
    _
  // Predicated region
  $region26: #{decoder_forward.3} parent=0 // pred_check
    _
  $region27: #{decoder_forward.3} parent=0 // pred_check_branch
    %31 = sbr.rel (0) target = $region29
  $region28: #{decoder_forward.3} parent=0 // pred_region
    _
  $region29: #{decoder_forward.3} parent=0 // pred_fallthru
    _
  // Predicated region
  $region30: #{decoder_forward.3} parent=0 // pred_check
    _
  $region31: #{decoder_forward.3} parent=0 // pred_check_branch
    %33 = sbr.rel (0) target = $region33
  $region32: #{decoder_forward.3} parent=0 // pred_region
    _
  $region33: #{decoder_forward.3} parent=0 // pred_fallthru
    _
  // Predicated region
  $region34: #{decoder_forward.3} parent=0 // pred_check
    _
  $region35: #{decoder_forward.3} parent=0 // pred_check_branch
    %35 = sbr.rel (0) target = $region37
  $region36: #{decoder_forward.3} parent=0 // pred_region
    _
  $region37: #{decoder_forward.3} parent=0 // pred_fallthru
    _
  // Predicated region
  $region38: #{decoder_forward.3} parent=0 // pred_check
    _
  $region39: #{decoder_forward.3} parent=0 // pred_check_branch
    %37 = sbr.rel (0) target = $region41
  $region40: #{decoder_forward.3} parent=0 // pred_region
    _
  $region41: #{decoder_forward.3} parent=0 // pred_fallthru
    _
  // Predicated region
  $region42: #{decoder_forward.3} parent=0 // pred_check
    _
  $region43: #{decoder_forward.3} parent=0 // pred_check_branch
    %39 = sbr.rel (0) target = $region45
  $region44: #{decoder_forward.3} parent=0 // pred_region
    _
  $region45: #{decoder_forward.3} parent=0 // pred_fallthru
    _
  // Predicated region
  $region46: #{decoder_forward.3} parent=0 // pred_check
    _
  $region47: #{decoder_forward.3} parent=0 // pred_check_branch
    %41 = sbr.rel (0) target = $region49
  $region48: #{decoder_forward.3} parent=0 // pred_region
    _
  $region49: #{decoder_forward.3} parent=0 // pred_fallthru
    _
  // Predicated region
  $region50: #{decoder_forward.3} parent=0 // pred_check
    _
  $region51: #{decoder_forward.3} parent=0 // pred_check_branch
    %43 = sbr.rel (0) target = $region53
  $region52: #{decoder_forward.3} parent=0 // pred_region
    _
  $region53: #{decoder_forward.3} parent=0 // pred_fallthru
    _
  %v45 = vlaneseq
  %v46 = vshrl.u32 %v45, 7
  %v47 = vadd.s32 %v46, 8
  %v48 = vadd.s32 %v46, 16
  %v49 = vadd.s32 %v46, 24
  %v50 = vadd.s32 %v46, 32
  %v51 = vadd.s32 %v46, 40
  %v52 = vadd.s32 %v46, 48
  %v53 = vadd.s32 %v46, 56
  %v54 = vadd.s32 %v46, 64
  %v55 = vadd.s32 %v46, 72
  %v56 = vadd.s32 %v46, 80
  %v57 = vadd.s32 %v46, 88
  %v58 = vadd.s32 %v46, 96
  %v59 = vadd.s32 %v46, 104
  %v60 = vadd.s32 %v46, 112
  %vm61 = vcmp.lt.s32.totalorder %v46, 0
  %v62 = vsub.s32 0, %v46
  %v63 = vsel %vm61, %v62, %v46
  %v64 = vmul.u32.u64.compose %v63, 2290649225
  %v65 = vextract.low.u32 %v64
  %v66 = vextract.high.u32 %v64
  %v67 = vshrl.u32 %v66, 5
  %v68 = vmul.u32 %v67, 60
  %v69 = vsub.s32 %v63, %v68
  %v70 = vsub.s32 0, %v69
  %v71 = vsel %vm61, %v70, %v69
  %vm72 = vcmp.lt.s32.totalorder %v47, 0
  %v73 = vsub.s32 0, %v47
  %v74 = vsel %vm72, %v73, %v47
  %v75 = vmul.u32.u64.compose %v74, 2290649225
  %v76 = vextract.low.u32 %v75
  %v77 = vextract.high.u32 %v75
  %v78 = vshrl.u32 %v77, 5
  %v79 = vmul.u32 %v78, 60
  %v80 = vsub.s32 %v74, %v79
  %v81 = vsub.s32 0, %v80
  %v82 = vsel %vm72, %v81, %v80
  %vm83 = vcmp.lt.s32.totalorder %v48, 0
  %v84 = vsub.s32 0, %v48
  %v85 = vsel %vm83, %v84, %v48
  %v86 = vmul.u32.u64.compose %v85, 2290649225
  %v87 = vextract.low.u32 %v86
  %v88 = vextract.high.u32 %v86
  %v89 = vshrl.u32 %v88, 5
  %v90 = vmul.u32 %v89, 60
  %v91 = vsub.s32 %v85, %v90
  %v92 = vsub.s32 0, %v91
  %v93 = vsel %vm83, %v92, %v91
  %vm94 = vcmp.lt.s32.totalorder %v49, 0
  %v95 = vsub.s32 0, %v49
  %v96 = vsel %vm94, %v95, %v49
  %v97 = vmul.u32.u64.compose %v96, 2290649225
  %v98 = vextract.low.u32 %v97
  %v99 = vextract.high.u32 %v97
  %v100 = vshrl.u32 %v99, 5
  %v101 = vmul.u32 %v100, 60
  %v102 = vsub.s32 %v96, %v101
  %v103 = vsub.s32 0, %v102
  %v104 = vsel %vm94, %v103, %v102
  %vm105 = vcmp.lt.s32.totalorder %v50, 0
  %v106 = vsub.s32 0, %v50
  %v107 = vsel %vm105, %v106, %v50
  %v108 = vmul.u32.u64.compose %v107, 2290649225
  %v109 = vextract.low.u32 %v108
  %v110 = vextract.high.u32 %v108
  %v111 = vshrl.u32 %v110, 5
  %v112 = vmul.u32 %v111, 60
  %v113 = vsub.s32 %v107, %v112
  %v114 = vsub.s32 0, %v113
  %v115 = vsel %vm105, %v114, %v113
  %vm116 = vcmp.lt.s32.totalorder %v51, 0
  %v117 = vsub.s32 0, %v51
  %v118 = vsel %vm116, %v117, %v51
  %v119 = vmul.u32.u64.compose %v118, 2290649225
  %v120 = vextract.low.u32 %v119
  %v121 = vextract.high.u32 %v119
  %v122 = vshrl.u32 %v121, 5
  %v123 = vmul.u32 %v122, 60
  %v124 = vsub.s32 %v118, %v123
  %v125 = vsub.s32 0, %v124
  %v126 = vsel %vm116, %v125, %v124
  %vm127 = vcmp.lt.s32.totalorder %v52, 0
  %v128 = vsub.s32 0, %v52
  %v129 = vsel %vm127, %v128, %v52
  %v130 = vmul.u32.u64.compose %v129, 2290649225
  %v131 = vextract.low.u32 %v130
  %v132 = vextract.high.u32 %v130
  %v133 = vshrl.u32 %v132, 5
  %v134 = vmul.u32 %v133, 60
  %v135 = vsub.s32 %v129, %v134
  %v136 = vsub.s32 0, %v135
  %v137 = vsel %vm127, %v136, %v135
  %vm138 = vcmp.lt.s32.totalorder %v53, 0
  %v139 = vsub.s32 0, %v53
  %v140 = vsel %vm138, %v139, %v53
  %v141 = vmul.u32.u64.compose %v140, 2290649225
  %v142 = vextract.low.u32 %v141
  %v143 = vextract.high.u32 %v141
  %v144 = vshrl.u32 %v143, 5
  %v145 = vmul.u32 %v144, 60
  %v146 = vsub.s32 %v140, %v145
  %v147 = vsub.s32 0, %v146
  %v148 = vsel %vm138, %v147, %v146
  %vm149 = vcmp.lt.s32.totalorder %v54, 0
  %v150 = vsub.s32 0, %v54
  %v151 = vsel %vm149, %v150, %v54
  %v152 = vmul.u32.u64.compose %v151, 2290649225
  %v153 = vextract.low.u32 %v152
  %v154 = vextract.high.u32 %v152
  %v155 = vshrl.u32 %v154, 5
  %v156 = vmul.u32 %v155, 60
  %v157 = vsub.s32 %v151, %v156
  %v158 = vsub.s32 0, %v157
  %v159 = vsel %vm149, %v158, %v157
  %vm160 = vcmp.lt.s32.totalorder %v55, 0
  %v161 = vsub.s32 0, %v55
  %v162 = vsel %vm160, %v161, %v55
  %v163 = vmul.u32.u64.compose %v162, 2290649225
  %v164 = vextract.low.u32 %v163
  %v165 = vextract.high.u32 %v163
  %v166 = vshrl.u32 %v165, 5
  %v167 = vmul.u32 %v166, 60
  %v168 = vsub.s32 %v162, %v167
  %v169 = vsub.s32 0, %v168
  %v170 = vsel %vm160, %v169, %v168
  %vm171 = vcmp.lt.s32.totalorder %v56, 0
  %v172 = vsub.s32 0, %v56
  %v173 = vsel %vm171, %v172, %v56
  %v174 = vmul.u32.u64.compose %v173, 2290649225
  %v175 = vextract.low.u32 %v174
  %v176 = vextract.high.u32 %v174
  %v177 = vshrl.u32 %v176, 5
  %v178 = vmul.u32 %v177, 60
  %v179 = vsub.s32 %v173, %v178
  %v180 = vsub.s32 0, %v179
  %v181 = vsel %vm171, %v180, %v179
  %vm182 = vcmp.lt.s32.totalorder %v57, 0
  %v183 = vsub.s32 0, %v57
  %v184 = vsel %vm182, %v183, %v57
  %v185 = vmul.u32.u64.compose %v184, 2290649225
  %v186 = vextract.low.u32 %v185
  %v187 = vextract.high.u32 %v185
  %v188 = vshrl.u32 %v187, 5
  %v189 = vmul.u32 %v188, 60
  %v190 = vsub.s32 %v184, %v189
  %v191 = vsub.s32 0, %v190
  %v192 = vsel %vm182, %v191, %v190
  %vm193 = vcmp.lt.s32.totalorder %v58, 0
  %v194 = vsub.s32 0, %v58
  %v195 = vsel %vm193, %v194, %v58
  %v196 = vmul.u32.u64.compose %v195, 2290649225
  %v197 = vextract.low.u32 %v196
  %v198 = vextract.high.u32 %v196
  %v199 = vshrl.u32 %v198, 5
  %v200 = vmul.u32 %v199, 60
  %v201 = vsub.s32 %v195, %v200
  %v202 = vsub.s32 0, %v201
  %v203 = vsel %vm193, %v202, %v201
  %vm204 = vcmp.lt.s32.totalorder %v59, 0
  %v205 = vsub.s32 0, %v59
  %v206 = vsel %vm204, %v205, %v59
  %v207 = vmul.u32.u64.compose %v206, 2290649225
  %v208 = vextract.low.u32 %v207
  %v209 = vextract.high.u32 %v207
  %v210 = vshrl.u32 %v209, 5
  %v211 = vmul.u32 %v210, 60
  %v212 = vsub.s32 %v206, %v211
  %v213 = vsub.s32 0, %v212
  %v214 = vsel %vm204, %v213, %v212
  %vm215 = vcmp.lt.s32.totalorder %v60, 0
  %v216 = vsub.s32 0, %v60
  %v217 = vsel %vm215, %v216, %v60
  %v218 = vmul.u32.u64.compose %v217, 2290649225
  %v219 = vextract.low.u32 %v218
  %v220 = vextract.high.u32 %v218
  %v221 = vshrl.u32 %v220, 5
  %v222 = vmul.u32 %v221, 60
  %v223 = vsub.s32 %v217, %v222
  %v224 = vsub.s32 0, %v223
  %v225 = vsel %vm215, %v224, %v223
  %vm226 = vcmp.ne.s32.totalorder %v71, 0
  %vm227 = vcmp.ne.s32.totalorder %v82, 0
  %vm228 = vcmp.ne.s32.totalorder %v93, 0
  %vm229 = vcmp.ne.s32.totalorder %v104, 0
  %vm230 = vcmp.ne.s32.totalorder %v115, 0
  %vm231 = vcmp.ne.s32.totalorder %v126, 0
  %vm232 = vcmp.ne.s32.totalorder %v137, 0
  %vm233 = vcmp.ne.s32.totalorder %v148, 0
  %vm234 = vcmp.ne.s32.totalorder %v159, 0
  %vm235 = vcmp.ne.s32.totalorder %v170, 0
  %vm236 = vcmp.ne.s32.totalorder %v181, 0
  %vm237 = vcmp.ne.s32.totalorder %v192, 0
  %vm238 = vcmp.ne.s32.totalorder %v203, 0
  %vm239 = vcmp.ne.s32.totalorder %v214, 0
  %vm240 = vcmp.ne.s32.totalorder %v225, 0
  %vm241 = vcmp.lt.s32.totalorder %v71, 0
  %vm242 = vcmp.lt.s32.totalorder %v82, 0
  %vm243 = vcmp.lt.s32.totalorder %v93, 0
  %vm244 = vcmp.lt.s32.totalorder %v104, 0
  %vm245 = vcmp.lt.s32.totalorder %v115, 0
  %vm246 = vcmp.lt.s32.totalorder %v126, 0
  %vm247 = vcmp.lt.s32.totalorder %v137, 0
  %vm248 = vcmp.lt.s32.totalorder %v148, 0
  %vm249 = vcmp.lt.s32.totalorder %v159, 0
  %vm250 = vcmp.lt.s32.totalorder %v170, 0
  %vm251 = vcmp.lt.s32.totalorder %v181, 0
  %vm252 = vcmp.lt.s32.totalorder %v192, 0
  %vm253 = vcmp.lt.s32.totalorder %v203, 0
  %vm254 = vcmp.lt.s32.totalorder %v214, 0
  %vm255 = vcmp.lt.s32.totalorder %v225, 0
  %vm256 = vmand %vm241, %vm226
  %vm257 = vmand %vm242, %vm227
  %vm258 = vmand %vm243, %vm228
  %vm259 = vmand %vm244, %vm229
  %vm260 = vmand %vm245, %vm230
  %vm261 = vmand %vm246, %vm231
  %vm262 = vmand %vm247, %vm232
  %vm263 = vmand %vm248, %vm233
  %vm264 = vmand %vm249, %vm234
  %vm265 = vmand %vm250, %vm235
  %vm266 = vmand %vm251, %vm236
  %vm267 = vmand %vm252, %vm237
  %vm268 = vmand %vm253, %vm238
  %vm269 = vmand %vm254, %vm239
  %vm270 = vmand %vm255, %vm240
  %v271 = vadd.s32 %v71, 60
  %v272 = vadd.s32 %v82, 60
  %v273 = vadd.s32 %v93, 60
  %v274 = vadd.s32 %v104, 60
  %v275 = vadd.s32 %v115, 60
  %v276 = vadd.s32 %v126, 60
  %v277 = vadd.s32 %v137, 60
  %v278 = vadd.s32 %v148, 60
  %v279 = vadd.s32 %v159, 60
  %v280 = vadd.s32 %v170, 60
  %v281 = vadd.s32 %v181, 60
  %v282 = vadd.s32 %v192, 60
  %v283 = vadd.s32 %v203, 60
  %v284 = vadd.s32 %v214, 60
  %v285 = vadd.s32 %v225, 60
  %v286 = vsel %vm256, %v271, %v71
  %v287 = vsel %vm257, %v272, %v82
  %v288 = vsel %vm258, %v273, %v93
  %v289 = vsel %vm259, %v274, %v104
  %v290 = vsel %vm260, %v275, %v115
  %v291 = vsel %vm261, %v276, %v126
  %v292 = vsel %vm262, %v277, %v137
  %v293 = vsel %vm263, %v278, %v148
  %v294 = vsel %vm264, %v279, %v159
  %v295 = vsel %vm265, %v280, %v170
  %v296 = vsel %vm266, %v281, %v181
  %v297 = vsel %vm267, %v282, %v192
  %v298 = vsel %vm268, %v283, %v203
  %v299 = vsel %vm269, %v284, %v214
  %v300 = vsel %vm270, %v285, %v225
  %vm301 = vcmp.eq.s32.totalorder %v286, 0
  %vm302 = vcmp.eq.s32.totalorder %v287, 0
  %vm303 = vcmp.eq.s32.totalorder %v288, 0
  %vm304 = vcmp.eq.s32.totalorder %v289, 0
  %vm305 = vcmp.eq.s32.totalorder %v290, 0
  %vm306 = vcmp.eq.s32.totalorder %v291, 0
  %vm307 = vcmp.eq.s32.totalorder %v292, 0
  %vm308 = vcmp.eq.s32.totalorder %v293, 0
  %vm309 = vcmp.eq.s32.totalorder %v294, 0
  %vm310 = vcmp.eq.s32.totalorder %v295, 0
  %vm311 = vcmp.eq.s32.totalorder %v296, 0
  %vm312 = vcmp.eq.s32.totalorder %v297, 0
  %vm313 = vcmp.eq.s32.totalorder %v298, 0
  %vm314 = vcmp.eq.s32.totalorder %v299, 0
  %vm315 = vcmp.eq.s32.totalorder %v300, 0
  %vm316 = vcmp.eq.s32.totalorder %v286, 59
  %vm317 = vcmp.eq.s32.totalorder %v287, 59
  %vm318 = vcmp.eq.s32.totalorder %v288, 59
  %vm319 = vcmp.eq.s32.totalorder %v289, 59
  %vm320 = vcmp.eq.s32.totalorder %v290, 59
  %vm321 = vcmp.eq.s32.totalorder %v291, 59
  %vm322 = vcmp.eq.s32.totalorder %v292, 59
  %vm323 = vcmp.eq.s32.totalorder %v293, 59
  %vm324 = vcmp.eq.s32.totalorder %v294, 59
  %vm325 = vcmp.eq.s32.totalorder %v295, 59
  %vm326 = vcmp.eq.s32.totalorder %v296, 59
  %vm327 = vcmp.eq.s32.totalorder %v297, 59
  %vm328 = vcmp.eq.s32.totalorder %v298, 59
  %vm329 = vcmp.eq.s32.totalorder %v299, 59
  %vm330 = vcmp.eq.s32.totalorder %v300, 59
  %v331 = vld [vmem:[%s0] sm:$0xf]
  %v332 = vld [vmem:[%s0 + $0x4] sm:$0xf]
  %v333 = vld [vmem:[%s0 + $0x8] sm:$0xf]
  %v334 = vld [vmem:[%s0 + $0xc] sm:$0xf]
  %v335 = vld [vmem:[%s0 + $0x10] sm:$0xf]
  %v336 = vld [vmem:[%s0 + $0x14] sm:$0xf]
  %v337 = vld [vmem:[%s0 + $0x18] sm:$0xf]
  %v338 = vld [vmem:[%s0 + $0x1c] sm:$0xf]
  %v339 = vld [vmem:[%s0 + $0x20] sm:$0xf]
  %v340 = vld [vmem:[%s0 + $0x24] sm:$0xf]
  %v341 = vld [vmem:[%s0 + $0x28] sm:$0xf]
  %v342 = vld [vmem:[%s0 + $0x2c] sm:$0xf]
  %v343 = vld [vmem:[%s0 + $0x30] sm:$0xf]
  %v344 = vld [vmem:[%s0 + $0x34] sm:$0xf]
  %v345 = vld [vmem:[%s0 + $0x38] sm:$0xf]
  %v346 = vunpack.c.l.bf16 %v331
  %v347 = vunpack.c.l.bf16 %v332
  %v348 = vunpack.c.l.bf16 %v333
  %v349 = vunpack.c.l.bf16 %v334
  %v350 = vunpack.c.l.bf16 %v335
  %v351 = vunpack.c.l.bf16 %v336
  %v352 = vunpack.c.l.bf16 %v337
  %v353 = vunpack.c.l.bf16 %v338
  %v354 = vunpack.c.l.bf16 %v339
  %v355 = vunpack.c.l.bf16 %v340
  %v356 = vunpack.c.l.bf16 %v341
  %v357 = vunpack.c.l.bf16 %v342
  %v358 = vunpack.c.l.bf16 %v343
  %v359 = vunpack.c.l.bf16 %v344
  %v360 = vunpack.c.l.bf16 %v345
  %v361 = vld [vmem:[%s1] sm:$0x1]
  %v362 = vld [vmem:[%s1 + $0x1] sm:$0x1]
  %v363 = vadd.f32 %v346, %v347
  %v364 = vadd.f32 %v363, %v348
  %v365 = vadd.f32 %v364, %v349
  %v366 = vadd.f32 %v365, %v350
  %v367 = vadd.f32 %v366, %v351
  %v368 = vadd.f32 %v367, %v352
  %v369 = vadd.f32 %v368, %v353
  %v370 = vadd.f32 %v369, %v354
  %v371 = vadd.f32 %v370, %v355
  %v372 = vadd.f32 %v371, %v356
  %v373 = vadd.f32 %v372, %v357
  %v374 = vadd.f32 %v373, %v358
  %v375 = vadd.f32 %v374, %v359
  %v376 = vadd.f32 %v375, %v360
  %v377 = vrot.slane %v376, 4
  %v378 = vadd.f32 %v376, %v377
  %v379 = vrot.slane %v378, 2
  %v380 = vadd.f32 %v378, %v379
  %v381 = vrot.slane %v380, 1
  %v382 = vadd.f32 %v380, %v381
  %v383 = vrcp.pop 120.0
  %v384 = vmul.f32 %v382, %v383
  %v385 = vmul.f32 %v346, %v346
  %v386 = vmul.f32 %v347, %v347
  %v387 = vmul.f32 %v348, %v348
  %v388 = vmul.f32 %v349, %v349
  %v389 = vmul.f32 %v350, %v350
  %v390 = vmul.f32 %v351, %v351
  %v391 = vmul.f32 %v352, %v352
  %v392 = vmul.f32 %v353, %v353
  %v393 = vmul.f32 %v354, %v354
  %v394 = vmul.f32 %v355, %v355
  %v395 = vmul.f32 %v356, %v356
  %v396 = vmul.f32 %v357, %v357
  %v397 = vmul.f32 %v358, %v358
  %v398 = vmul.f32 %v359, %v359
  %v399 = vmul.f32 %v360, %v360
  %v400 = vadd.f32 %v385, %v386
  %v401 = vadd.f32 %v400, %v387
  %v402 = vadd.f32 %v401, %v388
  %v403 = vadd.f32 %v402, %v389
  %v404 = vadd.f32 %v403, %v390
  %v405 = vadd.f32 %v404, %v391
  %v406 = vadd.f32 %v405, %v392
  %v407 = vadd.f32 %v406, %v393
  %v408 = vadd.f32 %v407, %v394
  %v409 = vadd.f32 %v408, %v395
  %v410 = vadd.f32 %v409, %v396
  %v411 = vadd.f32 %v410, %v397
  %v412 = vadd.f32 %v411, %v398
  %v413 = vadd.f32 %v412, %v399
  %v414 = vrot.slane %v413, 4
  %v415 = vadd.f32 %v413, %v414
  %v416 = vrot.slane %v415, 2
  %v417 = vadd.f32 %v415, %v416
  %v418 = vrot.slane %v417, 1
  %v419 = vadd.f32 %v417, %v418
  %v420 = vmul.f32 %v419, %v383
  %v421 = vmul.f32 %v384, %v384
  %v422 = vsub.f32 %v420, %v421
  %v423 = vsub.f32 %v346, %v384
  %v424 = vsub.f32 %v347, %v384
  %v425 = vsub.f32 %v348, %v384
  %v426 = vsub.f32 %v349, %v384
  %v427 = vsub.f32 %v350, %v384
  %v428 = vsub.f32 %v351, %v384
  %v429 = vsub.f32 %v352, %v384
  %v430 = vsub.f32 %v353, %v384
  %v431 = vsub.f32 %v354, %v384
  %v432 = vsub.f32 %v355, %v384
  %v433 = vsub.f32 %v356, %v384
  %v434 = vsub.f32 %v357, %v384
  %v435 = vsub.f32 %v358, %v384
  %v436 = vsub.f32 %v359, %v384
  %v437 = vsub.f32 %v360, %v384
  %v438 = vadd.f32 %v422, 1e-05
  %v439 = vrsqrt.pop %v438
  %v440 = vmul.f32 %v423, %v439
  %v441 = vmul.f32 %v424, %v439
  %v442 = vmul.f32 %v425, %v439
  %v443 = vmul.f32 %v426, %v439
  %v444 = vmul.f32 %v427, %v439
  %v445 = vmul.f32 %v428, %v439
  %v446 = vmul.f32 %v429, %v439
  %v447 = vmul.f32 %v430, %v439
  %v448 = vmul.f32 %v431, %v439
  %v449 = vmul.f32 %v432, %v439
  %v450 = vmul.f32 %v433, %v439
  %v451 = vmul.f32 %v434, %v439
  %v452 = vmul.f32 %v435, %v439
  %v453 = vmul.f32 %v436, %v439
  %v454 = vmul.f32 %v437, %v439
  %v455 = vlaneseq
  %v456 = vshrl.u32 %v455, 7
  %v457 = vsub.s32 0, %v456
  %v458 = vrot.slane %v361, %v457
  %v459 = vmul.f32 %v440, %v458
  %v460 = vmul.f32 %v441, %v458
  %v461 = vmul.f32 %v442, %v458
  %v462 = vmul.f32 %v443, %v458
  %v463 = vmul.f32 %v444, %v458
  %v464 = vmul.f32 %v445, %v458
  %v465 = vmul.f32 %v446, %v458
  %v466 = vmul.f32 %v447, %v458
  %v467 = vmul.f32 %v448, %v458
  %v468 = vmul.f32 %v449, %v458
  %v469 = vmul.f32 %v450, %v458
  %v470 = vmul.f32 %v451, %v458
  %v471 = vmul.f32 %v452, %v458
  %v472 = vmul.f32 %v453, %v458
  %v473 = vmul.f32 %v454, %v458
  %v474 = vlaneseq
  %v475 = vshrl.u32 %v474, 7
  %v476 = vsub.s32 0, %v475
  %v477 = vrot.slane %v362, %v476
  %v478 = vadd.f32 %v459, %v477
  %v479 = vadd.f32 %v460, %v477
  %v480 = vadd.f32 %v461, %v477
  %v481 = vadd.f32 %v462, %v477
  %v482 = vadd.f32 %v463, %v477
  %v483 = vadd.f32 %v464, %v477
  %v484 = vadd.f32 %v465, %v477
  %v485 = vadd.f32 %v466, %v477
  %v486 = vadd.f32 %v467, %v477
  %v487 = vadd.f32 %v468, %v477
  %v488 = vadd.f32 %v469, %v477
  %v489 = vadd.f32 %v470, %v477
  %v490 = vadd.f32 %v471, %v477
  %v491 = vadd.f32 %v472, %v477
  %v492 = vadd.f32 %v473, %v477
  %v493 = vpack.c.bf16 %v479, %v478
  %v494 = vpack.c.bf16 %v481, %v480
  %v495 = vpack.c.bf16 %v483, %v482
  %v496 = vpack.c.bf16 %v485, %v484
  %v497 = vpack.c.bf16 %v487, %v486
  %v498 = vpack.c.bf16 %v489, %v488
  %v499 = vpack.c.bf16 %v491, %v490
  %v500 = vpack.c.bf16 %v492, %v492
  %v501 = vld [vmem:[%s2] sm:$0xff]
  %v502 = vld [vmem:[%s2 + $0x8] sm:$0xff]
  %v503 = vld [vmem:[%s2 + $0x10] sm:$0xff]
  %v504 = vld [vmem:[%s2 + $0x18] sm:$0xff]
  %v505 = vld [vmem:[%s2 + $0x20] sm:$0xff]
  %v506 = vld [vmem:[%s2 + $0x28] sm:$0xff]
  %v507 = vld [vmem:[%s2 + $0x30] sm:$0xff]
  %v508 = vld [vmem:[%s2 + $0x38] sm:$0xff]
  %v509 = vld [vmem:[%s2 + $0x40] sm:$0xff]
  %v510 = vld [vmem:[%s2 + $0x48] sm:$0xff]
  %v511 = vld [vmem:[%s2 + $0x50] sm:$0xff]
  %v512 = vld [vmem:[%s2 + $0x58] sm:$0xff]
  %v513 = vld [vmem:[%s2 + $0x60] sm:$0xff]
  %v514 = vld [vmem:[%s2 + $0x68] sm:$0xff]
  %v515 = vld [vmem:[%s2 + $0x70] sm:$0xff]
  %v516 = vld [vmem:[%s2 + $0x78] sm:$0xff]
  %v517 = vld [vmem:[%s2 + $0x80] sm:$0xff]
  %v518 = vld [vmem:[%s2 + $0x88] sm:$0xff]
  %v519 = vld [vmem:[%s2 + $0x90] sm:$0xff]
  %v520 = vld [vmem:[%s2 + $0x98] sm:$0xff]
  %v521 = vld [vmem:[%s2 + $0xa0] sm:$0xff]
  %v522 = vld [vmem:[%s2 + $0xa8] sm:$0xff]
  %v523 = vld [vmem:[%s2 + $0xb0] sm:$0xff]
  %v524 = vld [vmem:[%s2 + $0xb8] sm:$0xff]
  %v525 = vld [vmem:[%s2 + $0xc0] sm:$0xff]
  %v526 = vld [vmem:[%s2 + $0xc8] sm:$0xff]
  %v527 = vld [vmem:[%s2 + $0xd0] sm:$0xff]
  %v528 = vld [vmem:[%s2 + $0xd8] sm:$0xff]
  %v529 = vld [vmem:[%s2 + $0xe0] sm:$0xff]
  %v530 = vld [vmem:[%s2 + $0xe8] sm:$0xff]
  %v531 = vld [vmem:[%s2 + $0xf0] sm:$0xff]
  %v532 = vld [vmem:[%s2 + $0xf8] sm:$0xff]
  %v533 = vld [vmem:[%s2 + $0x100] sm:$0xff]
  %v534 = vld [vmem:[%s2 + $0x108] sm:$0xff]
  %v535 = vld [vmem:[%s2 + $0x110] sm:$0xff]
  %v536 = vld [vmem:[%s2 + $0x118] sm:$0xff]
  %v537 = vld [vmem:[%s2 + $0x120] sm:$0xff]
  %v538 = vld [vmem:[%s2 + $0x128] sm:$0xff]
  %v539 = vld [vmem:[%s2 + $0x130] sm:$0xff]
  %v540 = vld [vmem:[%s2 + $0x138] sm:$0xff]
  %v541 = vld [vmem:[%s2 + $0x140] sm:$0xff]
  %v542 = vld [vmem:[%s2 + $0x148] sm:$0xff]
  %v543 = vld [vmem:[%s2 + $0x150] sm:$0xff]
  %v544 = vld [vmem:[%s2 + $0x158] sm:$0xff]
  %v545 = vld [vmem:[%s2 + $0x160] sm:$0xff]
  %v546 = vld [vmem:[%s2 + $0x168] sm:$0xff]
  %v547 = vld [vmem:[%s2 + $0x170] sm:$0xff]
  %v548 = vld [vmem:[%s2 + $0x178] sm:$0xff]
  %v597 = vunpack.c.l.b16 %v501
  %v598 = vunpack.c.h.b16 %v501
  %v599 = vunpack.c.l.b16 %v502
  %v600 = vunpack.c.h.b16 %v502
  %v601 = vunpack.c.l.b16 %v503
  %v602 = vunpack.c.h.b16 %v503
  %v603 = vunpack.c.l.b16 %v504
  %v604 = vunpack.c.h.b16 %v504
  %v605 = vunpack.c.l.b16 %v505
  %v606 = vunpack.c.h.b16 %v505
  %v607 = vunpack.c.l.b16 %v506
  %v608 = vunpack.c.h.b16 %v506
  %v609 = vunpack.c.l.b16 %v507
  %v610 = vunpack.c.h.b16 %v507
  %v611 = vunpack.c.l.b16 %v508
  %v612 = vunpack.c.h.b16 %v508
  %v613 = vunpack.c.l.b16 %v509
  %v614 = vunpack.c.h.b16 %v509
  %v615 = vunpack.c.l.b16 %v510
  %v616 = vunpack.c.h.b16 %v510
  %v617 = vunpack.c.l.b16 %v511
  %v618 = vunpack.c.h.b16 %v511
  %v619 = vunpack.c.l.b16 %v512
  %v620 = vunpack.c.h.b16 %v512
  %v621 = vunpack.c.l.b16 %v513
  %v622 = vunpack.c.h.b16 %v513
  %v623 = vunpack.c.l.b16 %v514
  %v624 = vunpack.c.h.b16 %v514
  %v625 = vunpack.c.l.b16 %v515
  %v626 = vunpack.c.h.b16 %v515
  %v627 = vunpack.c.l.b16 %v516
  %v628 = vunpack.c.h.b16 %v516
  %v629 = vunpack.c.l.b16 %v517
  %v630 = vunpack.c.h.b16 %v517
  %v631 = vunpack.c.l.b16 %v518
  %v632 = vunpack.c.h.b16 %v518
  %v633 = vunpack.c.l.b16 %v519
  %v634 = vunpack.c.h.b16 %v519
  %v635 = vunpack.c.l.b16 %v520
  %v636 = vunpack.c.h.b16 %v520
  %v637 = vunpack.c.l.b16 %v521
  %v638 = vunpack.c.h.b16 %v521
  %v639 = vunpack.c.l.b16 %v522
  %v640 = vunpack.c.h.b16 %v522
  %v641 = vunpack.c.l.b16 %v523
  %v642 = vunpack.c.h.b16 %v523
  %v643 = vunpack.c.l.b16 %v524
  %v644 = vunpack.c.h.b16 %v524
  %v645 = vunpack.c.l.b16 %v525
  %v646 = vunpack.c.h.b16 %v525
  %v647 = vunpack.c.l.b16 %v526
  %v648 = vunpack.c.h.b16 %v526
  %v649 = vunpack.c.l.b16 %v527
  %v650 = vunpack.c.h.b16 %v527
  %v651 = vunpack.c.l.b16 %v528
  %v652 = vunpack.c.h.b16 %v528
  %v653 = vunpack.c.l.b16 %v529
  %v654 = vunpack.c.h.b16 %v529
  %v655 = vunpack.c.l.b16 %v530
  %v656 = vunpack.c.h.b16 %v530
  %v657 = vunpack.c.l.b16 %v531
  %v658 = vunpack.c.h.b16 %v531
  %v659 = vunpack.c.l.b16 %v532
  %v660 = vunpack.c.h.b16 %v532
  %v661 = vunpack.c.l.b16 %v533
  %v662 = vunpack.c.h.b16 %v533
  %v663 = vunpack.c.l.b16 %v534
  %v664 = vunpack.c.h.b16 %v534
  %v665 = vunpack.c.l.b16 %v535
  %v666 = vunpack.c.h.b16 %v535
  %v667 = vunpack.c.l.b16 %v536
  %v668 = vunpack.c.h.b16 %v536
  %v669 = vunpack.c.l.b16 %v537
  %v670 = vunpack.c.h.b16 %v537
  %v671 = vunpack.c.l.b16 %v538
  %v672 = vunpack.c.h.b16 %v538
  %v673 = vunpack.c.l.b16 %v539
  %v674 = vunpack.c.h.b16 %v539
  %v675 = vunpack.c.l.b16 %v540
  %v676 = vunpack.c.h.b16 %v540
  %v677 = vunpack.c.l.b16 %v541
  %v678 = vunpack.c.h.b16 %v541
  %v679 = vunpack.c.l.b16 %v542
  %v680 = vunpack.c.h.b16 %v542
  %v681 = vunpack.c.l.b16 %v543
  %v682 = vunpack.c.h.b16 %v543
  %v683 = vunpack.c.l.b16 %v544
  %v684 = vunpack.c.h.b16 %v544
  %v685 = vunpack.c.l.b16 %v545
  %v686 = vunpack.c.h.b16 %v545
  %v687 = vunpack.c.l.b16 %v546
  %v688 = vunpack.c.h.b16 %v546
  %v689 = vunpack.c.l.b16 %v547
  %v690 = vunpack.c.h.b16 %v547
  %v691 = vunpack.c.l.b16 %v548
  %v692 = vunpack.c.h.b16 %v548
  %v693 = vpack.c.b16 %v603, %v597
  %v694 = vpack.c.b16 %v604, %v598
  %v695 = vpack.c.b16 %v605, %v599
  %v696 = vpack.c.b16 %v606, %v600
  %v697 = vpack.c.b16 %v607, %v601
  %v698 = vpack.c.b16 %v608, %v602
  %v699 = vpack.c.b16 %v615, %v609
  %v700 = vpack.c.b16 %v616, %v610
  %v701 = vpack.c.b16 %v617, %v611
  %v702 = vpack.c.b16 %v618, %v612
  %v703 = vpack.c.b16 %v619, %v613
  %v704 = vpack.c.b16 %v620, %v614
  %v705 = vpack.c.b16 %v627, %v621
  %v706 = vpack.c.b16 %v628, %v622
  %v707 = vpack.c.b16 %v629, %v623
  %v708 = vpack.c.b16 %v630, %v624
  %v709 = vpack.c.b16 %v631, %v625
  %v710 = vpack.c.b16 %v632, %v626
  %v711 = vpack.c.b16 %v639, %v633
  %v712 = vpack.c.b16 %v640, %v634
  %v713 = vpack.c.b16 %v641, %v635
  %v714 = vpack.c.b16 %v642, %v636
  %v715 = vpack.c.b16 %v643, %v637
  %v716 = vpack.c.b16 %v644, %v638
  %v717 = vpack.c.b16 %v651, %v645
  %v718 = vpack.c.b16 %v652, %v646
  %v719 = vpack.c.b16 %v653, %v647
  %v720 = vpack.c.b16 %v654, %v648
  %v721 = vpack.c.b16 %v655, %v649
  %v722 = vpack.c.b16 %v656, %v650
  %v723 = vpack.c.b16 %v663, %v657
  %v724 = vpack.c.b16 %v664, %v658
  %v725 = vpack.c.b16 %v665, %v659
  %v726 = vpack.c.b16 %v666, %v660
  %v727 = vpack.c.b16 %v667, %v661
  %v728 = vpack.c.b16 %v668, %v662
  %v729 = vpack.c.b16 %v675, %v669
  %v730 = vpack.c.b16 %v676, %v670
  %v731 = vpack.c.b16 %v677, %v671
  %v732 = vpack.c.b16 %v678, %v672
  %v733 = vpack.c.b16 %v679, %v673
  %v734 = vpack.c.b16 %v680, %v674
  %v735 = vpack.c.b16 %v687, %v681
  %v736 = vpack.c.b16 %v688, %v682
  %v737 = vpack.c.b16 %v689, %v683
  %v738 = vpack.c.b16 %v690, %v684
  %v739 = vpack.c.b16 %v691, %v685
  %v740 = vpack.c.b16 %v692, %v686
  %789 = vmatprep.subr.bf16.mxu0 %v736
  %790 = vmatpush1.bf16.msra.mxu0 %v735
  %791 = vmatprep.subr.bf16.mxu0 %v730
  %792 = vmatpush1.bf16.msra.mxu0 %v729
  %793 = vmatprep.subr.bf16.mxu0 %v724
  %794 = vmatpush1.bf16.msra.mxu0 %v723
  %795 = vmatprep.subr.bf16.mxu0 %v718
  %796 = vmatpush1.bf16.msra.mxu0 %v717
  %797 = vmatprep.subr.bf16.mxu0 %v712
  %798 = vmatpush1.bf16.msra.mxu0 %v711
  %799 = vmatprep.subr.bf16.mxu0 %v706
  %800 = vmatpush1.bf16.msra.mxu0 %v705
  %801 = vmatprep.subr.bf16.mxu0 %v700
  %802 = vmatpush1.bf16.msra.mxu0 %v699
  %803 = vmatprep.subr.bf16.mxu0 %v694
  %804 = vmatpush1.bf16.msra.mxu0 %v693
  %805 = vmatprep.subr.bf16.mxu0 0
  %806 = vmatpush2.bf16.msra.mxu0 0
  %807 = vmatprep.subr.bf16.mxu0 0
  %808 = vmatpush2.bf16.msra.mxu0 0
  %809 = vmatprep.subr.bf16.mxu0 0
  %810 = vmatpush2.bf16.msra.mxu0 0
  %811 = vmatprep.subr.bf16.mxu0 0
  %812 = vmatpush2.bf16.msra.mxu0 0
  %813 = vmatprep.subr.bf16.mxu0 0
  %814 = vmatpush2.bf16.msra.mxu0 0
  %815 = vmatprep.subr.bf16.mxu0 0
  %816 = vmatpush2.bf16.msra.mxu0 0
  %817 = vmatprep.subr.bf16.mxu0 0
  %818 = vmatpush2.bf16.msra.mxu0 0
  %819 = vmatprep.subr.bf16.mxu0 0
  %820 = vmatpush2.bf16.msra.mxu0 0
  %821 = vmatprep.mubr.bf16.mxu0 0
  %822 = vmatmul.mubr.bf16.gmra.mxu0 %v493
  %v823 = vpop.f32.mrf.mxu0
  %v824 = vadd.f32 0.0, %v823
  %v825 = vpop.f32.mrf.mxu0
  %v826 = vadd.f32 0.0, %v825
  %v827 = vpop.f32.mrf.mxu0
  %v828 = vadd.f32 0.0, %v827
  %v829 = vpop.f32.mrf.mxu0
  %v830 = vadd.f32 0.0, %v829
  %831 = vmatprep.mubr.bf16.mxu0 0
  %832 = vmatmul.mubr.bf16.gmra.mxu0 %v494
  %v833 = vpop.f32.mrf.mxu0
  %v834 = vadd.f32 0.0, %v833
  %v835 = vpop.f32.mrf.mxu0
  %v836 = vadd.f32 0.0, %v835
  %v837 = vpop.f32.mrf.mxu0
  %v838 = vadd.f32 0.0, %v837
  %v839 = vpop.f32.mrf.mxu0
  %v840 = vadd.f32 0.0, %v839
  %841 = vmatprep.mubr.bf16.mxu0 0
  %842 = vmatmul.mubr.bf16.gmra.mxu0 %v495
  %v843 = vpop.f32.mrf.mxu0
  %v844 = vadd.f32 0.0, %v843
  %v845 = vpop.f32.mrf.mxu0
  %v846 = vadd.f32 0.0, %v845
  %v847 = vpop.f32.mrf.mxu0
  %v848 = vadd.f32 0.0, %v847
  %v849 = vpop.f32.mrf.mxu0
  %v850 = vadd.f32 0.0, %v849
  %851 = vmatprep.mubr.bf16.mxu0 0
  %852 = vmatmul.mubr.bf16.gmra.mxu0 %v496
  %v853 = vpop.f32.mrf.mxu0
  %v854 = vadd.f32 0.0, %v853
  %v855 = vpop.f32.mrf.mxu0
  %v856 = vadd.f32 0.0, %v855
  %v857 = vpop.f32.mrf.mxu0
  %v858 = vadd.f32 0.0, %v857
  %v859 = vpop.f32.mrf.mxu0
  %v860 = vadd.f32 0.0, %v859
  %861 = vmatprep.mubr.bf16.mxu0 0
  %862 = vmatmul.mubr.bf16.gmra.mxu0 %v497
  %v863 = vpop.f32.mrf.mxu0
  %v864 = vadd.f32 0.0, %v863
  %v865 = vpop.f32.mrf.mxu0
  %v866 = vadd.f32 0.0, %v865
  %v867 = vpop.f32.mrf.mxu0
  %v868 = vadd.f32 0.0, %v867
  %v869 = vpop.f32.mrf.mxu0
  %v870 = vadd.f32 0.0, %v869
  %871 = vmatprep.mubr.bf16.mxu0 0
  %872 = vmatmul.mubr.bf16.gmra.mxu0 %v498
  %v873 = vpop.f32.mrf.mxu0
  %v874 = vadd.f32 0.0, %v873
  %v875 = vpop.f32.mrf.mxu0
  %v876 = vadd.f32 0.0, %v875
  %v877 = vpop.f32.mrf.mxu0
  %v878 = vadd.f32 0.0, %v877
  %v879 = vpop.f32.mrf.mxu0
  %v880 = vadd.f32 0.0, %v879
  %881 = vmatprep.mubr.bf16.mxu0 0
  %882 = vmatmul.mubr.bf16.gmra.mxu0 %v499
  %v883 = vpop.f32.mrf.mxu0
  %v884 = vadd.f32 0.0, %v883
  %v885 = vpop.f32.mrf.mxu0
  %v886 = vadd.f32 0.0, %v885
  %v887 = vpop.f32.mrf.mxu0
  %v888 = vadd.f32 0.0, %v887
  %v889 = vpop.f32.mrf.mxu0
  %v890 = vadd.f32 0.0, %v889
  %891 = vmatprep.mubr.bf16.mxu0 0
  %892 = vmatmul.mubr.bf16.gmra.mxu0 %v500
  %v893 = vpop.f32.mrf.mxu0
  %v894 = vadd.f32 0.0, %v893
  %v895 = vpop.f32.mrf.mxu0
  %v896 = vadd.f32 0.0, %v895
  %v897 = vpop.f32.mrf.mxu0
  %v898 = vpop.f32.mrf.mxu0
  %899 = vdwg.mxu0
  %900 = vmatprep.subr.bf16.mxu0 %v738
  %901 = vmatpush1.bf16.msra.mxu0 %v737
  %902 = vmatprep.subr.bf16.mxu0 %v732
  %903 = vmatpush1.bf16.msra.mxu0 %v731
  %904 = vmatprep.subr.bf16.mxu0 %v726
  %905 = vmatpush1.bf16.msra.mxu0 %v725
  %906 = vmatprep.subr.bf16.mxu0 %v720
  %907 = vmatpush1.bf16.msra.mxu0 %v719
  %908 = vmatprep.subr.bf16.mxu0 %v714
  %909 = vmatpush1.bf16.msra.mxu0 %v713
  %910 = vmatprep.subr.bf16.mxu0 %v708
  %911 = vmatpush1.bf16.msra.mxu0 %v707
  %912 = vmatprep.subr.bf16.mxu0 %v702
  %913 = vmatpush1.bf16.msra.mxu0 %v701
  %914 = vmatprep.subr.bf16.mxu0 %v696
  %915 = vmatpush1.bf16.msra.mxu0 %v695
  %916 = vmatprep.subr.bf16.mxu0 0
  %917 = vmatpush2.bf16.msra.mxu0 0
  %918 = vmatprep.subr.bf16.mxu0 0
  %919 = vmatpush2.bf16.msra.mxu0 0
  %920 = vmatprep.subr.bf16.mxu0 0
  %921 = vmatpush2.bf16.msra.mxu0 0
  %922 = vmatprep.subr.bf16.mxu0 0
  %923 = vmatpush2.bf16.msra.mxu0 0
  %924 = vmatprep.subr.bf16.mxu0 0
  %925 = vmatpush2.bf16.msra.mxu0 0
  %926 = vmatprep.subr.bf16.mxu0 0
  %927 = vmatpush2.bf16.msra.mxu0 0
  %928 = vmatprep.subr.bf16.mxu0 0
  %929 = vmatpush2.bf16.msra.mxu0 0
  %930 = vmatprep.subr.bf16.mxu0 0
  %931 = vmatpush2.bf16.msra.mxu0 0
  %932 = vmatprep.mubr.bf16.mxu0 0
  %933 = vmatmul.mubr.bf16.gmra.mxu0 %v493
  %v934 = vpop.f32.mrf.mxu0
  %v935 = vadd.f32 0.0, %v934
  %v936 = vpop.f32.mrf.mxu0
  %v937 = vadd.f32 0.0, %v936
  %v938 = vpop.f32.mrf.mxu0
  %v939 = vadd.f32 0.0, %v938
  %v940 = vpop.f32.mrf.mxu0
  %v941 = vadd.f32 0.0, %v940
  %942 = vmatprep.mubr.bf16.mxu0 0
  %943 = vmatmul.mubr.bf16.gmra.mxu0 %v494
  %v944 = vpop.f32.mrf.mxu0
  %v945 = vadd.f32 0.0, %v944
  %v946 = vpop.f32.mrf.mxu0
  %v947 = vadd.f32 0.0, %v946
  %v948 = vpop.f32.mrf.mxu0
  %v949 = vadd.f32 0.0, %v948
  %v950 = vpop.f32.mrf.mxu0
  %v951 = vadd.f32 0.0, %v950
  %952 = vmatprep.mubr.bf16.mxu0 0
  %953 = vmatmul.mubr.bf16.gmra.mxu0 %v495
  %v954 = vpop.f32.mrf.mxu0
  %v955 = vadd.f32 0.0, %v954
  %v956 = vpop.f32.mrf.mxu0
  %v957 = vadd.f32 0.0, %v956
  %v958 = vpop.f32.mrf.mxu0
  %v959 = vadd.f32 0.0, %v958
  %v960 = vpop.f32.mrf.mxu0
  %v961 = vadd.f32 0.0, %v960
  %962 = vmatprep.mubr.bf16.mxu0 0
  %963 = vmatmul.mubr.bf16.gmra.mxu0 %v496
  %v964 = vpop.f32.mrf.mxu0
  %v965 = vadd.f32 0.0, %v964
  %v966 = vpop.f32.mrf.mxu0
  %v967 = vadd.f32 0.0, %v966
  %v968 = vpop.f32.mrf.mxu0
  %v969 = vadd.f32 0.0, %v968
  %v970 = vpop.f32.mrf.mxu0
  %v971 = vadd.f32 0.0, %v970
  %972 = vmatprep.mubr.bf16.mxu0 0
  %973 = vmatmul.mubr.bf16.gmra.mxu0 %v497
  %v974 = vpop.f32.mrf.mxu0
  %v975 = vadd.f32 0.0, %v974
  %v976 = vpop.f32.mrf.mxu0
  %v977 = vadd.f32 0.0, %v976
  %v978 = vpop.f32.mrf.mxu0
  %v979 = vadd.f32 0.0, %v978
  %v980 = vpop.f32.mrf.mxu0
  %v981 = vadd.f32 0.0, %v980
  %982 = vmatprep.mubr.bf16.mxu0 0
  %983 = vmatmul.mubr.bf16.gmra.mxu0 %v498
  %v984 = vpop.f32.mrf.mxu0
  %v985 = vadd.f32 0.0, %v984
  %v986 = vpop.f32.mrf.mxu0
  %v987 = vadd.f32 0.0, %v986
  %v988 = vpop.f32.mrf.mxu0
  %v989 = vadd.f32 0.0, %v988
  %v990 = vpop.f32.mrf.mxu0
  %v991 = vadd.f32 0.0, %v990
  %992 = vmatprep.mubr.bf16.mxu0 0
  %993 = vmatmul.mubr.bf16.gmra.mxu0 %v499
  %v994 = vpop.f32.mrf.mxu0
  %v995 = vadd.f32 0.0, %v994
  %v996 = vpop.f32.mrf.mxu0
  %v997 = vadd.f32 0.0, %v996
  %v998 = vpop.f32.mrf.mxu0
  %v999 = vadd.f32 0.0, %v998
  %v1000 = vpop.f32.mrf.mxu0
  %v1001 = vadd.f32 0.0, %v1000
  %1002 = vmatprep.mubr.bf16.mxu0 0
  %1003 = vmatmul.mubr.bf16.gmra.mxu0 %v500
  %v1004 = vpop.f32.mrf.mxu0
  %v1005 = vadd.f32 0.0, %v1004
  %v1006 = vpop.f32.mrf.mxu0
  %v1007 = vadd.f32 0.0, %v1006
  %v1008 = vpop.f32.mrf.mxu0
  %v1009 = vpop.f32.mrf.mxu0
  %1010 = vdwg.mxu0
  %1011 = vmatprep.subr.bf16.mxu0 %v740
  %1012 = vmatpush1.bf16.msra.mxu0 %v739
  %1013 = vmatprep.subr.bf16.mxu0 %v734
  %1014 = vmatpush1.bf16.msra.mxu0 %v733
  %1015 = vmatprep.subr.bf16.mxu0 %v728
  %1016 = vmatpush1.bf16.msra.mxu0 %v727
  %1017 = vmatprep.subr.bf16.mxu0 %v722
  %1018 = vmatpush1.bf16.msra.mxu0 %v721
  %1019 = vmatprep.subr.bf16.mxu0 %v716
  %1020 = vmatpush1.bf16.msra.mxu0 %v715
  %1021 = vmatprep.subr.bf16.mxu0 %v710
  %1022 = vmatpush1.bf16.msra.mxu0 %v709
  %1023 = vmatprep.subr.bf16.mxu0 %v704
  %1024 = vmatpush1.bf16.msra.mxu0 %v703
  %1025 = vmatprep.subr.bf16.mxu0 %v698
  %1026 = vmatpush1.bf16.msra.mxu0 %v697
  %1027 = vmatprep.subr.bf16.mxu0 0
  %1028 = vmatpush2.bf16.msra.mxu0 0
  %1029 = vmatprep.subr.bf16.mxu0 0
  %1030 = vmatpush2.bf16.msra.mxu0 0
  %1031 = vmatprep.subr.bf16.mxu0 0
  %1032 = vmatpush2.bf16.msra.mxu0 0
  %1033 = vmatprep.subr.bf16.mxu0 0
  %1034 = vmatpush2.bf16.msra.mxu0 0
  %1035 = vmatprep.subr.bf16.mxu0 0
  %1036 = vmatpush2.bf16.msra.mxu0 0
  %1037 = vmatprep.subr.bf16.mxu0 0
  %1038 = vmatpush2.bf16.msra.mxu0 0
  %1039 = vmatprep.subr.bf16.mxu0 0
  %1040 = vmatpush2.bf16.msra.mxu0 0
  %1041 = vmatprep.subr.bf16.mxu0 0
  %1042 = vmatpush2.bf16.msra.mxu0 0
  %1043 = vmatprep.mubr.bf16.mxu0 0
  %1044 = vmatmul.mubr.bf16.gmra.mxu0 %v493
  %v1045 = vpop.f32.mrf.mxu0
  %v1046 = vadd.f32 0.0, %v1045
  %v1047 = vpop.f32.mrf.mxu0
  %v1048 = vadd.f32 0.0, %v1047
  %v1049 = vpop.f32.mrf.mxu0
  %v1050 = vadd.f32 0.0, %v1049
  %v1051 = vpop.f32.mrf.mxu0
  %v1052 = vadd.f32 0.0, %v1051
  %1053 = vmatprep.mubr.bf16.mxu0 0
  %1054 = vmatmul.mubr.bf16.gmra.mxu0 %v494
  %v1055 = vpop.f32.mrf.mxu0
  %v1056 = vadd.f32 0.0, %v1055
  %v1057 = vpop.f32.mrf.mxu0
  %v1058 = vadd.f32 0.0, %v1057
  %v1059 = vpop.f32.mrf.mxu0
  %v1060 = vadd.f32 0.0, %v1059
  %v1061 = vpop.f32.mrf.mxu0
  %v1062 = vadd.f32 0.0, %v1061
  %1063 = vmatprep.mubr.bf16.mxu0 0
  %1064 = vmatmul.mubr.bf16.gmra.mxu0 %v495
  %v1065 = vpop.f32.mrf.mxu0
  %v1066 = vadd.f32 0.0, %v1065
  %v1067 = vpop.f32.mrf.mxu0
  %v1068 = vadd.f32 0.0, %v1067
  %v1069 = vpop.f32.mrf.mxu0
  %v1070 = vadd.f32 0.0, %v1069
  %v1071 = vpop.f32.mrf.mxu0
  %v1072 = vadd.f32 0.0, %v1071
  %1073 = vmatprep.mubr.bf16.mxu0 0
  %1074 = vmatmul.mubr.bf16.gmra.mxu0 %v496
  %v1075 = vpop.f32.mrf.mxu0
  %v1076 = vadd.f32 0.0, %v1075
  %v1077 = vpop.f32.mrf.mxu0
  %v1078 = vadd.f32 0.0, %v1077
  %v1079 = vpop.f32.mrf.mxu0
  %v1080 = vadd.f32 0.0, %v1079
  %v1081 = vpop.f32.mrf.mxu0
  %v1082 = vadd.f32 0.0, %v1081
  %1083 = vmatprep.mubr.bf16.mxu0 0
  %1084 = vmatmul.mubr.bf16.gmra.mxu0 %v497
  %v1085 = vpop.f32.mrf.mxu0
  %v1086 = vadd.f32 0.0, %v1085
  %v1087 = vpop.f32.mrf.mxu0
  %v1088 = vadd.f32 0.0, %v1087
  %v1089 = vpop.f32.mrf.mxu0
  %v1090 = vadd.f32 0.0, %v1089
  %v1091 = vpop.f32.mrf.mxu0
  %v1092 = vadd.f32 0.0, %v1091
  %1093 = vmatprep.mubr.bf16.mxu0 0
  %1094 = vmatmul.mubr.bf16.gmra.mxu0 %v498
  %v1095 = vpop.f32.mrf.mxu0
  %v1096 = vadd.f32 0.0, %v1095
  %v1097 = vpop.f32.mrf.mxu0
  %v1098 = vadd.f32 0.0, %v1097
  %v1099 = vpop.f32.mrf.mxu0
  %v1100 = vadd.f32 0.0, %v1099
  %v1101 = vpop.f32.mrf.mxu0
  %v1102 = vadd.f32 0.0, %v1101
  %1103 = vmatprep.mubr.bf16.mxu0 0
  %1104 = vmatmul.mubr.bf16.gmra.mxu0 %v499
  %v1105 = vpop.f32.mrf.mxu0
  %v1106 = vadd.f32 0.0, %v1105
  %v1107 = vpop.f32.mrf.mxu0
  %v1108 = vadd.f32 0.0, %v1107
  %v1109 = vpop.f32.mrf.mxu0
  %v1110 = vadd.f32 0.0, %v1109
  %v1111 = vpop.f32.mrf.mxu0
  %v1112 = vadd.f32 0.0, %v1111
  %1113 = vmatprep.mubr.bf16.mxu0 0
  %1114 = vmatmul.mubr.bf16.gmra.mxu0 %v500
  %v1115 = vpop.f32.mrf.mxu0
  %v1116 = vadd.f32 0.0, %v1115
  %v1117 = vpop.f32.mrf.mxu0
  %v1118 = vadd.f32 0.0, %v1117
  %v1119 = vpop.f32.mrf.mxu0
  %v1120 = vpop.f32.mrf.mxu0
  %1121 = vdwg.mxu0
  %v1122 = vrot.slane %v824, 7
  %v1123 = vrot.slane %v826, 7
  %v1124 = vrot.slane %v828, 7
  %v1125 = vrot.slane %v830, 7
  %v1126 = vrot.slane %v834, 7
  %v1127 = vrot.slane %v836, 7
  %v1128 = vrot.slane %v838, 7
  %v1129 = vrot.slane %v840, 7
  %v1130 = vrot.slane %v844, 7
  %v1131 = vrot.slane %v846, 7
  %v1132 = vrot.slane %v848, 7
  %v1133 = vrot.slane %v850, 7
  %v1134 = vrot.slane %v854, 7
  %v1135 = vrot.slane %v856, 7
  %v1136 = vrot.slane %v858, 7
  %v1137 = vrot.slane %v860, 7
  %v1138 = vrot.slane %v864, 7
  %v1139 = vrot.slane %v866, 7
  %v1140 = vrot.slane %v868, 7
  %v1141 = vrot.slane %v870, 7
  %v1142 = vrot.slane %v874, 7
  %v1143 = vrot.slane %v876, 7
  %v1144 = vrot.slane %v878, 7
  %v1145 = vrot.slane %v880, 7
  %v1146 = vrot.slane %v884, 7
  %v1147 = vrot.slane %v886, 7
  %v1148 = vrot.slane %v888, 7
  %v1149 = vrot.slane %v890, 7
  %v1150 = vrot.slane %v894, 7
  %v1151 = vrot.slane %v896, 7
  %vm1152 = vcmp.lt.s32.totalorder %v46, 1
  %v1153 = vsel %vm1152, %v1148, %v1150
  %v1154 = vsel %vm1152, %v1149, %v1151
  %v1155 = vsel %vm1152, %v1146, %v1148
  %v1156 = vsel %vm1152, %v1147, %v1149
  %v1157 = vsel %vm1152, %v1144, %v1146
  %v1158 = vsel %vm1152, %v1145, %v1147
  %v1159 = vsel %vm1152, %v1142, %v1144
  %v1160 = vsel %vm1152, %v1143, %v1145
  %v1161 = vsel %vm1152, %v1140, %v1142
  %v1162 = vsel %vm1152, %v1141, %v1143
  %v1163 = vsel %vm1152, %v1138, %v1140
  %v1164 = vsel %vm1152, %v1139, %v1141
  %v1165 = vsel %vm1152, %v1136, %v1138
  %v1166 = vsel %vm1152, %v1137, %v1139
  %v1167 = vsel %vm1152, %v1134, %v1136
  %v1168 = vsel %vm1152, %v1135, %v1137
  %v1169 = vsel %vm1152, %v1132, %v1134
  %v1170 = vsel %vm1152, %v1133, %v1135
  %v1171 = vsel %vm1152, %v1130, %v1132
  %v1172 = vsel %vm1152, %v1131, %v1133
  %v1173 = vsel %vm1152, %v1128, %v1130
  %v1174 = vsel %vm1152, %v1129, %v1131
  %v1175 = vsel %vm1152, %v1126, %v1128
  %v1176 = vsel %vm1152, %v1127, %v1129
  %v1177 = vsel %vm1152, %v1124, %v1126
  %v1178 = vsel %vm1152, %v1125, %v1127
  %v1179 = vsel %vm1152, %v1122, %v1124
  %v1180 = vsel %vm1152, %v1123, %v1125
  %v1181 = vsel %vm1152, %v1150, %v1122
  %v1182 = vsel %vm1152, %v1151, %v1123
  %v1183 = vsel %vm301, 1, 0
  %v1184 = vsel %vm302, 1, 0
  %v1185 = vsel %vm303, 1, 0
  %v1186 = vsel %vm304, 1, 0
  %v1187 = vsel %vm305, 1, 0
  %v1188 = vsel %vm306, 1, 0
  %v1189 = vsel %vm307, 1, 0
  %v1190 = vsel %vm308, 1, 0
  %v1191 = vsel %vm309, 1, 0
  %v1192 = vsel %vm310, 1, 0
  %v1193 = vsel %vm311, 1, 0
  %v1194 = vsel %vm312, 1, 0
  %v1195 = vsel %vm313, 1, 0
  %v1196 = vsel %vm314, 1, 0
  %v1197 = vsel %vm315, 1, 0
  %vm1198 = vcmp.eq.s32.totalorder %v1183, 1
  %vm1199 = vcmp.eq.s32.totalorder %v1184, 1
  %vm1200 = vcmp.eq.s32.totalorder %v1185, 1
  %vm1201 = vcmp.eq.s32.totalorder %v1186, 1
  %vm1202 = vcmp.eq.s32.totalorder %v1187, 1
  %vm1203 = vcmp.eq.s32.totalorder %v1188, 1
  %vm1204 = vcmp.eq.s32.totalorder %v1189, 1
  %vm1205 = vcmp.eq.s32.totalorder %v1190, 1
  %vm1206 = vcmp.eq.s32.totalorder %v1191, 1
  %vm1207 = vcmp.eq.s32.totalorder %v1192, 1
  %vm1208 = vcmp.eq.s32.totalorder %v1193, 1
  %vm1209 = vcmp.eq.s32.totalorder %v1194, 1
  %vm1210 = vcmp.eq.s32.totalorder %v1195, 1
  %vm1211 = vcmp.eq.s32.totalorder %v1196, 1
  %vm1212 = vcmp.eq.s32.totalorder %v1197, 1
  %v1213 = vsel %vm1198, 0.0, %v1181
  %v1214 = vsel %vm1198, 0.0, %v1182
  %v1215 = vsel %vm1199, 0.0, %v1179
  %v1216 = vsel %vm1199, 0.0, %v1180
  %v1217 = vsel %vm1200, 0.0, %v1177
  %v1218 = vsel %vm1200, 0.0, %v1178
  %v1219 = vsel %vm1201, 0.0, %v1175
  %v1220 = vsel %vm1201, 0.0, %v1176
  %v1221 = vsel %vm1202, 0.0, %v1173
  %v1222 = vsel %vm1202, 0.0, %v1174
  %v1223 = vsel %vm1203, 0.0, %v1171
  %v1224 = vsel %vm1203, 0.0, %v1172
  %v1225 = vsel %vm1204, 0.0, %v1169
  %v1226 = vsel %vm1204, 0.0, %v1170
  %v1227 = vsel %vm1205, 0.0, %v1167
  %v1228 = vsel %vm1205, 0.0, %v1168
  %v1229 = vsel %vm1206, 0.0, %v1165
  %v1230 = vsel %vm1206, 0.0, %v1166
  %v1231 = vsel %vm1207, 0.0, %v1163
  %v1232 = vsel %vm1207, 0.0, %v1164
  %v1233 = vsel %vm1208, 0.0, %v1161
  %v1234 = vsel %vm1208, 0.0, %v1162
  %v1235 = vsel %vm1209, 0.0, %v1159
  %v1236 = vsel %vm1209, 0.0, %v1160
  %v1237 = vsel %vm1210, 0.0, %v1157
  %v1238 = vsel %vm1210, 0.0, %v1158
  %v1239 = vsel %vm1211, 0.0, %v1155
  %v1240 = vsel %vm1211, 0.0, %v1156
  %v1241 = vsel %vm1212, 0.0, %v1153
  %v1242 = vsel %vm1212, 0.0, %v1154
  %v1243 = vrot.slane %v1046, 1
  %v1244 = vrot.slane %v1048, 1
  %v1245 = vrot.slane %v1050, 1
  %v1246 = vrot.slane %v1052, 1
  %v1247 = vrot.slane %v1056, 1
  %v1248 = vrot.slane %v1058, 1
  %v1249 = vrot.slane %v1060, 1
  %v1250 = vrot.slane %v1062, 1
  %v1251 = vrot.slane %v1066, 1
  %v1252 = vrot.slane %v1068, 1
  %v1253 = vrot.slane %v1070, 1
  %v1254 = vrot.slane %v1072, 1
  %v1255 = vrot.slane %v1076, 1
  %v1256 = vrot.slane %v1078, 1
  %v1257 = vrot.slane %v1080, 1
  %v1258 = vrot.slane %v1082, 1
  %v1259 = vrot.slane %v1086, 1
  %v1260 = vrot.slane %v1088, 1
  %v1261 = vrot.slane %v1090, 1
  %v1262 = vrot.slane %v1092, 1
  %v1263 = vrot.slane %v1096, 1
  %v1264 = vrot.slane %v1098, 1
  %v1265 = vrot.slane %v1100, 1
  %v1266 = vrot.slane %v1102, 1
  %v1267 = vrot.slane %v1106, 1
  %v1268 = vrot.slane %v1108, 1
  %v1269 = vrot.slane %v1110, 1
  %v1270 = vrot.slane %v1112, 1
  %v1271 = vrot.slane %v1116, 1
  %v1272 = vrot.slane %v1118, 1
  %vm1273 = vcmp.lt.s32.totalorder %v46, 7
  %v1274 = vsel %vm1273, %v1269, %v1271
  %v1275 = vsel %vm1273, %v1270, %v1272
  %v1276 = vsel %vm1273, %v1267, %v1269
  %v1277 = vsel %vm1273, %v1268, %v1270
  %v1278 = vsel %vm1273, %v1265, %v1267
  %v1279 = vsel %vm1273, %v1266, %v1268
  %v1280 = vsel %vm1273, %v1263, %v1265
  %v1281 = vsel %vm1273, %v1264, %v1266
  %v1282 = vsel %vm1273, %v1261, %v1263
  %v1283 = vsel %vm1273, %v1262, %v1264
  %v1284 = vsel %vm1273, %v1259, %v1261
  %v1285 = vsel %vm1273, %v1260, %v1262
  %v1286 = vsel %vm1273, %v1257, %v1259
  %v1287 = vsel %vm1273, %v1258, %v1260
  %v1288 = vsel %vm1273, %v1255, %v1257
  %v1289 = vsel %vm1273, %v1256, %v1258
  %v1290 = vsel %vm1273, %v1253, %v1255
  %v1291 = vsel %vm1273, %v1254, %v1256
  %v1292 = vsel %vm1273, %v1251, %v1253
  %v1293 = vsel %vm1273, %v1252, %v1254
  %v1294 = vsel %vm1273, %v1249, %v1251
  %v1295 = vsel %vm1273, %v1250, %v1252
  %v1296 = vsel %vm1273, %v1247, %v1249
  %v1297 = vsel %vm1273, %v1248, %v1250
  %v1298 = vsel %vm1273, %v1245, %v1247
  %v1299 = vsel %vm1273, %v1246, %v1248
  %v1300 = vsel %vm1273, %v1243, %v1245
  %v1301 = vsel %vm1273, %v1244, %v1246
  %v1302 = vsel %vm1273, %v1271, %v1243
  %v1303 = vsel %vm1273, %v1272, %v1244
  %v1304 = vsel %vm316, 1, 0
  %v1305 = vsel %vm317, 1, 0
  %v1306 = vsel %vm318, 1, 0
  %v1307 = vsel %vm319, 1, 0
  %v1308 = vsel %vm320, 1, 0
  %v1309 = vsel %vm321, 1, 0
  %v1310 = vsel %vm322, 1, 0
  %v1311 = vsel %vm323, 1, 0
  %v1312 = vsel %vm324, 1, 0
  %v1313 = vsel %vm325, 1, 0
  %v1314 = vsel %vm326, 1, 0
  %v1315 = vsel %vm327, 1, 0
  %v1316 = vsel %vm328, 1, 0
  %v1317 = vsel %vm329, 1, 0
  %v1318 = vsel %vm330, 1, 0
  %vm1319 = vcmp.eq.s32.totalorder %v1304, 1
  %vm1320 = vcmp.eq.s32.totalorder %v1305, 1
  %vm1321 = vcmp.eq.s32.totalorder %v1306, 1
  %vm1322 = vcmp.eq.s32.totalorder %v1307, 1
  %vm1323 = vcmp.eq.s32.totalorder %v1308, 1
  %vm1324 = vcmp.eq.s32.totalorder %v1309, 1
  %vm1325 = vcmp.eq.s32.totalorder %v1310, 1
  %vm1326 = vcmp.eq.s32.totalorder %v1311, 1
  %vm1327 = vcmp.eq.s32.totalorder %v1312, 1
  %vm1328 = vcmp.eq.s32.totalorder %v1313, 1
  %vm1329 = vcmp.eq.s32.totalorder %v1314, 1
  %vm1330 = vcmp.eq.s32.totalorder %v1315, 1
  %vm1331 = vcmp.eq.s32.totalorder %v1316, 1
  %vm1332 = vcmp.eq.s32.totalorder %v1317, 1
  %vm1333 = vcmp.eq.s32.totalorder %v1318, 1
  %v1334 = vsel %vm1319, 0.0, %v1300
  %v1335 = vsel %vm1319, 0.0, %v1301
  %v1336 = vsel %vm1320, 0.0, %v1298
  %v1337 = vsel %vm1320, 0.0, %v1299
  %v1338 = vsel %vm1321, 0.0, %v1296
  %v1339 = vsel %vm1321, 0.0, %v1297
  %v1340 = vsel %vm1322, 0.0, %v1294
  %v1341 = vsel %vm1322, 0.0, %v1295
  %v1342 = vsel %vm1323, 0.0, %v1292
  %v1343 = vsel %vm1323, 0.0, %v1293
  %v1344 = vsel %vm1324, 0.0, %v1290
  %v1345 = vsel %vm1324, 0.0, %v1291
  %v1346 = vsel %vm1325, 0.0, %v1288
  %v1347 = vsel %vm1325, 0.0, %v1289
  %v1348 = vsel %vm1326, 0.0, %v1286
  %v1349 = vsel %vm1326, 0.0, %v1287
  %v1350 = vsel %vm1327, 0.0, %v1284
  %v1351 = vsel %vm1327, 0.0, %v1285
  %v1352 = vsel %vm1328, 0.0, %v1282
  %v1353 = vsel %vm1328, 0.0, %v1283
  %v1354 = vsel %vm1329, 0.0, %v1280
  %v1355 = vsel %vm1329, 0.0, %v1281
  %v1356 = vsel %vm1330, 0.0, %v1278
  %v1357 = vsel %vm1330, 0.0, %v1279
  %v1358 = vsel %vm1331, 0.0, %v1276
  %v1359 = vsel %vm1331, 0.0, %v1277
  %v1360 = vsel %vm1332, 0.0, %v1274
  %v1361 = vsel %vm1332, 0.0, %v1275
  %v1362 = vsel %vm1333, 0.0, %v1302
  %v1363 = vsel %vm1333, 0.0, %v1303
  %v1364 = vadd.f32 %v935, %v1213
  %v1365 = vadd.f32 %v937, %v1214
  %v1366 = vadd.f32 %v939, %v1215
  %v1367 = vadd.f32 %v941, %v1216
  %v1368 = vadd.f32 %v945, %v1217
  %v1369 = vadd.f32 %v947, %v1218
  %v1370 = vadd.f32 %v949, %v1219
  %v1371 = vadd.f32 %v951, %v1220
  %v1372 = vadd.f32 %v955, %v1221
  %v1373 = vadd.f32 %v957, %v1222
  %v1374 = vadd.f32 %v959, %v1223
  %v1375 = vadd.f32 %v961, %v1224
  %v1376 = vadd.f32 %v965, %v1225
  %v1377 = vadd.f32 %v967, %v1226
  %v1378 = vadd.f32 %v969, %v1227
  %v1379 = vadd.f32 %v971, %v1228
  %v1380 = vadd.f32 %v975, %v1229
  %v1381 = vadd.f32 %v977, %v1230
  %v1382 = vadd.f32 %v979, %v1231
  %v1383 = vadd.f32 %v981, %v1232
  %v1384 = vadd.f32 %v985, %v1233
  %v1385 = vadd.f32 %v987, %v1234
  %v1386 = vadd.f32 %v989, %v1235
  %v1387 = vadd.f32 %v991, %v1236
  %v1388 = vadd.f32 %v995, %v1237
  %v1389 = vadd.f32 %v997, %v1238
  %v1390 = vadd.f32 %v999, %v1239
  %v1391 = vadd.f32 %v1001, %v1240
  %v1392 = vadd.f32 %v1005, %v1241
  %v1393 = vadd.f32 %v1007, %v1242
  %v1394 = vadd.f32 %v1364, %v1334
  %v1395 = vadd.f32 %v1365, %v1335
  %v1396 = vadd.f32 %v1366, %v1336
  %v1397 = vadd.f32 %v1367, %v1337
  %v1398 = vadd.f32 %v1368, %v1338
  %v1399 = vadd.f32 %v1369, %v1339
  %v1400 = vadd.f32 %v1370, %v1340
  %v1401 = vadd.f32 %v1371, %v1341
  %v1402 = vadd.f32 %v1372, %v1342
  %v1403 = vadd.f32 %v1373, %v1343
  %v1404 = vadd.f32 %v1374, %v1344
  %v1405 = vadd.f32 %v1375, %v1345
  %v1406 = vadd.f32 %v1376, %v1346
  %v1407 = vadd.f32 %v1377, %v1347
  %v1408 = vadd.f32 %v1378, %v1348
  %v1409 = vadd.f32 %v1379, %v1349
  %v1410 = vadd.f32 %v1380, %v1350
  %v1411 = vadd.f32 %v1381, %v1351
  %v1412 = vadd.f32 %v1382, %v1352
  %v1413 = vadd.f32 %v1383, %v1353
  %v1414 = vadd.f32 %v1384, %v1354
  %v1415 = vadd.f32 %v1385, %v1355
  %v1416 = vadd.f32 %v1386, %v1356
  %v1417 = vadd.f32 %v1387, %v1357
  %v1418 = vadd.f32 %v1388, %v1358
  %v1419 = vadd.f32 %v1389, %v1359
  %v1420 = vadd.f32 %v1390, %v1360
  %v1421 = vadd.f32 %v1391, %v1361
  %v1422 = vadd.f32 %v1392, %v1362
  %v1423 = vadd.f32 %v1393, %v1363
  %v1424 = vld [vmem:[%s3] sm:$0x3]
  %v1426 = vlaneseq
  %v1427 = vshrl.u32 %v1426, 7
  %v1428 = vsub.s32 0, %v1427
  %v1429 = vrot.slane %v1424, %v1428
  %v1430 = vlaneseq
  %v1431 = vshrl.u32 %v1430, 7
  %v1432 = vsub.s32 1, %v1431
  %v1433 = vrot.slane %v1424, %v1432
  %v1436 = vadd.f32 %v1394, %v1429
  %v1437 = vadd.f32 %v1395, %v1433
  %v1438 = vadd.f32 %v1396, %v1429
  %v1439 = vadd.f32 %v1397, %v1433
  %v1440 = vadd.f32 %v1398, %v1429
  %v1441 = vadd.f32 %v1399, %v1433
  %v1442 = vadd.f32 %v1400, %v1429
  %v1443 = vadd.f32 %v1401, %v1433
  %v1444 = vadd.f32 %v1402, %v1429
  %v1445 = vadd.f32 %v1403, %v1433
  %v1446 = vadd.f32 %v1404, %v1429
  %v1447 = vadd.f32 %v1405, %v1433
  %v1448 = vadd.f32 %v1406, %v1429
  %v1449 = vadd.f32 %v1407, %v1433
  %v1450 = vadd.f32 %v1408, %v1429
  %v1451 = vadd.f32 %v1409, %v1433
  %v1452 = vadd.f32 %v1410, %v1429
  %v1453 = vadd.f32 %v1411, %v1433
  %v1454 = vadd.f32 %v1412, %v1429
  %v1455 = vadd.f32 %v1413, %v1433
  %v1456 = vadd.f32 %v1414, %v1429
  %v1457 = vadd.f32 %v1415, %v1433
  %v1458 = vadd.f32 %v1416, %v1429
  %v1459 = vadd.f32 %v1417, %v1433
  %v1460 = vadd.f32 %v1418, %v1429
  %v1461 = vadd.f32 %v1419, %v1433
  %v1462 = vadd.f32 %v1420, %v1429
  %v1463 = vadd.f32 %v1421, %v1433
  %v1464 = vadd.f32 %v1422, %v1429
  %v1465 = vadd.f32 %v1423, %v1433
  %v1466 = vxor.u32 %v1437, 2147483648
  %v1467 = vxor.u32 %v1439, 2147483648
  %v1468 = vxor.u32 %v1441, 2147483648
  %v1469 = vxor.u32 %v1443, 2147483648
  %v1470 = vxor.u32 %v1445, 2147483648
  %v1471 = vxor.u32 %v1447, 2147483648
  %v1472 = vxor.u32 %v1449, 2147483648
  %v1473 = vxor.u32 %v1451, 2147483648
  %v1474 = vxor.u32 %v1453, 2147483648
  %v1475 = vxor.u32 %v1455, 2147483648
  %v1476 = vxor.u32 %v1457, 2147483648
  %v1477 = vxor.u32 %v1459, 2147483648
  %v1478 = vxor.u32 %v1461, 2147483648
  %v1479 = vxor.u32 %v1463, 2147483648
  %v1480 = vxor.u32 %v1465, 2147483648
  %v1481 = vmul.f32 %v1466, 1.442695
  %v1482 = vpow.pop %v1481
  %v1483 = vmul.f32 %v1467, 1.442695
  %v1484 = vpow.pop %v1483
  %v1485 = vmul.f32 %v1468, 1.442695
  %v1486 = vpow.pop %v1485
  %v1487 = vmul.f32 %v1469, 1.442695
  %v1488 = vpow.pop %v1487
  %v1489 = vmul.f32 %v1470, 1.442695
  %v1490 = vpow.pop %v1489
  %v1491 = vmul.f32 %v1471, 1.442695
  %v1492 = vpow.pop %v1491
  %v1493 = vmul.f32 %v1472, 1.442695
  %v1494 = vpow.pop %v1493
  %v1495 = vmul.f32 %v1473, 1.442695
  %v1496 = vpow.pop %v1495
  %v1497 = vmul.f32 %v1474, 1.442695
  %v1498 = vpow.pop %v1497
  %v1499 = vmul.f32 %v1475, 1.442695
  %v1500 = vpow.pop %v1499
  %v1501 = vmul.f32 %v1476, 1.442695
  %v1502 = vpow.pop %v1501
  %v1503 = vmul.f32 %v1477, 1.442695
  %v1504 = vpow.pop %v1503
  %v1505 = vmul.f32 %v1478, 1.442695
  %v1506 = vpow.pop %v1505
  %v1507 = vmul.f32 %v1479, 1.442695
  %v1508 = vpow.pop %v1507
  %v1509 = vmul.f32 %v1480, 1.442695
  %v1510 = vpow.pop %v1509
  %v1511 = vadd.f32 %v1482, 1.0
  %v1512 = vadd.f32 %v1484, 1.0
  %v1513 = vadd.f32 %v1486, 1.0
  %v1514 = vadd.f32 %v1488, 1.0
  %v1515 = vadd.f32 %v1490, 1.0
  %v1516 = vadd.f32 %v1492, 1.0
  %v1517 = vadd.f32 %v1494, 1.0
  %v1518 = vadd.f32 %v1496, 1.0
  %v1519 = vadd.f32 %v1498, 1.0
  %v1520 = vadd.f32 %v1500, 1.0
  %v1521 = vadd.f32 %v1502, 1.0
  %v1522 = vadd.f32 %v1504, 1.0
  %v1523 = vadd.f32 %v1506, 1.0
  %v1524 = vadd.f32 %v1508, 1.0
  %v1525 = vadd.f32 %v1510, 1.0
  %v1526 = vrcp.pop %v1511
  %v1527 = vmul.f32 1.0, %v1526
  %v1528 = vrcp.pop %v1512
  %v1529 = vmul.f32 1.0, %v1528
  %v1530 = vrcp.pop %v1513
  %v1531 = vmul.f32 1.0, %v1530
  %v1532 = vrcp.pop %v1514
  %v1533 = vmul.f32 1.0, %v1532
  %v1534 = vrcp.pop %v1515
  %v1535 = vmul.f32 1.0, %v1534
  %v1536 = vrcp.pop %v1516
  %v1537 = vmul.f32 1.0, %v1536
  %v1538 = vrcp.pop %v1517
  %v1539 = vmul.f32 1.0, %v1538
  %v1540 = vrcp.pop %v1518
  %v1541 = vmul.f32 1.0, %v1540
  %v1542 = vrcp.pop %v1519
  %v1543 = vmul.f32 1.0, %v1542
  %v1544 = vrcp.pop %v1520
  %v1545 = vmul.f32 1.0, %v1544
  %v1546 = vrcp.pop %v1521
  %v1547 = vmul.f32 1.0, %v1546
  %v1548 = vrcp.pop %v1522
  %v1549 = vmul.f32 1.0, %v1548
  %v1550 = vrcp.pop %v1523
  %v1551 = vmul.f32 1.0, %v1550
  %v1552 = vrcp.pop %v1524
  %v1553 = vmul.f32 1.0, %v1552
  %v1554 = vrcp.pop %v1525
  %v1555 = vmul.f32 1.0, %v1554
  %v1556 = vmul.f32 %v1436, %v1527
  %v1557 = vmul.f32 %v1438, %v1529
  %v1558 = vmul.f32 %v1440, %v1531
  %v1559 = vmul.f32 %v1442, %v1533
  %v1560 = vmul.f32 %v1444, %v1535
  %v1561 = vmul.f32 %v1446, %v1537
  %v1562 = vmul.f32 %v1448, %v1539
  %v1563 = vmul.f32 %v1450, %v1541
  %v1564 = vmul.f32 %v1452, %v1543
  %v1565 = vmul.f32 %v1454, %v1545
  %v1566 = vmul.f32 %v1456, %v1547
  %v1567 = vmul.f32 %v1458, %v1549
  %v1568 = vmul.f32 %v1460, %v1551
  %v1569 = vmul.f32 %v1462, %v1553
  %v1570 = vmul.f32 %v1464, %v1555
  %v1571 = vld [vmem:[%s4] sm:$0x1]
  %v1572 = vld [vmem:[%s4 + $0x1] sm:$0x1]
  %v1573 = vadd.f32 %v1556, %v1557
  %v1574 = vadd.f32 %v1573, %v1558
  %v1575 = vadd.f32 %v1574, %v1559
  %v1576 = vadd.f32 %v1575, %v1560
  %v1577 = vadd.f32 %v1576, %v1561
  %v1578 = vadd.f32 %v1577, %v1562
  %v1579 = vadd.f32 %v1578, %v1563
  %v1580 = vadd.f32 %v1579, %v1564
  %v1581 = vadd.f32 %v1580, %v1565
  %v1582 = vadd.f32 %v1581, %v1566
  %v1583 = vadd.f32 %v1582, %v1567
  %v1584 = vadd.f32 %v1583, %v1568
  %v1585 = vadd.f32 %v1584, %v1569
  %v1586 = vadd.f32 %v1585, %v1570
  %v1587 = vrot.slane %v1586, 4
  %v1588 = vadd.f32 %v1586, %v1587
  %v1589 = vrot.slane %v1588, 2
  %v1590 = vadd.f32 %v1588, %v1589
  %v1591 = vrot.slane %v1590, 1
  %v1592 = vadd.f32 %v1590, %v1591
  %v1593 = vmul.f32 %v1592, %v383
  %v1594 = vmul.f32 %v1556, %v1556
  %v1595 = vmul.f32 %v1557, %v1557
  %v1596 = vmul.f32 %v1558, %v1558
  %v1597 = vmul.f32 %v1559, %v1559
  %v1598 = vmul.f32 %v1560, %v1560
  %v1599 = vmul.f32 %v1561, %v1561
  %v1600 = vmul.f32 %v1562, %v1562
  %v1601 = vmul.f32 %v1563, %v1563
  %v1602 = vmul.f32 %v1564, %v1564
  %v1603 = vmul.f32 %v1565, %v1565
  %v1604 = vmul.f32 %v1566, %v1566
  %v1605 = vmul.f32 %v1567, %v1567
  %v1606 = vmul.f32 %v1568, %v1568
  %v1607 = vmul.f32 %v1569, %v1569
  %v1608 = vmul.f32 %v1570, %v1570
  %v1609 = vadd.f32 %v1594, %v1595
  %v1610 = vadd.f32 %v1609, %v1596
  %v1611 = vadd.f32 %v1610, %v1597
  %v1612 = vadd.f32 %v1611, %v1598
  %v1613 = vadd.f32 %v1612, %v1599
  %v1614 = vadd.f32 %v1613, %v1600
  %v1615 = vadd.f32 %v1614, %v1601
  %v1616 = vadd.f32 %v1615, %v1602
  %v1617 = vadd.f32 %v1616, %v1603
  %v1618 = vadd.f32 %v1617, %v1604
  %v1619 = vadd.f32 %v1618, %v1605
  %v1620 = vadd.f32 %v1619, %v1606
  %v1621 = vadd.f32 %v1620, %v1607
  %v1622 = vadd.f32 %v1621, %v1608
  %v1623 = vrot.slane %v1622, 4
  %v1624 = vadd.f32 %v1622, %v1623
  %v1625 = vrot.slane %v1624, 2
  %v1626 = vadd.f32 %v1624, %v1625
  %v1627 = vrot.slane %v1626, 1
  %v1628 = vadd.f32 %v1626, %v1627
  %v1629 = vmul.f32 %v1628, %v383
  %v1630 = vmul.f32 %v1593, %v1593
  %v1631 = vsub.f32 %v1629, %v1630
  %v1632 = vsub.f32 %v1556, %v1593
  %v1633 = vsub.f32 %v1557, %v1593
  %v1634 = vsub.f32 %v1558, %v1593
  %v1635 = vsub.f32 %v1559, %v1593
  %v1636 = vsub.f32 %v1560, %v1593
  %v1637 = vsub.f32 %v1561, %v1593
  %v1638 = vsub.f32 %v1562, %v1593
  %v1639 = vsub.f32 %v1563, %v1593
  %v1640 = vsub.f32 %v1564, %v1593
  %v1641 = vsub.f32 %v1565, %v1593
  %v1642 = vsub.f32 %v1566, %v1593
  %v1643 = vsub.f32 %v1567, %v1593
  %v1644 = vsub.f32 %v1568, %v1593
  %v1645 = vsub.f32 %v1569, %v1593
  %v1646 = vsub.f32 %v1570, %v1593
  %v1647 = vadd.f32 %v1631, 1e-05
  %v1648 = vrsqrt.pop %v1647
  %v1649 = vmul.f32 %v1632, %v1648
  %v1650 = vmul.f32 %v1633, %v1648
  %v1651 = vmul.f32 %v1634, %v1648
  %v1652 = vmul.f32 %v1635, %v1648
  %v1653 = vmul.f32 %v1636, %v1648
  %v1654 = vmul.f32 %v1637, %v1648
  %v1655 = vmul.f32 %v1638, %v1648
  %v1656 = vmul.f32 %v1639, %v1648
  %v1657 = vmul.f32 %v1640, %v1648
  %v1658 = vmul.f32 %v1641, %v1648
  %v1659 = vmul.f32 %v1642, %v1648
  %v1660 = vmul.f32 %v1643, %v1648
  %v1661 = vmul.f32 %v1644, %v1648
  %v1662 = vmul.f32 %v1645, %v1648
  %v1663 = vmul.f32 %v1646, %v1648
  %v1664 = vlaneseq
  %v1665 = vshrl.u32 %v1664, 7
  %v1666 = vsub.s32 0, %v1665
  %v1667 = vrot.slane %v1571, %v1666
  %v1668 = vmul.f32 %v1649, %v1667
  %v1669 = vmul.f32 %v1650, %v1667
  %v1670 = vmul.f32 %v1651, %v1667
  %v1671 = vmul.f32 %v1652, %v1667
  %v1672 = vmul.f32 %v1653, %v1667
  %v1673 = vmul.f32 %v1654, %v1667
  %v1674 = vmul.f32 %v1655, %v1667
  %v1675 = vmul.f32 %v1656, %v1667
  %v1676 = vmul.f32 %v1657, %v1667
  %v1677 = vmul.f32 %v1658, %v1667
  %v1678 = vmul.f32 %v1659, %v1667
  %v1679 = vmul.f32 %v1660, %v1667
  %v1680 = vmul.f32 %v1661, %v1667
  %v1681 = vmul.f32 %v1662, %v1667
  %v1682 = vmul.f32 %v1663, %v1667
  %v1683 = vlaneseq
  %v1684 = vshrl.u32 %v1683, 7
  %v1685 = vsub.s32 0, %v1684
  %v1686 = vrot.slane %v1572, %v1685
  %v1687 = vadd.f32 %v1668, %v1686
  %v1688 = vadd.f32 %v1669, %v1686
  %v1689 = vadd.f32 %v1670, %v1686
  %v1690 = vadd.f32 %v1671, %v1686
  %v1691 = vadd.f32 %v1672, %v1686
  %v1692 = vadd.f32 %v1673, %v1686
  %v1693 = vadd.f32 %v1674, %v1686
  %v1694 = vadd.f32 %v1675, %v1686
  %v1695 = vadd.f32 %v1676, %v1686
  %v1696 = vadd.f32 %v1677, %v1686
  %v1697 = vadd.f32 %v1678, %v1686
  %v1698 = vadd.f32 %v1679, %v1686
  %v1699 = vadd.f32 %v1680, %v1686
  %v1700 = vadd.f32 %v1681, %v1686
  %v1701 = vadd.f32 %v1682, %v1686
  %v1702 = vpack.c.bf16 %v1688, %v1687
  %v1703 = vpack.c.bf16 %v1690, %v1689
  %v1704 = vpack.c.bf16 %v1692, %v1691
  %v1705 = vpack.c.bf16 %v1694, %v1693
  %v1706 = vpack.c.bf16 %v1696, %v1695
  %v1707 = vpack.c.bf16 %v1698, %v1697
  %v1708 = vpack.c.bf16 %v1700, %v1699
  %v1709 = vpack.c.bf16 %v1701, %v1701
  %v1710 = vld [vmem:[%s5] sm:$0xff]
  %v1711 = vld [vmem:[%s5 + $0x8] sm:$0xff]
  %v1712 = vld [vmem:[%s5 + $0x10] sm:$0xff]
  %v1713 = vld [vmem:[%s5 + $0x18] sm:$0xff]
  %v1714 = vld [vmem:[%s5 + $0x20] sm:$0xff]
  %v1715 = vld [vmem:[%s5 + $0x28] sm:$0xff]
  %v1716 = vld [vmem:[%s5 + $0x30] sm:$0xff]
  %v1717 = vld [vmem:[%s5 + $0x38] sm:$0xff]
  %v1718 = vld [vmem:[%s5 + $0x40] sm:$0xff]
  %v1719 = vld [vmem:[%s5 + $0x48] sm:$0xff]
  %v1720 = vld [vmem:[%s5 + $0x50] sm:$0xff]
  %v1721 = vld [vmem:[%s5 + $0x58] sm:$0xff]
  %v1722 = vld [vmem:[%s5 + $0x60] sm:$0xff]
  %v1723 = vld [vmem:[%s5 + $0x68] sm:$0xff]
  %v1724 = vld [vmem:[%s5 + $0x70] sm:$0xff]
  %v1725 = vld [vmem:[%s5 + $0x78] sm:$0xff]
  %v1726 = vld [vmem:[%s5 + $0x80] sm:$0xff]
  %v1727 = vld [vmem:[%s5 + $0x88] sm:$0xff]
  %v1728 = vld [vmem:[%s5 + $0x90] sm:$0xff]
  %v1729 = vld [vmem:[%s5 + $0x98] sm:$0xff]
  %v1730 = vld [vmem:[%s5 + $0xa0] sm:$0xff]
  %v1731 = vld [vmem:[%s5 + $0xa8] sm:$0xff]
  %v1732 = vld [vmem:[%s5 + $0xb0] sm:$0xff]
  %v1733 = vld [vmem:[%s5 + $0xb8] sm:$0xff]
  %v1734 = vld [vmem:[%s5 + $0xc0] sm:$0xff]
  %v1735 = vld [vmem:[%s5 + $0xc8] sm:$0xff]
  %v1736 = vld [vmem:[%s5 + $0xd0] sm:$0xff]
  %v1737 = vld [vmem:[%s5 + $0xd8] sm:$0xff]
  %v1738 = vld [vmem:[%s5 + $0xe0] sm:$0xff]
  %v1739 = vld [vmem:[%s5 + $0xe8] sm:$0xff]
  %v1740 = vld [vmem:[%s5 + $0xf0] sm:$0xff]
  %v1741 = vld [vmem:[%s5 + $0xf8] sm:$0xff]
  %v1742 = vld [vmem:[%s5 + $0x100] sm:$0xff]
  %v1743 = vld [vmem:[%s5 + $0x108] sm:$0xff]
  %v1744 = vld [vmem:[%s5 + $0x110] sm:$0xff]
  %v1745 = vld [vmem:[%s5 + $0x118] sm:$0xff]
  %v1746 = vld [vmem:[%s5 + $0x120] sm:$0xff]
  %v1747 = vld [vmem:[%s5 + $0x128] sm:$0xff]
  %v1748 = vld [vmem:[%s5 + $0x130] sm:$0xff]
  %v1749 = vld [vmem:[%s5 + $0x138] sm:$0xff]
  %v1750 = vld [vmem:[%s5 + $0x140] sm:$0xff]
  %v1751 = vld [vmem:[%s5 + $0x148] sm:$0xff]
  %v1752 = vld [vmem:[%s5 + $0x150] sm:$0xff]
  %v1753 = vld [vmem:[%s5 + $0x158] sm:$0xff]
  %v1754 = vld [vmem:[%s5 + $0x160] sm:$0xff]
  %v1755 = vld [vmem:[%s5 + $0x168] sm:$0xff]
  %v1756 = vld [vmem:[%s5 + $0x170] sm:$0xff]
  %v1757 = vld [vmem:[%s5 + $0x178] sm:$0xff]
  %v1806 = vunpack.c.l.b16 %v1710
  %v1807 = vunpack.c.h.b16 %v1710
  %v1808 = vunpack.c.l.b16 %v1711
  %v1809 = vunpack.c.h.b16 %v1711
  %v1810 = vunpack.c.l.b16 %v1712
  %v1811 = vunpack.c.h.b16 %v1712
  %v1812 = vunpack.c.l.b16 %v1713
  %v1813 = vunpack.c.h.b16 %v1713
  %v1814 = vunpack.c.l.b16 %v1714
  %v1815 = vunpack.c.h.b16 %v1714
  %v1816 = vunpack.c.l.b16 %v1715
  %v1817 = vunpack.c.h.b16 %v1715
  %v1818 = vunpack.c.l.b16 %v1716
  %v1819 = vunpack.c.h.b16 %v1716
  %v1820 = vunpack.c.l.b16 %v1717
  %v1821 = vunpack.c.h.b16 %v1717
  %v1822 = vunpack.c.l.b16 %v1718
  %v1823 = vunpack.c.h.b16 %v1718
  %v1824 = vunpack.c.l.b16 %v1719
  %v1825 = vunpack.c.h.b16 %v1719
  %v1826 = vunpack.c.l.b16 %v1720
  %v1827 = vunpack.c.h.b16 %v1720
  %v1828 = vunpack.c.l.b16 %v1721
  %v1829 = vunpack.c.h.b16 %v1721
  %v1830 = vunpack.c.l.b16 %v1722
  %v1831 = vunpack.c.h.b16 %v1722
  %v1832 = vunpack.c.l.b16 %v1723
  %v1833 = vunpack.c.h.b16 %v1723
  %v1834 = vunpack.c.l.b16 %v1724
  %v1835 = vunpack.c.h.b16 %v1724
  %v1836 = vunpack.c.l.b16 %v1725
  %v1837 = vunpack.c.h.b16 %v1725
  %v1838 = vunpack.c.l.b16 %v1726
  %v1839 = vunpack.c.h.b16 %v1726
  %v1840 = vunpack.c.l.b16 %v1727
  %v1841 = vunpack.c.h.b16 %v1727
  %v1842 = vunpack.c.l.b16 %v1728
  %v1843 = vunpack.c.h.b16 %v1728
  %v1844 = vunpack.c.l.b16 %v1729
  %v1845 = vunpack.c.h.b16 %v1729
  %v1846 = vunpack.c.l.b16 %v1730
  %v1847 = vunpack.c.h.b16 %v1730
  %v1848 = vunpack.c.l.b16 %v1731
  %v1849 = vunpack.c.h.b16 %v1731
  %v1850 = vunpack.c.l.b16 %v1732
  %v1851 = vunpack.c.h.b16 %v1732
  %v1852 = vunpack.c.l.b16 %v1733
  %v1853 = vunpack.c.h.b16 %v1733
  %v1854 = vunpack.c.l.b16 %v1734
  %v1855 = vunpack.c.h.b16 %v1734
  %v1856 = vunpack.c.l.b16 %v1735
  %v1857 = vunpack.c.h.b16 %v1735
  %v1858 = vunpack.c.l.b16 %v1736
  %v1859 = vunpack.c.h.b16 %v1736
  %v1860 = vunpack.c.l.b16 %v1737
  %v1861 = vunpack.c.h.b16 %v1737
  %v1862 = vunpack.c.l.b16 %v1738
  %v1863 = vunpack.c.h.b16 %v1738
  %v1864 = vunpack.c.l.b16 %v1739
  %v1865 = vunpack.c.h.b16 %v1739
  %v1866 = vunpack.c.l.b16 %v1740
  %v1867 = vunpack.c.h.b16 %v1740
  %v1868 = vunpack.c.l.b16 %v1741
  %v1869 = vunpack.c.h.b16 %v1741
  %v1870 = vunpack.c.l.b16 %v1742
  %v1871 = vunpack.c.h.b16 %v1742
  %v1872 = vunpack.c.l.b16 %v1743
  %v1873 = vunpack.c.h.b16 %v1743
  %v1874 = vunpack.c.l.b16 %v1744
  %v1875 = vunpack.c.h.b16 %v1744
  %v1876 = vunpack.c.l.b16 %v1745
  %v1877 = vunpack.c.h.b16 %v1745
  %v1878 = vunpack.c.l.b16 %v1746
  %v1879 = vunpack.c.h.b16 %v1746
  %v1880 = vunpack.c.l.b16 %v1747
  %v1881 = vunpack.c.h.b16 %v1747
  %v1882 = vunpack.c.l.b16 %v1748
  %v1883 = vunpack.c.h.b16 %v1748
  %v1884 = vunpack.c.l.b16 %v1749
  %v1885 = vunpack.c.h.b16 %v1749
  %v1886 = vunpack.c.l.b16 %v1750
  %v1887 = vunpack.c.h.b16 %v1750
  %v1888 = vunpack.c.l.b16 %v1751
  %v1889 = vunpack.c.h.b16 %v1751
  %v1890 = vunpack.c.l.b16 %v1752
  %v1891 = vunpack.c.h.b16 %v1752
  %v1892 = vunpack.c.l.b16 %v1753
  %v1893 = vunpack.c.h.b16 %v1753
  %v1894 = vunpack.c.l.b16 %v1754
  %v1895 = vunpack.c.h.b16 %v1754
  %v1896 = vunpack.c.l.b16 %v1755
  %v1897 = vunpack.c.h.b16 %v1755
  %v1898 = vunpack.c.l.b16 %v1756
  %v1899 = vunpack.c.h.b16 %v1756
  %v1900 = vunpack.c.l.b16 %v1757
  %v1901 = vunpack.c.h.b16 %v1757
  %v1902 = vpack.c.b16 %v1812, %v1806
  %v1903 = vpack.c.b16 %v1813, %v1807
  %v1904 = vpack.c.b16 %v1814, %v1808
  %v1905 = vpack.c.b16 %v1815, %v1809
  %v1906 = vpack.c.b16 %v1816, %v1810
  %v1907 = vpack.c.b16 %v1817, %v1811
  %v1908 = vpack.c.b16 %v1824, %v1818
  %v1909 = vpack.c.b16 %v1825, %v1819
  %v1910 = vpack.c.b16 %v1826, %v1820
  %v1911 = vpack.c.b16 %v1827, %v1821
  %v1912 = vpack.c.b16 %v1828, %v1822
  %v1913 = vpack.c.b16 %v1829, %v1823
  %v1914 = vpack.c.b16 %v1836, %v1830
  %v1915 = vpack.c.b16 %v1837, %v1831
  %v1916 = vpack.c.b16 %v1838, %v1832
  %v1917 = vpack.c.b16 %v1839, %v1833
  %v1918 = vpack.c.b16 %v1840, %v1834
  %v1919 = vpack.c.b16 %v1841, %v1835
  %v1920 = vpack.c.b16 %v1848, %v1842
  %v1921 = vpack.c.b16 %v1849, %v1843
  %v1922 = vpack.c.b16 %v1850, %v1844
  %v1923 = vpack.c.b16 %v1851, %v1845
  %v1924 = vpack.c.b16 %v1852, %v1846
  %v1925 = vpack.c.b16 %v1853, %v1847
  %v1926 = vpack.c.b16 %v1860, %v1854
  %v1927 = vpack.c.b16 %v1861, %v1855
  %v1928 = vpack.c.b16 %v1862, %v1856
  %v1929 = vpack.c.b16 %v1863, %v1857
  %v1930 = vpack.c.b16 %v1864, %v1858
  %v1931 = vpack.c.b16 %v1865, %v1859
  %v1932 = vpack.c.b16 %v1872, %v1866
  %v1933 = vpack.c.b16 %v1873, %v1867
  %v1934 = vpack.c.b16 %v1874, %v1868
  %v1935 = vpack.c.b16 %v1875, %v1869
  %v1936 = vpack.c.b16 %v1876, %v1870
  %v1937 = vpack.c.b16 %v1877, %v1871
  %v1938 = vpack.c.b16 %v1884, %v1878
  %v1939 = vpack.c.b16 %v1885, %v1879
  %v1940 = vpack.c.b16 %v1886, %v1880
  %v1941 = vpack.c.b16 %v1887, %v1881
  %v1942 = vpack.c.b16 %v1888, %v1882
  %v1943 = vpack.c.b16 %v1889, %v1883
  %v1944 = vpack.c.b16 %v1896, %v1890
  %v1945 = vpack.c.b16 %v1897, %v1891
  %v1946 = vpack.c.b16 %v1898, %v1892
  %v1947 = vpack.c.b16 %v1899, %v1893
  %v1948 = vpack.c.b16 %v1900, %v1894
  %v1949 = vpack.c.b16 %v1901, %v1895
  %1998 = vmatprep.subr.bf16.mxu0 %v1945
  %1999 = vmatpush1.bf16.msra.mxu0 %v1944
  %2000 = vmatprep.subr.bf16.mxu0 %v1939
  %2001 = vmatpush1.bf16.msra.mxu0 %v1938
  %2002 = vmatprep.subr.bf16.mxu0 %v1933
  %2003 = vmatpush1.bf16.msra.mxu0 %v1932
  %2004 = vmatprep.subr.bf16.mxu0 %v1927
  %2005 = vmatpush1.bf16.msra.mxu0 %v1926
  %2006 = vmatprep.subr.bf16.mxu0 %v1921
  %2007 = vmatpush1.bf16.msra.mxu0 %v1920
  %2008 = vmatprep.subr.bf16.mxu0 %v1915
  %2009 = vmatpush1.bf16.msra.mxu0 %v1914
  %2010 = vmatprep.subr.bf16.mxu0 %v1909
  %2011 = vmatpush1.bf16.msra.mxu0 %v1908
  %2012 = vmatprep.subr.bf16.mxu0 %v1903
  %2013 = vmatpush1.bf16.msra.mxu0 %v1902
  %2014 = vmatprep.subr.bf16.mxu0 0
  %2015 = vmatpush2.bf16.msra.mxu0 0
  %2016 = vmatprep.subr.bf16.mxu0 0
  %2017 = vmatpush2.bf16.msra.mxu0 0
  %2018 = vmatprep.subr.bf16.mxu0 0
  %2019 = vmatpush2.bf16.msra.mxu0 0
  %2020 = vmatprep.subr.bf16.mxu0 0
  %2021 = vmatpush2.bf16.msra.mxu0 0
  %2022 = vmatprep.subr.bf16.mxu0 0
  %2023 = vmatpush2.bf16.msra.mxu0 0
  %2024 = vmatprep.subr.bf16.mxu0 0
  %2025 = vmatpush2.bf16.msra.mxu0 0
  %2026 = vmatprep.subr.bf16.mxu0 0
  %2027 = vmatpush2.bf16.msra.mxu0 0
  %2028 = vmatprep.subr.bf16.mxu0 0
  %2029 = vmatpush2.bf16.msra.mxu0 0
  %2030 = vmatprep.mubr.bf16.mxu0 0
  %2031 = vmatmul.mubr.bf16.gmra.mxu0 %v1702
  %v2032 = vpop.f32.mrf.mxu0
  %v2033 = vadd.f32 0.0, %v2032
  %v2034 = vpop.f32.mrf.mxu0
  %v2035 = vadd.f32 0.0, %v2034
  %v2036 = vpop.f32.mrf.mxu0
  %v2037 = vadd.f32 0.0, %v2036
  %v2038 = vpop.f32.mrf.mxu0
  %v2039 = vadd.f32 0.0, %v2038
  %2040 = vmatprep.mubr.bf16.mxu0 0
  %2041 = vmatmul.mubr.bf16.gmra.mxu0 %v1703
  %v2042 = vpop.f32.mrf.mxu0
  %v2043 = vadd.f32 0.0, %v2042
  %v2044 = vpop.f32.mrf.mxu0
  %v2045 = vadd.f32 0.0, %v2044
  %v2046 = vpop.f32.mrf.mxu0
  %v2047 = vadd.f32 0.0, %v2046
  %v2048 = vpop.f32.mrf.mxu0
  %v2049 = vadd.f32 0.0, %v2048
  %2050 = vmatprep.mubr.bf16.mxu0 0
  %2051 = vmatmul.mubr.bf16.gmra.mxu0 %v1704
  %v2052 = vpop.f32.mrf.mxu0
  %v2053 = vadd.f32 0.0, %v2052
  %v2054 = vpop.f32.mrf.mxu0
  %v2055 = vadd.f32 0.0, %v2054
  %v2056 = vpop.f32.mrf.mxu0
  %v2057 = vadd.f32 0.0, %v2056
  %v2058 = vpop.f32.mrf.mxu0
  %v2059 = vadd.f32 0.0, %v2058
  %2060 = vmatprep.mubr.bf16.mxu0 0
  %2061 = vmatmul.mubr.bf16.gmra.mxu0 %v1705
  %v2062 = vpop.f32.mrf.mxu0
  %v2063 = vadd.f32 0.0, %v2062
  %v2064 = vpop.f32.mrf.mxu0
  %v2065 = vadd.f32 0.0, %v2064
  %v2066 = vpop.f32.mrf.mxu0
  %v2067 = vadd.f32 0.0, %v2066
  %v2068 = vpop.f32.mrf.mxu0
  %v2069 = vadd.f32 0.0, %v2068
  %2070 = vmatprep.mubr.bf16.mxu0 0
  %2071 = vmatmul.mubr.bf16.gmra.mxu0 %v1706
  %v2072 = vpop.f32.mrf.mxu0
  %v2073 = vadd.f32 0.0, %v2072
  %v2074 = vpop.f32.mrf.mxu0
  %v2075 = vadd.f32 0.0, %v2074
  %v2076 = vpop.f32.mrf.mxu0
  %v2077 = vadd.f32 0.0, %v2076
  %v2078 = vpop.f32.mrf.mxu0
  %v2079 = vadd.f32 0.0, %v2078
  %2080 = vmatprep.mubr.bf16.mxu0 0
  %2081 = vmatmul.mubr.bf16.gmra.mxu0 %v1707
  %v2082 = vpop.f32.mrf.mxu0
  %v2083 = vadd.f32 0.0, %v2082
  %v2084 = vpop.f32.mrf.mxu0
  %v2085 = vadd.f32 0.0, %v2084
  %v2086 = vpop.f32.mrf.mxu0
  %v2087 = vadd.f32 0.0, %v2086
  %v2088 = vpop.f32.mrf.mxu0
  %v2089 = vadd.f32 0.0, %v2088
  %2090 = vmatprep.mubr.bf16.mxu0 0
  %2091 = vmatmul.mubr.bf16.gmra.mxu0 %v1708
  %v2092 = vpop.f32.mrf.mxu0
  %v2093 = vadd.f32 0.0, %v2092
  %v2094 = vpop.f32.mrf.mxu0
  %v2095 = vadd.f32 0.0, %v2094
  %v2096 = vpop.f32.mrf.mxu0
  %v2097 = vadd.f32 0.0, %v2096
  %v2098 = vpop.f32.mrf.mxu0
  %v2099 = vadd.f32 0.0, %v2098
  %2100 = vmatprep.mubr.bf16.mxu0 0
  %2101 = vmatmul.mubr.bf16.gmra.mxu0 %v1709
  %v2102 = vpop.f32.mrf.mxu0
  %v2103 = vadd.f32 0.0, %v2102
  %v2104 = vpop.f32.mrf.mxu0
  %v2105 = vadd.f32 0.0, %v2104
  %v2106 = vpop.f32.mrf.mxu0
  %v2107 = vpop.f32.mrf.mxu0
  %2108 = vdwg.mxu0
  %2109 = vmatprep.subr.bf16.mxu0 %v1947
  %2110 = vmatpush1.bf16.msra.mxu0 %v1946
  %2111 = vmatprep.subr.bf16.mxu0 %v1941
  %2112 = vmatpush1.bf16.msra.mxu0 %v1940
  %2113 = vmatprep.subr.bf16.mxu0 %v1935
  %2114 = vmatpush1.bf16.msra.mxu0 %v1934
  %2115 = vmatprep.subr.bf16.mxu0 %v1929
  %2116 = vmatpush1.bf16.msra.mxu0 %v1928
  %2117 = vmatprep.subr.bf16.mxu0 %v1923
  %2118 = vmatpush1.bf16.msra.mxu0 %v1922
  %2119 = vmatprep.subr.bf16.mxu0 %v1917
  %2120 = vmatpush1.bf16.msra.mxu0 %v1916
  %2121 = vmatprep.subr.bf16.mxu0 %v1911
  %2122 = vmatpush1.bf16.msra.mxu0 %v1910
  %2123 = vmatprep.subr.bf16.mxu0 %v1905
  %2124 = vmatpush1.bf16.msra.mxu0 %v1904
  %2125 = vmatprep.subr.bf16.mxu0 0
  %2126 = vmatpush2.bf16.msra.mxu0 0
  %2127 = vmatprep.subr.bf16.mxu0 0
  %2128 = vmatpush2.bf16.msra.mxu0 0
  %2129 = vmatprep.subr.bf16.mxu0 0
  %2130 = vmatpush2.bf16.msra.mxu0 0
  %2131 = vmatprep.subr.bf16.mxu0 0
  %2132 = vmatpush2.bf16.msra.mxu0 0
  %2133 = vmatprep.subr.bf16.mxu0 0
  %2134 = vmatpush2.bf16.msra.mxu0 0
  %2135 = vmatprep.subr.bf16.mxu0 0
  %2136 = vmatpush2.bf16.msra.mxu0 0
  %2137 = vmatprep.subr.bf16.mxu0 0
  %2138 = vmatpush2.bf16.msra.mxu0 0
  %2139 = vmatprep.subr.bf16.mxu0 0
  %2140 = vmatpush2.bf16.msra.mxu0 0
  %2141 = vmatprep.mubr.bf16.mxu0 0
  %2142 = vmatmul.mubr.bf16.gmra.mxu0 %v1702
  %v2143 = vpop.f32.mrf.mxu0
  %v2144 = vadd.f32 0.0, %v2143
  %v2145 = vpop.f32.mrf.mxu0
  %v2146 = vadd.f32 0.0, %v2145
  %v2147 = vpop.f32.mrf.mxu0
  %v2148 = vadd.f32 0.0, %v2147
  %v2149 = vpop.f32.mrf.mxu0
  %v2150 = vadd.f32 0.0, %v2149
  %2151 = vmatprep.mubr.bf16.mxu0 0
  %2152 = vmatmul.mubr.bf16.gmra.mxu0 %v1703
  %v2153 = vpop.f32.mrf.mxu0
  %v2154 = vadd.f32 0.0, %v2153
  %v2155 = vpop.f32.mrf.mxu0
  %v2156 = vadd.f32 0.0, %v2155
  %v2157 = vpop.f32.mrf.mxu0
  %v2158 = vadd.f32 0.0, %v2157
  %v2159 = vpop.f32.mrf.mxu0
  %v2160 = vadd.f32 0.0, %v2159
  %2161 = vmatprep.mubr.bf16.mxu0 0
  %2162 = vmatmul.mubr.bf16.gmra.mxu0 %v1704
  %v2163 = vpop.f32.mrf.mxu0
  %v2164 = vadd.f32 0.0, %v2163
  %v2165 = vpop.f32.mrf.mxu0
  %v2166 = vadd.f32 0.0, %v2165
  %v2167 = vpop.f32.mrf.mxu0
  %v2168 = vadd.f32 0.0, %v2167
  %v2169 = vpop.f32.mrf.mxu0
  %v2170 = vadd.f32 0.0, %v2169
  %2171 = vmatprep.mubr.bf16.mxu0 0
  %2172 = vmatmul.mubr.bf16.gmra.mxu0 %v1705
  %v2173 = vpop.f32.mrf.mxu0
  %v2174 = vadd.f32 0.0, %v2173
  %v2175 = vpop.f32.mrf.mxu0
  %v2176 = vadd.f32 0.0, %v2175
  %v2177 = vpop.f32.mrf.mxu0
  %v2178 = vadd.f32 0.0, %v2177
  %v2179 = vpop.f32.mrf.mxu0
  %v2180 = vadd.f32 0.0, %v2179
  %2181 = vmatprep.mubr.bf16.mxu0 0
  %2182 = vmatmul.mubr.bf16.gmra.mxu0 %v1706
  %v2183 = vpop.f32.mrf.mxu0
  %v2184 = vadd.f32 0.0, %v2183
  %v2185 = vpop.f32.mrf.mxu0
  %v2186 = vadd.f32 0.0, %v2185
  %v2187 = vpop.f32.mrf.mxu0
  %v2188 = vadd.f32 0.0, %v2187
  %v2189 = vpop.f32.mrf.mxu0
  %v2190 = vadd.f32 0.0, %v2189
  %2191 = vmatprep.mubr.bf16.mxu0 0
  %2192 = vmatmul.mubr.bf16.gmra.mxu0 %v1707
  %v2193 = vpop.f32.mrf.mxu0
  %v2194 = vadd.f32 0.0, %v2193
  %v2195 = vpop.f32.mrf.mxu0
  %v2196 = vadd.f32 0.0, %v2195
  %v2197 = vpop.f32.mrf.mxu0
  %v2198 = vadd.f32 0.0, %v2197
  %v2199 = vpop.f32.mrf.mxu0
  %v2200 = vadd.f32 0.0, %v2199
  %2201 = vmatprep.mubr.bf16.mxu0 0
  %2202 = vmatmul.mubr.bf16.gmra.mxu0 %v1708
  %v2203 = vpop.f32.mrf.mxu0
  %v2204 = vadd.f32 0.0, %v2203
  %v2205 = vpop.f32.mrf.mxu0
  %v2206 = vadd.f32 0.0, %v2205
  %v2207 = vpop.f32.mrf.mxu0
  %v2208 = vadd.f32 0.0, %v2207
  %v2209 = vpop.f32.mrf.mxu0
  %v2210 = vadd.f32 0.0, %v2209
  %2211 = vmatprep.mubr.bf16.mxu0 0
  %2212 = vmatmul.mubr.bf16.gmra.mxu0 %v1709
  %v2213 = vpop.f32.mrf.mxu0
  %v2214 = vadd.f32 0.0, %v2213
  %v2215 = vpop.f32.mrf.mxu0
  %v2216 = vadd.f32 0.0, %v2215
  %v2217 = vpop.f32.mrf.mxu0
  %v2218 = vpop.f32.mrf.mxu0
  %2219 = vdwg.mxu0
  %2220 = vmatprep.subr.bf16.mxu0 %v1949
  %2221 = vmatpush1.bf16.msra.mxu0 %v1948
  %2222 = vmatprep.subr.bf16.mxu0 %v1943
  %2223 = vmatpush1.bf16.msra.mxu0 %v1942
  %2224 = vmatprep.subr.bf16.mxu0 %v1937
  %2225 = vmatpush1.bf16.msra.mxu0 %v1936
  %2226 = vmatprep.subr.bf16.mxu0 %v1931
  %2227 = vmatpush1.bf16.msra.mxu0 %v1930
  %2228 = vmatprep.subr.bf16.mxu0 %v1925
  %2229 = vmatpush1.bf16.msra.mxu0 %v1924
  %2230 = vmatprep.subr.bf16.mxu0 %v1919
  %2231 = vmatpush1.bf16.msra.mxu0 %v1918
  %2232 = vmatprep.subr.bf16.mxu0 %v1913
  %2233 = vmatpush1.bf16.msra.mxu0 %v1912
  %2234 = vmatprep.subr.bf16.mxu0 %v1907
  %2235 = vmatpush1.bf16.msra.mxu0 %v1906
  %2236 = vmatprep.subr.bf16.mxu0 0
  %2237 = vmatpush2.bf16.msra.mxu0 0
  %2238 = vmatprep.subr.bf16.mxu0 0
  %2239 = vmatpush2.bf16.msra.mxu0 0
  %2240 = vmatprep.subr.bf16.mxu0 0
  %2241 = vmatpush2.bf16.msra.mxu0 0
  %2242 = vmatprep.subr.bf16.mxu0 0
  %2243 = vmatpush2.bf16.msra.mxu0 0
  %2244 = vmatprep.subr.bf16.mxu0 0
  %2245 = vmatpush2.bf16.msra.mxu0 0
  %2246 = vmatprep.subr.bf16.mxu0 0
  %2247 = vmatpush2.bf16.msra.mxu0 0
  %2248 = vmatprep.subr.bf16.mxu0 0
  %2249 = vmatpush2.bf16.msra.mxu0 0
  %2250 = vmatprep.subr.bf16.mxu0 0
  %2251 = vmatpush2.bf16.msra.mxu0 0
  %2252 = vmatprep.mubr.bf16.mxu0 0
  %2253 = vmatmul.mubr.bf16.gmra.mxu0 %v1702
  %v2254 = vpop.f32.mrf.mxu0
  %v2255 = vadd.f32 0.0, %v2254
  %v2256 = vpop.f32.mrf.mxu0
  %v2257 = vadd.f32 0.0, %v2256
  %v2258 = vpop.f32.mrf.mxu0
  %v2259 = vadd.f32 0.0, %v2258
  %v2260 = vpop.f32.mrf.mxu0
  %v2261 = vadd.f32 0.0, %v2260
  %2262 = vmatprep.mubr.bf16.mxu0 0
  %2263 = vmatmul.mubr.bf16.gmra.mxu0 %v1703
  %v2264 = vpop.f32.mrf.mxu0
  %v2265 = vadd.f32 0.0, %v2264
  %v2266 = vpop.f32.mrf.mxu0
  %v2267 = vadd.f32 0.0, %v2266
  %v2268 = vpop.f32.mrf.mxu0
  %v2269 = vadd.f32 0.0, %v2268
  %v2270 = vpop.f32.mrf.mxu0
  %v2271 = vadd.f32 0.0, %v2270
  %2272 = vmatprep.mubr.bf16.mxu0 0
  %2273 = vmatmul.mubr.bf16.gmra.mxu0 %v1704
  %v2274 = vpop.f32.mrf.mxu0
  %v2275 = vadd.f32 0.0, %v2274
  %v2276 = vpop.f32.mrf.mxu0
  %v2277 = vadd.f32 0.0, %v2276
  %v2278 = vpop.f32.mrf.mxu0
  %v2279 = vadd.f32 0.0, %v2278
  %v2280 = vpop.f32.mrf.mxu0
  %v2281 = vadd.f32 0.0, %v2280
  %2282 = vmatprep.mubr.bf16.mxu0 0
  %2283 = vmatmul.mubr.bf16.gmra.mxu0 %v1705
  %v2284 = vpop.f32.mrf.mxu0
  %v2285 = vadd.f32 0.0, %v2284
  %v2286 = vpop.f32.mrf.mxu0
  %v2287 = vadd.f32 0.0, %v2286
  %v2288 = vpop.f32.mrf.mxu0
  %v2289 = vadd.f32 0.0, %v2288
  %v2290 = vpop.f32.mrf.mxu0
  %v2291 = vadd.f32 0.0, %v2290
  %2292 = vmatprep.mubr.bf16.mxu0 0
  %2293 = vmatmul.mubr.bf16.gmra.mxu0 %v1706
  %v2294 = vpop.f32.mrf.mxu0
  %v2295 = vadd.f32 0.0, %v2294
  %v2296 = vpop.f32.mrf.mxu0
  %v2297 = vadd.f32 0.0, %v2296
  %v2298 = vpop.f32.mrf.mxu0
  %v2299 = vadd.f32 0.0, %v2298
  %v2300 = vpop.f32.mrf.mxu0
  %v2301 = vadd.f32 0.0, %v2300
  %2302 = vmatprep.mubr.bf16.mxu0 0
  %2303 = vmatmul.mubr.bf16.gmra.mxu0 %v1707
  %v2304 = vpop.f32.mrf.mxu0
  %v2305 = vadd.f32 0.0, %v2304
  %v2306 = vpop.f32.mrf.mxu0
  %v2307 = vadd.f32 0.0, %v2306
  %v2308 = vpop.f32.mrf.mxu0
  %v2309 = vadd.f32 0.0, %v2308
  %v2310 = vpop.f32.mrf.mxu0
  %v2311 = vadd.f32 0.0, %v2310
  %2312 = vmatprep.mubr.bf16.mxu0 0
  %2313 = vmatmul.mubr.bf16.gmra.mxu0 %v1708
  %v2314 = vpop.f32.mrf.mxu0
  %v2315 = vadd.f32 0.0, %v2314
  %v2316 = vpop.f32.mrf.mxu0
  %v2317 = vadd.f32 0.0, %v2316
  %v2318 = vpop.f32.mrf.mxu0
  %v2319 = vadd.f32 0.0, %v2318
  %v2320 = vpop.f32.mrf.mxu0
  %v2321 = vadd.f32 0.0, %v2320
  %2322 = vmatprep.mubr.bf16.mxu0 0
  %2323 = vmatmul.mubr.bf16.gmra.mxu0 %v1709
  %v2324 = vpop.f32.mrf.mxu0
  %v2325 = vadd.f32 0.0, %v2324
  %v2326 = vpop.f32.mrf.mxu0
  %v2327 = vadd.f32 0.0, %v2326
  %v2328 = vpop.f32.mrf.mxu0
  %v2329 = vpop.f32.mrf.mxu0
  %2330 = vdwg.mxu0
  %v2331 = vrot.slane %v2033, 7
  %v2332 = vrot.slane %v2035, 7
  %v2333 = vrot.slane %v2037, 7
  %v2334 = vrot.slane %v2039, 7
  %v2335 = vrot.slane %v2043, 7
  %v2336 = vrot.slane %v2045, 7
  %v2337 = vrot.slane %v2047, 7
  %v2338 = vrot.slane %v2049, 7
  %v2339 = vrot.slane %v2053, 7
  %v2340 = vrot.slane %v2055, 7
  %v2341 = vrot.slane %v2057, 7
  %v2342 = vrot.slane %v2059, 7
  %v2343 = vrot.slane %v2063, 7
  %v2344 = vrot.slane %v2065, 7
  %v2345 = vrot.slane %v2067, 7
  %v2346 = vrot.slane %v2069, 7
  %v2347 = vrot.slane %v2073, 7
  %v2348 = vrot.slane %v2075, 7
  %v2349 = vrot.slane %v2077, 7
  %v2350 = vrot.slane %v2079, 7
  %v2351 = vrot.slane %v2083, 7
  %v2352 = vrot.slane %v2085, 7
  %v2353 = vrot.slane %v2087, 7
  %v2354 = vrot.slane %v2089, 7
  %v2355 = vrot.slane %v2093, 7
  %v2356 = vrot.slane %v2095, 7
  %v2357 = vrot.slane %v2097, 7
  %v2358 = vrot.slane %v2099, 7
  %v2359 = vrot.slane %v2103, 7
  %v2360 = vrot.slane %v2105, 7
  %v2361 = vsel %vm1152, %v2357, %v2359
  %v2362 = vsel %vm1152, %v2358, %v2360
  %v2363 = vsel %vm1152, %v2355, %v2357
  %v2364 = vsel %vm1152, %v2356, %v2358
  %v2365 = vsel %vm1152, %v2353, %v2355
  %v2366 = vsel %vm1152, %v2354, %v2356
  %v2367 = vsel %vm1152, %v2351, %v2353
  %v2368 = vsel %vm1152, %v2352, %v2354
  %v2369 = vsel %vm1152, %v2349, %v2351
  %v2370 = vsel %vm1152, %v2350, %v2352
  %v2371 = vsel %vm1152, %v2347, %v2349
  %v2372 = vsel %vm1152, %v2348, %v2350
  %v2373 = vsel %vm1152, %v2345, %v2347
  %v2374 = vsel %vm1152, %v2346, %v2348
  %v2375 = vsel %vm1152, %v2343, %v2345
  %v2376 = vsel %vm1152, %v2344, %v2346
  %v2377 = vsel %vm1152, %v2341, %v2343
  %v2378 = vsel %vm1152, %v2342, %v2344
  %v2379 = vsel %vm1152, %v2339, %v2341
  %v2380 = vsel %vm1152, %v2340, %v2342
  %v2381 = vsel %vm1152, %v2337, %v2339
  %v2382 = vsel %vm1152, %v2338, %v2340
  %v2383 = vsel %vm1152, %v2335, %v2337
  %v2384 = vsel %vm1152, %v2336, %v2338
  %v2385 = vsel %vm1152, %v2333, %v2335
  %v2386 = vsel %vm1152, %v2334, %v2336
  %v2387 = vsel %vm1152, %v2331, %v2333
  %v2388 = vsel %vm1152, %v2332, %v2334
  %v2389 = vsel %vm1152, %v2359, %v2331
  %v2390 = vsel %vm1152, %v2360, %v2332
  %v2391 = vsel %vm1198, 0.0, %v2389
  %v2392 = vsel %vm1198, 0.0, %v2390
  %v2393 = vsel %vm1199, 0.0, %v2387
  %v2394 = vsel %vm1199, 0.0, %v2388
  %v2395 = vsel %vm1200, 0.0, %v2385
  %v2396 = vsel %vm1200, 0.0, %v2386
  %v2397 = vsel %vm1201, 0.0, %v2383
  %v2398 = vsel %vm1201, 0.0, %v2384
  %v2399 = vsel %vm1202, 0.0, %v2381
  %v2400 = vsel %vm1202, 0.0, %v2382
  %v2401 = vsel %vm1203, 0.0, %v2379
  %v2402 = vsel %vm1203, 0.0, %v2380
  %v2403 = vsel %vm1204, 0.0, %v2377
  %v2404 = vsel %vm1204, 0.0, %v2378
  %v2405 = vsel %vm1205, 0.0, %v2375
  %v2406 = vsel %vm1205, 0.0, %v2376
  %v2407 = vsel %vm1206, 0.0, %v2373
  %v2408 = vsel %vm1206, 0.0, %v2374
  %v2409 = vsel %vm1207, 0.0, %v2371
  %v2410 = vsel %vm1207, 0.0, %v2372
  %v2411 = vsel %vm1208, 0.0, %v2369
  %v2412 = vsel %vm1208, 0.0, %v2370
  %v2413 = vsel %vm1209, 0.0, %v2367
  %v2414 = vsel %vm1209, 0.0, %v2368
  %v2415 = vsel %vm1210, 0.0, %v2365
  %v2416 = vsel %vm1210, 0.0, %v2366
  %v2417 = vsel %vm1211, 0.0, %v2363
  %v2418 = vsel %vm1211, 0.0, %v2364
  %v2419 = vsel %vm1212, 0.0, %v2361
  %v2420 = vsel %vm1212, 0.0, %v2362
  %v2421 = vrot.slane %v2255, 1
  %v2422 = vrot.slane %v2257, 1
  %v2423 = vrot.slane %v2259, 1
  %v2424 = vrot.slane %v2261, 1
  %v2425 = vrot.slane %v2265, 1
  %v2426 = vrot.slane %v2267, 1
  %v2427 = vrot.slane %v2269, 1
  %v2428 = vrot.slane %v2271, 1
  %v2429 = vrot.slane %v2275, 1
  %v2430 = vrot.slane %v2277, 1
  %v2431 = vrot.slane %v2279, 1
  %v2432 = vrot.slane %v2281, 1
  %v2433 = vrot.slane %v2285, 1
  %v2434 = vrot.slane %v2287, 1
  %v2435 = vrot.slane %v2289, 1
  %v2436 = vrot.slane %v2291, 1
  %v2437 = vrot.slane %v2295, 1
  %v2438 = vrot.slane %v2297, 1
  %v2439 = vrot.slane %v2299, 1
  %v2440 = vrot.slane %v2301, 1
  %v2441 = vrot.slane %v2305, 1
  %v2442 = vrot.slane %v2307, 1
  %v2443 = vrot.slane %v2309, 1
  %v2444 = vrot.slane %v2311, 1
  %v2445 = vrot.slane %v2315, 1
  %v2446 = vrot.slane %v2317, 1
  %v2447 = vrot.slane %v2319, 1
  %v2448 = vrot.slane %v2321, 1
  %v2449 = vrot.slane %v2325, 1
  %v2450 = vrot.slane %v2327, 1
  %v2451 = vsel %vm1273, %v2447, %v2449
  %v2452 = vsel %vm1273, %v2448, %v2450
  %v2453 = vsel %vm1273, %v2445, %v2447
  %v2454 = vsel %vm1273, %v2446, %v2448
  %v2455 = vsel %vm1273, %v2443, %v2445
  %v2456 = vsel %vm1273, %v2444, %v2446
  %v2457 = vsel %vm1273, %v2441, %v2443
  %v2458 = vsel %vm1273, %v2442, %v2444
  %v2459 = vsel %vm1273, %v2439, %v2441
  %v2460 = vsel %vm1273, %v2440, %v2442
  %v2461 = vsel %vm1273, %v2437, %v2439
  %v2462 = vsel %vm1273, %v2438, %v2440
  %v2463 = vsel %vm1273, %v2435, %v2437
  %v2464 = vsel %vm1273, %v2436, %v2438
  %v2465 = vsel %vm1273, %v2433, %v2435
  %v2466 = vsel %vm1273, %v2434, %v2436
  %v2467 = vsel %vm1273, %v2431, %v2433
  %v2468 = vsel %vm1273, %v2432, %v2434
  %v2469 = vsel %vm1273, %v2429, %v2431
  %v2470 = vsel %vm1273, %v2430, %v2432
  %v2471 = vsel %vm1273, %v2427, %v2429
  %v2472 = vsel %vm1273, %v2428, %v2430
  %v2473 = vsel %vm1273, %v2425, %v2427
  %v2474 = vsel %vm1273, %v2426, %v2428
  %v2475 = vsel %vm1273, %v2423, %v2425
  %v2476 = vsel %vm1273, %v2424, %v2426
  %v2477 = vsel %vm1273, %v2421, %v2423
  %v2478 = vsel %vm1273, %v2422, %v2424
  %v2479 = vsel %vm1273, %v2449, %v2421
  %v2480 = vsel %vm1273, %v2450, %v2422
  %v2481 = vsel %vm1319, 0.0, %v2477
  %v2482 = vsel %vm1319, 0.0, %v2478
  %v2483 = vsel %vm1320, 0.0, %v2475
  %v2484 = vsel %vm1320, 0.0, %v2476
  %v2485 = vsel %vm1321, 0.0, %v2473
  %v2486 = vsel %vm1321, 0.0, %v2474
  %v2487 = vsel %vm1322, 0.0, %v2471
  %v2488 = vsel %vm1322, 0.0, %v2472
  %v2489 = vsel %vm1323, 0.0, %v2469
  %v2490 = vsel %vm1323, 0.0, %v2470
  %v2491 = vsel %vm1324, 0.0, %v2467
  %v2492 = vsel %vm1324, 0.0, %v2468
  %v2493 = vsel %vm1325, 0.0, %v2465
  %v2494 = vsel %vm1325, 0.0, %v2466
  %v2495 = vsel %vm1326, 0.0, %v2463
  %v2496 = vsel %vm1326, 0.0, %v2464
  %v2497 = vsel %vm1327, 0.0, %v2461
  %v2498 = vsel %vm1327, 0.0, %v2462
  %v2499 = vsel %vm1328, 0.0, %v2459
  %v2500 = vsel %vm1328, 0.0, %v2460
  %v2501 = vsel %vm1329, 0.0, %v2457
  %v2502 = vsel %vm1329, 0.0, %v2458
  %v2503 = vsel %vm1330, 0.0, %v2455
  %v2504 = vsel %vm1330, 0.0, %v2456
  %v2505 = vsel %vm1331, 0.0, %v2453
  %v2506 = vsel %vm1331, 0.0, %v2454
  %v2507 = vsel %vm1332, 0.0, %v2451
  %v2508 = vsel %vm1332, 0.0, %v2452
  %v2509 = vsel %vm1333, 0.0, %v2479
  %v2510 = vsel %vm1333, 0.0, %v2480
  %v2511 = vadd.f32 %v2144, %v2391
  %v2512 = vadd.f32 %v2146, %v2392
  %v2513 = vadd.f32 %v2148, %v2393
  %v2514 = vadd.f32 %v2150, %v2394
  %v2515 = vadd.f32 %v2154, %v2395
  %v2516 = vadd.f32 %v2156, %v2396
  %v2517 = vadd.f32 %v2158, %v2397
  %v2518 = vadd.f32 %v2160, %v2398
  %v2519 = vadd.f32 %v2164, %v2399
  %v2520 = vadd.f32 %v2166, %v2400
  %v2521 = vadd.f32 %v2168, %v2401
  %v2522 = vadd.f32 %v2170, %v2402
  %v2523 = vadd.f32 %v2174, %v2403
  %v2524 = vadd.f32 %v2176, %v2404
  %v2525 = vadd.f32 %v2178, %v2405
  %v2526 = vadd.f32 %v2180, %v2406
  %v2527 = vadd.f32 %v2184, %v2407
  %v2528 = vadd.f32 %v2186, %v2408
  %v2529 = vadd.f32 %v2188, %v2409
  %v2530 = vadd.f32 %v2190, %v2410
  %v2531 = vadd.f32 %v2194, %v2411
  %v2532 = vadd.f32 %v2196, %v2412
  %v2533 = vadd.f32 %v2198, %v2413
  %v2534 = vadd.f32 %v2200, %v2414
  %v2535 = vadd.f32 %v2204, %v2415
  %v2536 = vadd.f32 %v2206, %v2416
  %v2537 = vadd.f32 %v2208, %v2417
  %v2538 = vadd.f32 %v2210, %v2418
  %v2539 = vadd.f32 %v2214, %v2419
  %v2540 = vadd.f32 %v2216, %v2420
  %v2541 = vadd.f32 %v2511, %v2481
  %v2542 = vadd.f32 %v2512, %v2482
  %v2543 = vadd.f32 %v2513, %v2483
  %v2544 = vadd.f32 %v2514, %v2484
  %v2545 = vadd.f32 %v2515, %v2485
  %v2546 = vadd.f32 %v2516, %v2486
  %v2547 = vadd.f32 %v2517, %v2487
  %v2548 = vadd.f32 %v2518, %v2488
  %v2549 = vadd.f32 %v2519, %v2489
  %v2550 = vadd.f32 %v2520, %v2490
  %v2551 = vadd.f32 %v2521, %v2491
  %v2552 = vadd.f32 %v2522, %v2492
  %v2553 = vadd.f32 %v2523, %v2493
  %v2554 = vadd.f32 %v2524, %v2494
  %v2555 = vadd.f32 %v2525, %v2495
  %v2556 = vadd.f32 %v2526, %v2496
  %v2557 = vadd.f32 %v2527, %v2497
  %v2558 = vadd.f32 %v2528, %v2498
  %v2559 = vadd.f32 %v2529, %v2499
  %v2560 = vadd.f32 %v2530, %v2500
  %v2561 = vadd.f32 %v2531, %v2501
  %v2562 = vadd.f32 %v2532, %v2502
  %v2563 = vadd.f32 %v2533, %v2503
  %v2564 = vadd.f32 %v2534, %v2504
  %v2565 = vadd.f32 %v2535, %v2505
  %v2566 = vadd.f32 %v2536, %v2506
  %v2567 = vadd.f32 %v2537, %v2507
  %v2568 = vadd.f32 %v2538, %v2508
  %v2569 = vadd.f32 %v2539, %v2509
  %v2570 = vadd.f32 %v2540, %v2510
  %v2571 = vld [vmem:[%s6] sm:$0x3]
  %v2573 = vlaneseq
  %v2574 = vshrl.u32 %v2573, 7
  %v2575 = vsub.s32 0, %v2574
  %v2576 = vrot.slane %v2571, %v2575
  %v2577 = vlaneseq
  %v2578 = vshrl.u32 %v2577, 7
  %v2579 = vsub.s32 1, %v2578
  %v2580 = vrot.slane %v2571, %v2579
  %v2583 = vadd.f32 %v2541, %v2576
  %v2584 = vadd.f32 %v2542, %v2580
  %v2585 = vadd.f32 %v2543, %v2576
  %v2586 = vadd.f32 %v2544, %v2580
  %v2587 = vadd.f32 %v2545, %v2576
  %v2588 = vadd.f32 %v2546, %v2580
  %v2589 = vadd.f32 %v2547, %v2576
  %v2590 = vadd.f32 %v2548, %v2580
  %v2591 = vadd.f32 %v2549, %v2576
  %v2592 = vadd.f32 %v2550, %v2580
  %v2593 = vadd.f32 %v2551, %v2576
  %v2594 = vadd.f32 %v2552, %v2580
  %v2595 = vadd.f32 %v2553, %v2576
  %v2596 = vadd.f32 %v2554, %v2580
  %v2597 = vadd.f32 %v2555, %v2576
  %v2598 = vadd.f32 %v2556, %v2580
  %v2599 = vadd.f32 %v2557, %v2576
  %v2600 = vadd.f32 %v2558, %v2580
  %v2601 = vadd.f32 %v2559, %v2576
  %v2602 = vadd.f32 %v2560, %v2580
  %v2603 = vadd.f32 %v2561, %v2576
  %v2604 = vadd.f32 %v2562, %v2580
  %v2605 = vadd.f32 %v2563, %v2576
  %v2606 = vadd.f32 %v2564, %v2580
  %v2607 = vadd.f32 %v2565, %v2576
  %v2608 = vadd.f32 %v2566, %v2580
  %v2609 = vadd.f32 %v2567, %v2576
  %v2610 = vadd.f32 %v2568, %v2580
  %v2611 = vadd.f32 %v2569, %v2576
  %v2612 = vadd.f32 %v2570, %v2580
  %v2613 = vxor.u32 %v2584, 2147483648
  %v2614 = vxor.u32 %v2586, 2147483648
  %v2615 = vxor.u32 %v2588, 2147483648
  %v2616 = vxor.u32 %v2590, 2147483648
  %v2617 = vxor.u32 %v2592, 2147483648
  %v2618 = vxor.u32 %v2594, 2147483648
  %v2619 = vxor.u32 %v2596, 2147483648
  %v2620 = vxor.u32 %v2598, 2147483648
  %v2621 = vxor.u32 %v2600, 2147483648
  %v2622 = vxor.u32 %v2602, 2147483648
  %v2623 = vxor.u32 %v2604, 2147483648
  %v2624 = vxor.u32 %v2606, 2147483648
  %v2625 = vxor.u32 %v2608, 2147483648
  %v2626 = vxor.u32 %v2610, 2147483648
  %v2627 = vxor.u32 %v2612, 2147483648
  %v2628 = vmul.f32 %v2613, 1.442695
  %v2629 = vpow.pop %v2628
  %v2630 = vmul.f32 %v2614, 1.442695
  %v2631 = vpow.pop %v2630
  %v2632 = vmul.f32 %v2615, 1.442695
  %v2633 = vpow.pop %v2632
  %v2634 = vmul.f32 %v2616, 1.442695
  %v2635 = vpow.pop %v2634
  %v2636 = vmul.f32 %v2617, 1.442695
  %v2637 = vpow.pop %v2636
  %v2638 = vmul.f32 %v2618, 1.442695
  %v2639 = vpow.pop %v2638
  %v2640 = vmul.f32 %v2619, 1.442695
  %v2641 = vpow.pop %v2640
  %v2642 = vmul.f32 %v2620, 1.442695
  %v2643 = vpow.pop %v2642
  %v2644 = vmul.f32 %v2621, 1.442695
  %v2645 = vpow.pop %v2644
  %v2646 = vmul.f32 %v2622, 1.442695
  %v2647 = vpow.pop %v2646
  %v2648 = vmul.f32 %v2623, 1.442695
  %v2649 = vpow.pop %v2648
  %v2650 = vmul.f32 %v2624, 1.442695
  %v2651 = vpow.pop %v2650
  %v2652 = vmul.f32 %v2625, 1.442695
  %v2653 = vpow.pop %v2652
  %v2654 = vmul.f32 %v2626, 1.442695
  %v2655 = vpow.pop %v2654
  %v2656 = vmul.f32 %v2627, 1.442695
  %v2657 = vpow.pop %v2656
  %v2658 = vadd.f32 %v2629, 1.0
  %v2659 = vadd.f32 %v2631, 1.0
  %v2660 = vadd.f32 %v2633, 1.0
  %v2661 = vadd.f32 %v2635, 1.0
  %v2662 = vadd.f32 %v2637, 1.0
  %v2663 = vadd.f32 %v2639, 1.0
  %v2664 = vadd.f32 %v2641, 1.0
  %v2665 = vadd.f32 %v2643, 1.0
  %v2666 = vadd.f32 %v2645, 1.0
  %v2667 = vadd.f32 %v2647, 1.0
  %v2668 = vadd.f32 %v2649, 1.0
  %v2669 = vadd.f32 %v2651, 1.0
  %v2670 = vadd.f32 %v2653, 1.0
  %v2671 = vadd.f32 %v2655, 1.0
  %v2672 = vadd.f32 %v2657, 1.0
  %v2673 = vrcp.pop %v2658
  %v2674 = vmul.f32 1.0, %v2673
  %v2675 = vrcp.pop %v2659
  %v2676 = vmul.f32 1.0, %v2675
  %v2677 = vrcp.pop %v2660
  %v2678 = vmul.f32 1.0, %v2677
  %v2679 = vrcp.pop %v2661
  %v2680 = vmul.f32 1.0, %v2679
  %v2681 = vrcp.pop %v2662
  %v2682 = vmul.f32 1.0, %v2681
  %v2683 = vrcp.pop %v2663
  %v2684 = vmul.f32 1.0, %v2683
  %v2685 = vrcp.pop %v2664
  %v2686 = vmul.f32 1.0, %v2685
  %v2687 = vrcp.pop %v2665
  %v2688 = vmul.f32 1.0, %v2687
  %v2689 = vrcp.pop %v2666
  %v2690 = vmul.f32 1.0, %v2689
  %v2691 = vrcp.pop %v2667
  %v2692 = vmul.f32 1.0, %v2691
  %v2693 = vrcp.pop %v2668
  %v2694 = vmul.f32 1.0, %v2693
  %v2695 = vrcp.pop %v2669
  %v2696 = vmul.f32 1.0, %v2695
  %v2697 = vrcp.pop %v2670
  %v2698 = vmul.f32 1.0, %v2697
  %v2699 = vrcp.pop %v2671
  %v2700 = vmul.f32 1.0, %v2699
  %v2701 = vrcp.pop %v2672
  %v2702 = vmul.f32 1.0, %v2701
  %v2703 = vmul.f32 %v2583, %v2674
  %v2704 = vmul.f32 %v2585, %v2676
  %v2705 = vmul.f32 %v2587, %v2678
  %v2706 = vmul.f32 %v2589, %v2680
  %v2707 = vmul.f32 %v2591, %v2682
  %v2708 = vmul.f32 %v2593, %v2684
  %v2709 = vmul.f32 %v2595, %v2686
  %v2710 = vmul.f32 %v2597, %v2688
  %v2711 = vmul.f32 %v2599, %v2690
  %v2712 = vmul.f32 %v2601, %v2692
  %v2713 = vmul.f32 %v2603, %v2694
  %v2714 = vmul.f32 %v2605, %v2696
  %v2715 = vmul.f32 %v2607, %v2698
  %v2716 = vmul.f32 %v2609, %v2700
  %v2717 = vmul.f32 %v2611, %v2702
  %v2718 = vld [vmem:[%s7] sm:$0x1]
  %v2719 = vld [vmem:[%s7 + $0x1] sm:$0x1]
  %v2720 = vadd.f32 %v2703, %v2704
  %v2721 = vadd.f32 %v2720, %v2705
  %v2722 = vadd.f32 %v2721, %v2706
  %v2723 = vadd.f32 %v2722, %v2707
  %v2724 = vadd.f32 %v2723, %v2708
  %v2725 = vadd.f32 %v2724, %v2709
  %v2726 = vadd.f32 %v2725, %v2710
  %v2727 = vadd.f32 %v2726, %v2711
  %v2728 = vadd.f32 %v2727, %v2712
  %v2729 = vadd.f32 %v2728, %v2713
  %v2730 = vadd.f32 %v2729, %v2714
  %v2731 = vadd.f32 %v2730, %v2715
  %v2732 = vadd.f32 %v2731, %v2716
  %v2733 = vadd.f32 %v2732, %v2717
  %v2734 = vrot.slane %v2733, 4
  %v2735 = vadd.f32 %v2733, %v2734
  %v2736 = vrot.slane %v2735, 2
  %v2737 = vadd.f32 %v2735, %v2736
  %v2738 = vrot.slane %v2737, 1
  %v2739 = vadd.f32 %v2737, %v2738
  %v2740 = vmul.f32 %v2739, %v383
  %v2741 = vmul.f32 %v2703, %v2703
  %v2742 = vmul.f32 %v2704, %v2704
  %v2743 = vmul.f32 %v2705, %v2705
  %v2744 = vmul.f32 %v2706, %v2706
  %v2745 = vmul.f32 %v2707, %v2707
  %v2746 = vmul.f32 %v2708, %v2708
  %v2747 = vmul.f32 %v2709, %v2709
  %v2748 = vmul.f32 %v2710, %v2710
  %v2749 = vmul.f32 %v2711, %v2711
  %v2750 = vmul.f32 %v2712, %v2712
  %v2751 = vmul.f32 %v2713, %v2713
  %v2752 = vmul.f32 %v2714, %v2714
  %v2753 = vmul.f32 %v2715, %v2715
  %v2754 = vmul.f32 %v2716, %v2716
  %v2755 = vmul.f32 %v2717, %v2717
  %v2756 = vadd.f32 %v2741, %v2742
  %v2757 = vadd.f32 %v2756, %v2743
  %v2758 = vadd.f32 %v2757, %v2744
  %v2759 = vadd.f32 %v2758, %v2745
  %v2760 = vadd.f32 %v2759, %v2746
  %v2761 = vadd.f32 %v2760, %v2747
  %v2762 = vadd.f32 %v2761, %v2748
  %v2763 = vadd.f32 %v2762, %v2749
  %v2764 = vadd.f32 %v2763, %v2750
  %v2765 = vadd.f32 %v2764, %v2751
  %v2766 = vadd.f32 %v2765, %v2752
  %v2767 = vadd.f32 %v2766, %v2753
  %v2768 = vadd.f32 %v2767, %v2754
  %v2769 = vadd.f32 %v2768, %v2755
  %v2770 = vrot.slane %v2769, 4
  %v2771 = vadd.f32 %v2769, %v2770
  %v2772 = vrot.slane %v2771, 2
  %v2773 = vadd.f32 %v2771, %v2772
  %v2774 = vrot.slane %v2773, 1
  %v2775 = vadd.f32 %v2773, %v2774
  %v2776 = vmul.f32 %v2775, %v383
  %v2777 = vmul.f32 %v2740, %v2740
  %v2778 = vsub.f32 %v2776, %v2777
  %v2779 = vsub.f32 %v2703, %v2740
  %v2780 = vsub.f32 %v2704, %v2740
  %v2781 = vsub.f32 %v2705, %v2740
  %v2782 = vsub.f32 %v2706, %v2740
  %v2783 = vsub.f32 %v2707, %v2740
  %v2784 = vsub.f32 %v2708, %v2740
  %v2785 = vsub.f32 %v2709, %v2740
  %v2786 = vsub.f32 %v2710, %v2740
  %v2787 = vsub.f32 %v2711, %v2740
  %v2788 = vsub.f32 %v2712, %v2740
  %v2789 = vsub.f32 %v2713, %v2740
  %v2790 = vsub.f32 %v2714, %v2740
  %v2791 = vsub.f32 %v2715, %v2740
  %v2792 = vsub.f32 %v2716, %v2740
  %v2793 = vsub.f32 %v2717, %v2740
  %v2794 = vadd.f32 %v2778, 1e-05
  %v2795 = vrsqrt.pop %v2794
  %v2796 = vmul.f32 %v2779, %v2795
  %v2797 = vmul.f32 %v2780, %v2795
  %v2798 = vmul.f32 %v2781, %v2795
  %v2799 = vmul.f32 %v2782, %v2795
  %v2800 = vmul.f32 %v2783, %v2795
  %v2801 = vmul.f32 %v2784, %v2795
  %v2802 = vmul.f32 %v2785, %v2795
  %v2803 = vmul.f32 %v2786, %v2795
  %v2804 = vmul.f32 %v2787, %v2795
  %v2805 = vmul.f32 %v2788, %v2795
  %v2806 = vmul.f32 %v2789, %v2795
  %v2807 = vmul.f32 %v2790, %v2795
  %v2808 = vmul.f32 %v2791, %v2795
  %v2809 = vmul.f32 %v2792, %v2795
  %v2810 = vmul.f32 %v2793, %v2795
  %v2811 = vlaneseq
  %v2812 = vshrl.u32 %v2811, 7
  %v2813 = vsub.s32 0, %v2812
  %v2814 = vrot.slane %v2718, %v2813
  %v2815 = vmul.f32 %v2796, %v2814
  %v2816 = vmul.f32 %v2797, %v2814
  %v2817 = vmul.f32 %v2798, %v2814
  %v2818 = vmul.f32 %v2799, %v2814
  %v2819 = vmul.f32 %v2800, %v2814
  %v2820 = vmul.f32 %v2801, %v2814
  %v2821 = vmul.f32 %v2802, %v2814
  %v2822 = vmul.f32 %v2803, %v2814
  %v2823 = vmul.f32 %v2804, %v2814
  %v2824 = vmul.f32 %v2805, %v2814
  %v2825 = vmul.f32 %v2806, %v2814
  %v2826 = vmul.f32 %v2807, %v2814
  %v2827 = vmul.f32 %v2808, %v2814
  %v2828 = vmul.f32 %v2809, %v2814
  %v2829 = vmul.f32 %v2810, %v2814
  %v2830 = vlaneseq
  %v2831 = vshrl.u32 %v2830, 7
  %v2832 = vsub.s32 0, %v2831
  %v2833 = vrot.slane %v2719, %v2832
  %v2834 = vadd.f32 %v2815, %v2833
  %v2835 = vadd.f32 %v2816, %v2833
  %v2836 = vadd.f32 %v2817, %v2833
  %v2837 = vadd.f32 %v2818, %v2833
  %v2838 = vadd.f32 %v2819, %v2833
  %v2839 = vadd.f32 %v2820, %v2833
  %v2840 = vadd.f32 %v2821, %v2833
  %v2841 = vadd.f32 %v2822, %v2833
  %v2842 = vadd.f32 %v2823, %v2833
  %v2843 = vadd.f32 %v2824, %v2833
  %v2844 = vadd.f32 %v2825, %v2833
  %v2845 = vadd.f32 %v2826, %v2833
  %v2846 = vadd.f32 %v2827, %v2833
  %v2847 = vadd.f32 %v2828, %v2833
  %v2848 = vadd.f32 %v2829, %v2833
  %v2849 = vpack.c.bf16 %v2835, %v2834
  %v2850 = vpack.c.bf16 %v2837, %v2836
  %v2851 = vpack.c.bf16 %v2839, %v2838
  %v2852 = vpack.c.bf16 %v2841, %v2840
  %v2853 = vpack.c.bf16 %v2843, %v2842
  %v2854 = vpack.c.bf16 %v2845, %v2844
  %v2855 = vpack.c.bf16 %v2847, %v2846
  %v2856 = vpack.c.bf16 %v2848, %v2848
  %v2857 = vld [vmem:[%s8] sm:$0xff]
  %v2858 = vld [vmem:[%s8 + $0x8] sm:$0xff]
  %v2859 = vld [vmem:[%s8 + $0x10] sm:$0xff]
  %v2860 = vld [vmem:[%s8 + $0x18] sm:$0xff]
  %v2861 = vld [vmem:[%s8 + $0x20] sm:$0xff]
  %v2862 = vld [vmem:[%s8 + $0x28] sm:$0xff]
  %v2863 = vld [vmem:[%s8 + $0x30] sm:$0xff]
  %v2864 = vld [vmem:[%s8 + $0x38] sm:$0xff]
  %v2865 = vld [vmem:[%s8 + $0x40] sm:$0xff]
  %v2866 = vld [vmem:[%s8 + $0x48] sm:$0xff]
  %v2867 = vld [vmem:[%s8 + $0x50] sm:$0xff]
  %v2868 = vld [vmem:[%s8 + $0x58] sm:$0xff]
  %v2869 = vld [vmem:[%s8 + $0x60] sm:$0xff]
  %v2870 = vld [vmem:[%s8 + $0x68] sm:$0xff]
  %v2871 = vld [vmem:[%s8 + $0x70] sm:$0xff]
  %v2872 = vld [vmem:[%s8 + $0x78] sm:$0xff]
  %v2873 = vld [vmem:[%s8 + $0x80] sm:$0xff]
  %v2874 = vld [vmem:[%s8 + $0x88] sm:$0xff]
  %v2875 = vld [vmem:[%s8 + $0x90] sm:$0xff]
  %v2876 = vld [vmem:[%s8 + $0x98] sm:$0xff]
  %v2877 = vld [vmem:[%s8 + $0xa0] sm:$0xff]
  %v2878 = vld [vmem:[%s8 + $0xa8] sm:$0xff]
  %v2879 = vld [vmem:[%s8 + $0xb0] sm:$0xff]
  %v2880 = vld [vmem:[%s8 + $0xb8] sm:$0xff]
  %v2881 = vld [vmem:[%s8 + $0xc0] sm:$0xff]
  %v2882 = vld [vmem:[%s8 + $0xc8] sm:$0xff]
  %v2883 = vld [vmem:[%s8 + $0xd0] sm:$0xff]
  %v2884 = vld [vmem:[%s8 + $0xd8] sm:$0xff]
  %v2885 = vld [vmem:[%s8 + $0xe0] sm:$0xff]
  %v2886 = vld [vmem:[%s8 + $0xe8] sm:$0xff]
  %v2887 = vld [vmem:[%s8 + $0xf0] sm:$0xff]
  %v2888 = vld [vmem:[%s8 + $0xf8] sm:$0xff]
  %v2889 = vld [vmem:[%s8 + $0x100] sm:$0xff]
  %v2890 = vld [vmem:[%s8 + $0x108] sm:$0xff]
  %v2891 = vld [vmem:[%s8 + $0x110] sm:$0xff]
  %v2892 = vld [vmem:[%s8 + $0x118] sm:$0xff]
  %v2893 = vld [vmem:[%s8 + $0x120] sm:$0xff]
  %v2894 = vld [vmem:[%s8 + $0x128] sm:$0xff]
  %v2895 = vld [vmem:[%s8 + $0x130] sm:$0xff]
  %v2896 = vld [vmem:[%s8 + $0x138] sm:$0xff]
  %v2897 = vld [vmem:[%s8 + $0x140] sm:$0xff]
  %v2898 = vld [vmem:[%s8 + $0x148] sm:$0xff]
  %v2899 = vld [vmem:[%s8 + $0x150] sm:$0xff]
  %v2900 = vld [vmem:[%s8 + $0x158] sm:$0xff]
  %v2901 = vld [vmem:[%s8 + $0x160] sm:$0xff]
  %v2902 = vld [vmem:[%s8 + $0x168] sm:$0xff]
  %v2903 = vld [vmem:[%s8 + $0x170] sm:$0xff]
  %v2904 = vld [vmem:[%s8 + $0x178] sm:$0xff]
  %v2953 = vunpack.c.l.b16 %v2857
  %v2954 = vunpack.c.h.b16 %v2857
  %v2955 = vunpack.c.l.b16 %v2858
  %v2956 = vunpack.c.h.b16 %v2858
  %v2957 = vunpack.c.l.b16 %v2859
  %v2958 = vunpack.c.h.b16 %v2859
  %v2959 = vunpack.c.l.b16 %v2860
  %v2960 = vunpack.c.h.b16 %v2860
  %v2961 = vunpack.c.l.b16 %v2861
  %v2962 = vunpack.c.h.b16 %v2861
  %v2963 = vunpack.c.l.b16 %v2862
  %v2964 = vunpack.c.h.b16 %v2862
  %v2965 = vunpack.c.l.b16 %v2863
  %v2966 = vunpack.c.h.b16 %v2863
  %v2967 = vunpack.c.l.b16 %v2864
  %v2968 = vunpack.c.h.b16 %v2864
  %v2969 = vunpack.c.l.b16 %v2865
  %v2970 = vunpack.c.h.b16 %v2865
  %v2971 = vunpack.c.l.b16 %v2866
  %v2972 = vunpack.c.h.b16 %v2866
  %v2973 = vunpack.c.l.b16 %v2867
  %v2974 = vunpack.c.h.b16 %v2867
  %v2975 = vunpack.c.l.b16 %v2868
  %v2976 = vunpack.c.h.b16 %v2868
  %v2977 = vunpack.c.l.b16 %v2869
  %v2978 = vunpack.c.h.b16 %v2869
  %v2979 = vunpack.c.l.b16 %v2870
  %v2980 = vunpack.c.h.b16 %v2870
  %v2981 = vunpack.c.l.b16 %v2871
  %v2982 = vunpack.c.h.b16 %v2871
  %v2983 = vunpack.c.l.b16 %v2872
  %v2984 = vunpack.c.h.b16 %v2872
  %v2985 = vunpack.c.l.b16 %v2873
  %v2986 = vunpack.c.h.b16 %v2873
  %v2987 = vunpack.c.l.b16 %v2874
  %v2988 = vunpack.c.h.b16 %v2874
  %v2989 = vunpack.c.l.b16 %v2875
  %v2990 = vunpack.c.h.b16 %v2875
  %v2991 = vunpack.c.l.b16 %v2876
  %v2992 = vunpack.c.h.b16 %v2876
  %v2993 = vunpack.c.l.b16 %v2877
  %v2994 = vunpack.c.h.b16 %v2877
  %v2995 = vunpack.c.l.b16 %v2878
  %v2996 = vunpack.c.h.b16 %v2878
  %v2997 = vunpack.c.l.b16 %v2879
  %v2998 = vunpack.c.h.b16 %v2879
  %v2999 = vunpack.c.l.b16 %v2880
  %v3000 = vunpack.c.h.b16 %v2880
  %v3001 = vunpack.c.l.b16 %v2881
  %v3002 = vunpack.c.h.b16 %v2881
  %v3003 = vunpack.c.l.b16 %v2882
  %v3004 = vunpack.c.h.b16 %v2882
  %v3005 = vunpack.c.l.b16 %v2883
  %v3006 = vunpack.c.h.b16 %v2883
  %v3007 = vunpack.c.l.b16 %v2884
  %v3008 = vunpack.c.h.b16 %v2884
  %v3009 = vunpack.c.l.b16 %v2885
  %v3010 = vunpack.c.h.b16 %v2885
  %v3011 = vunpack.c.l.b16 %v2886
  %v3012 = vunpack.c.h.b16 %v2886
  %v3013 = vunpack.c.l.b16 %v2887
  %v3014 = vunpack.c.h.b16 %v2887
  %v3015 = vunpack.c.l.b16 %v2888
  %v3016 = vunpack.c.h.b16 %v2888
  %v3017 = vunpack.c.l.b16 %v2889
  %v3018 = vunpack.c.h.b16 %v2889
  %v3019 = vunpack.c.l.b16 %v2890
  %v3020 = vunpack.c.h.b16 %v2890
  %v3021 = vunpack.c.l.b16 %v2891
  %v3022 = vunpack.c.h.b16 %v2891
  %v3023 = vunpack.c.l.b16 %v2892
  %v3024 = vunpack.c.h.b16 %v2892
  %v3025 = vunpack.c.l.b16 %v2893
  %v3026 = vunpack.c.h.b16 %v2893
  %v3027 = vunpack.c.l.b16 %v2894
  %v3028 = vunpack.c.h.b16 %v2894
  %v3029 = vunpack.c.l.b16 %v2895
  %v3030 = vunpack.c.h.b16 %v2895
  %v3031 = vunpack.c.l.b16 %v2896
  %v3032 = vunpack.c.h.b16 %v2896
  %v3033 = vunpack.c.l.b16 %v2897
  %v3034 = vunpack.c.h.b16 %v2897
  %v3035 = vunpack.c.l.b16 %v2898
  %v3036 = vunpack.c.h.b16 %v2898
  %v3037 = vunpack.c.l.b16 %v2899
  %v3038 = vunpack.c.h.b16 %v2899
  %v3039 = vunpack.c.l.b16 %v2900
  %v3040 = vunpack.c.h.b16 %v2900
  %v3041 = vunpack.c.l.b16 %v2901
  %v3042 = vunpack.c.h.b16 %v2901
  %v3043 = vunpack.c.l.b16 %v2902
  %v3044 = vunpack.c.h.b16 %v2902
  %v3045 = vunpack.c.l.b16 %v2903
  %v3046 = vunpack.c.h.b16 %v2903
  %v3047 = vunpack.c.l.b16 %v2904
  %v3048 = vunpack.c.h.b16 %v2904
  %v3049 = vpack.c.b16 %v2959, %v2953
  %v3050 = vpack.c.b16 %v2960, %v2954
  %v3051 = vpack.c.b16 %v2961, %v2955
  %v3052 = vpack.c.b16 %v2962, %v2956
  %v3053 = vpack.c.b16 %v2963, %v2957
  %v3054 = vpack.c.b16 %v2964, %v2958
  %v3055 = vpack.c.b16 %v2971, %v2965
  %v3056 = vpack.c.b16 %v2972, %v2966
  %v3057 = vpack.c.b16 %v2973, %v2967
  %v3058 = vpack.c.b16 %v2974, %v2968
  %v3059 = vpack.c.b16 %v2975, %v2969
  %v3060 = vpack.c.b16 %v2976, %v2970
  %v3061 = vpack.c.b16 %v2983, %v2977
  %v3062 = vpack.c.b16 %v2984, %v2978
  %v3063 = vpack.c.b16 %v2985, %v2979
  %v3064 = vpack.c.b16 %v2986, %v2980
  %v3065 = vpack.c.b16 %v2987, %v2981
  %v3066 = vpack.c.b16 %v2988, %v2982
  %v3067 = vpack.c.b16 %v2995, %v2989
  %v3068 = vpack.c.b16 %v2996, %v2990
  %v3069 = vpack.c.b16 %v2997, %v2991
  %v3070 = vpack.c.b16 %v2998, %v2992
  %v3071 = vpack.c.b16 %v2999, %v2993
  %v3072 = vpack.c.b16 %v3000, %v2994
  %v3073 = vpack.c.b16 %v3007, %v3001
  %v3074 = vpack.c.b16 %v3008, %v3002
  %v3075 = vpack.c.b16 %v3009, %v3003
  %v3076 = vpack.c.b16 %v3010, %v3004
  %v3077 = vpack.c.b16 %v3011, %v3005
  %v3078 = vpack.c.b16 %v3012, %v3006
  %v3079 = vpack.c.b16 %v3019, %v3013
  %v3080 = vpack.c.b16 %v3020, %v3014
  %v3081 = vpack.c.b16 %v3021, %v3015
  %v3082 = vpack.c.b16 %v3022, %v3016
  %v3083 = vpack.c.b16 %v3023, %v3017
  %v3084 = vpack.c.b16 %v3024, %v3018
  %v3085 = vpack.c.b16 %v3031, %v3025
  %v3086 = vpack.c.b16 %v3032, %v3026
  %v3087 = vpack.c.b16 %v3033, %v3027
  %v3088 = vpack.c.b16 %v3034, %v3028
  %v3089 = vpack.c.b16 %v3035, %v3029
  %v3090 = vpack.c.b16 %v3036, %v3030
  %v3091 = vpack.c.b16 %v3043, %v3037
  %v3092 = vpack.c.b16 %v3044, %v3038
  %v3093 = vpack.c.b16 %v3045, %v3039
  %v3094 = vpack.c.b16 %v3046, %v3040
  %v3095 = vpack.c.b16 %v3047, %v3041
  %v3096 = vpack.c.b16 %v3048, %v3042
  %3145 = vmatprep.subr.bf16.mxu0 %v3092
  %3146 = vmatpush1.bf16.msra.mxu0 %v3091
  %3147 = vmatprep.subr.bf16.mxu0 %v3086
  %3148 = vmatpush1.bf16.msra.mxu0 %v3085
  %3149 = vmatprep.subr.bf16.mxu0 %v3080
  %3150 = vmatpush1.bf16.msra.mxu0 %v3079
  %3151 = vmatprep.subr.bf16.mxu0 %v3074
  %3152 = vmatpush1.bf16.msra.mxu0 %v3073
  %3153 = vmatprep.subr.bf16.mxu0 %v3068
  %3154 = vmatpush1.bf16.msra.mxu0 %v3067
  %3155 = vmatprep.subr.bf16.mxu0 %v3062
  %3156 = vmatpush1.bf16.msra.mxu0 %v3061
  %3157 = vmatprep.subr.bf16.mxu0 %v3056
  %3158 = vmatpush1.bf16.msra.mxu0 %v3055
  %3159 = vmatprep.subr.bf16.mxu0 %v3050
  %3160 = vmatpush1.bf16.msra.mxu0 %v3049
  %3161 = vmatprep.subr.bf16.mxu0 0
  %3162 = vmatpush2.bf16.msra.mxu0 0
  %3163 = vmatprep.subr.bf16.mxu0 0
  %3164 = vmatpush2.bf16.msra.mxu0 0
  %3165 = vmatprep.subr.bf16.mxu0 0
  %3166 = vmatpush2.bf16.msra.mxu0 0
  %3167 = vmatprep.subr.bf16.mxu0 0
  %3168 = vmatpush2.bf16.msra.mxu0 0
  %3169 = vmatprep.subr.bf16.mxu0 0
  %3170 = vmatpush2.bf16.msra.mxu0 0
  %3171 = vmatprep.subr.bf16.mxu0 0
  %3172 = vmatpush2.bf16.msra.mxu0 0
  %3173 = vmatprep.subr.bf16.mxu0 0
  %3174 = vmatpush2.bf16.msra.mxu0 0
  %3175 = vmatprep.subr.bf16.mxu0 0
  %3176 = vmatpush2.bf16.msra.mxu0 0
  %3177 = vmatprep.mubr.bf16.mxu0 0
  %3178 = vmatmul.mubr.bf16.gmra.mxu0 %v2849
  %v3179 = vpop.f32.mrf.mxu0
  %v3180 = vadd.f32 0.0, %v3179
  %v3181 = vpop.f32.mrf.mxu0
  %v3182 = vadd.f32 0.0, %v3181
  %v3183 = vpop.f32.mrf.mxu0
  %v3184 = vadd.f32 0.0, %v3183
  %v3185 = vpop.f32.mrf.mxu0
  %v3186 = vadd.f32 0.0, %v3185
  %3187 = vmatprep.mubr.bf16.mxu0 0
  %3188 = vmatmul.mubr.bf16.gmra.mxu0 %v2850
  %v3189 = vpop.f32.mrf.mxu0
  %v3190 = vadd.f32 0.0, %v3189
  %v3191 = vpop.f32.mrf.mxu0
  %v3192 = vadd.f32 0.0, %v3191
  %v3193 = vpop.f32.mrf.mxu0
  %v3194 = vadd.f32 0.0, %v3193
  %v3195 = vpop.f32.mrf.mxu0
  %v3196 = vadd.f32 0.0, %v3195
  %3197 = vmatprep.mubr.bf16.mxu0 0
  %3198 = vmatmul.mubr.bf16.gmra.mxu0 %v2851
  %v3199 = vpop.f32.mrf.mxu0
  %v3200 = vadd.f32 0.0, %v3199
  %v3201 = vpop.f32.mrf.mxu0
  %v3202 = vadd.f32 0.0, %v3201
  %v3203 = vpop.f32.mrf.mxu0
  %v3204 = vadd.f32 0.0, %v3203
  %v3205 = vpop.f32.mrf.mxu0
  %v3206 = vadd.f32 0.0, %v3205
  %3207 = vmatprep.mubr.bf16.mxu0 0
  %3208 = vmatmul.mubr.bf16.gmra.mxu0 %v2852
  %v3209 = vpop.f32.mrf.mxu0
  %v3210 = vadd.f32 0.0, %v3209
  %v3211 = vpop.f32.mrf.mxu0
  %v3212 = vadd.f32 0.0, %v3211
  %v3213 = vpop.f32.mrf.mxu0
  %v3214 = vadd.f32 0.0, %v3213
  %v3215 = vpop.f32.mrf.mxu0
  %v3216 = vadd.f32 0.0, %v3215
  %3217 = vmatprep.mubr.bf16.mxu0 0
  %3218 = vmatmul.mubr.bf16.gmra.mxu0 %v2853
  %v3219 = vpop.f32.mrf.mxu0
  %v3220 = vadd.f32 0.0, %v3219
  %v3221 = vpop.f32.mrf.mxu0
  %v3222 = vadd.f32 0.0, %v3221
  %v3223 = vpop.f32.mrf.mxu0
  %v3224 = vadd.f32 0.0, %v3223
  %v3225 = vpop.f32.mrf.mxu0
  %v3226 = vadd.f32 0.0, %v3225
  %3227 = vmatprep.mubr.bf16.mxu0 0
  %3228 = vmatmul.mubr.bf16.gmra.mxu0 %v2854
  %v3229 = vpop.f32.mrf.mxu0
  %v3230 = vadd.f32 0.0, %v3229
  %v3231 = vpop.f32.mrf.mxu0
  %v3232 = vadd.f32 0.0, %v3231
  %v3233 = vpop.f32.mrf.mxu0
  %v3234 = vadd.f32 0.0, %v3233
  %v3235 = vpop.f32.mrf.mxu0
  %v3236 = vadd.f32 0.0, %v3235
  %3237 = vmatprep.mubr.bf16.mxu0 0
  %3238 = vmatmul.mubr.bf16.gmra.mxu0 %v2855
  %v3239 = vpop.f32.mrf.mxu0
  %v3240 = vadd.f32 0.0, %v3239
  %v3241 = vpop.f32.mrf.mxu0
  %v3242 = vadd.f32 0.0, %v3241
  %v3243 = vpop.f32.mrf.mxu0
  %v3244 = vadd.f32 0.0, %v3243
  %v3245 = vpop.f32.mrf.mxu0
  %v3246 = vadd.f32 0.0, %v3245
  %3247 = vmatprep.mubr.bf16.mxu0 0
  %3248 = vmatmul.mubr.bf16.gmra.mxu0 %v2856
  %v3249 = vpop.f32.mrf.mxu0
  %v3250 = vadd.f32 0.0, %v3249
  %v3251 = vpop.f32.mrf.mxu0
  %v3252 = vadd.f32 0.0, %v3251
  %v3253 = vpop.f32.mrf.mxu0
  %v3254 = vpop.f32.mrf.mxu0
  %3255 = vdwg.mxu0
  %3256 = vmatprep.subr.bf16.mxu0 %v3094
  %3257 = vmatpush1.bf16.msra.mxu0 %v3093
  %3258 = vmatprep.subr.bf16.mxu0 %v3088
  %3259 = vmatpush1.bf16.msra.mxu0 %v3087
  %3260 = vmatprep.subr.bf16.mxu0 %v3082
  %3261 = vmatpush1.bf16.msra.mxu0 %v3081
  %3262 = vmatprep.subr.bf16.mxu0 %v3076
  %3263 = vmatpush1.bf16.msra.mxu0 %v3075
  %3264 = vmatprep.subr.bf16.mxu0 %v3070
  %3265 = vmatpush1.bf16.msra.mxu0 %v3069
  %3266 = vmatprep.subr.bf16.mxu0 %v3064
  %3267 = vmatpush1.bf16.msra.mxu0 %v3063
  %3268 = vmatprep.subr.bf16.mxu0 %v3058
  %3269 = vmatpush1.bf16.msra.mxu0 %v3057
  %3270 = vmatprep.subr.bf16.mxu0 %v3052
  %3271 = vmatpush1.bf16.msra.mxu0 %v3051
  %3272 = vmatprep.subr.bf16.mxu0 0
  %3273 = vmatpush2.bf16.msra.mxu0 0
  %3274 = vmatprep.subr.bf16.mxu0 0
  %3275 = vmatpush2.bf16.msra.mxu0 0
  %3276 = vmatprep.subr.bf16.mxu0 0
  %3277 = vmatpush2.bf16.msra.mxu0 0
  %3278 = vmatprep.subr.bf16.mxu0 0
  %3279 = vmatpush2.bf16.msra.mxu0 0
  %3280 = vmatprep.subr.bf16.mxu0 0
  %3281 = vmatpush2.bf16.msra.mxu0 0
  %3282 = vmatprep.subr.bf16.mxu0 0
  %3283 = vmatpush2.bf16.msra.mxu0 0
  %3284 = vmatprep.subr.bf16.mxu0 0
  %3285 = vmatpush2.bf16.msra.mxu0 0
  %3286 = vmatprep.subr.bf16.mxu0 0
  %3287 = vmatpush2.bf16.msra.mxu0 0
  %3288 = vmatprep.mubr.bf16.mxu0 0
  %3289 = vmatmul.mubr.bf16.gmra.mxu0 %v2849
  %v3290 = vpop.f32.mrf.mxu0
  %v3291 = vadd.f32 0.0, %v3290
  %v3292 = vpop.f32.mrf.mxu0
  %v3293 = vadd.f32 0.0, %v3292
  %v3294 = vpop.f32.mrf.mxu0
  %v3295 = vadd.f32 0.0, %v3294
  %v3296 = vpop.f32.mrf.mxu0
  %v3297 = vadd.f32 0.0, %v3296
  %3298 = vmatprep.mubr.bf16.mxu0 0
  %3299 = vmatmul.mubr.bf16.gmra.mxu0 %v2850
  %v3300 = vpop.f32.mrf.mxu0
  %v3301 = vadd.f32 0.0, %v3300
  %v3302 = vpop.f32.mrf.mxu0
  %v3303 = vadd.f32 0.0, %v3302
  %v3304 = vpop.f32.mrf.mxu0
  %v3305 = vadd.f32 0.0, %v3304
  %v3306 = vpop.f32.mrf.mxu0
  %v3307 = vadd.f32 0.0, %v3306
  %3308 = vmatprep.mubr.bf16.mxu0 0
  %3309 = vmatmul.mubr.bf16.gmra.mxu0 %v2851
  %v3310 = vpop.f32.mrf.mxu0
  %v3311 = vadd.f32 0.0, %v3310
  %v3312 = vpop.f32.mrf.mxu0
  %v3313 = vadd.f32 0.0, %v3312
  %v3314 = vpop.f32.mrf.mxu0
  %v3315 = vadd.f32 0.0, %v3314
  %v3316 = vpop.f32.mrf.mxu0
  %v3317 = vadd.f32 0.0, %v3316
  %3318 = vmatprep.mubr.bf16.mxu0 0
  %3319 = vmatmul.mubr.bf16.gmra.mxu0 %v2852
  %v3320 = vpop.f32.mrf.mxu0
  %v3321 = vadd.f32 0.0, %v3320
  %v3322 = vpop.f32.mrf.mxu0
  %v3323 = vadd.f32 0.0, %v3322
  %v3324 = vpop.f32.mrf.mxu0
  %v3325 = vadd.f32 0.0, %v3324
  %v3326 = vpop.f32.mrf.mxu0
  %v3327 = vadd.f32 0.0, %v3326
  %3328 = vmatprep.mubr.bf16.mxu0 0
  %3329 = vmatmul.mubr.bf16.gmra.mxu0 %v2853
  %v3330 = vpop.f32.mrf.mxu0
  %v3331 = vadd.f32 0.0, %v3330
  %v3332 = vpop.f32.mrf.mxu0
  %v3333 = vadd.f32 0.0, %v3332
  %v3334 = vpop.f32.mrf.mxu0
  %v3335 = vadd.f32 0.0, %v3334
  %v3336 = vpop.f32.mrf.mxu0
  %v3337 = vadd.f32 0.0, %v3336
  %3338 = vmatprep.mubr.bf16.mxu0 0
  %3339 = vmatmul.mubr.bf16.gmra.mxu0 %v2854
  %v3340 = vpop.f32.mrf.mxu0
  %v3341 = vadd.f32 0.0, %v3340
  %v3342 = vpop.f32.mrf.mxu0
  %v3343 = vadd.f32 0.0, %v3342
  %v3344 = vpop.f32.mrf.mxu0
  %v3345 = vadd.f32 0.0, %v3344
  %v3346 = vpop.f32.mrf.mxu0
  %v3347 = vadd.f32 0.0, %v3346
  %3348 = vmatprep.mubr.bf16.mxu0 0
  %3349 = vmatmul.mubr.bf16.gmra.mxu0 %v2855
  %v3350 = vpop.f32.mrf.mxu0
  %v3351 = vadd.f32 0.0, %v3350
  %v3352 = vpop.f32.mrf.mxu0
  %v3353 = vadd.f32 0.0, %v3352
  %v3354 = vpop.f32.mrf.mxu0
  %v3355 = vadd.f32 0.0, %v3354
  %v3356 = vpop.f32.mrf.mxu0
  %v3357 = vadd.f32 0.0, %v3356
  %3358 = vmatprep.mubr.bf16.mxu0 0
  %3359 = vmatmul.mubr.bf16.gmra.mxu0 %v2856
  %v3360 = vpop.f32.mrf.mxu0
  %v3361 = vadd.f32 0.0, %v3360
  %v3362 = vpop.f32.mrf.mxu0
  %v3363 = vadd.f32 0.0, %v3362
  %v3364 = vpop.f32.mrf.mxu0
  %v3365 = vpop.f32.mrf.mxu0
  %3366 = vdwg.mxu0
  %3367 = vmatprep.subr.bf16.mxu0 %v3096
  %3368 = vmatpush1.bf16.msra.mxu0 %v3095
  %3369 = vmatprep.subr.bf16.mxu0 %v3090
  %3370 = vmatpush1.bf16.msra.mxu0 %v3089
  %3371 = vmatprep.subr.bf16.mxu0 %v3084
  %3372 = vmatpush1.bf16.msra.mxu0 %v3083
  %3373 = vmatprep.subr.bf16.mxu0 %v3078
  %3374 = vmatpush1.bf16.msra.mxu0 %v3077
  %3375 = vmatprep.subr.bf16.mxu0 %v3072
  %3376 = vmatpush1.bf16.msra.mxu0 %v3071
  %3377 = vmatprep.subr.bf16.mxu0 %v3066
  %3378 = vmatpush1.bf16.msra.mxu0 %v3065
  %3379 = vmatprep.subr.bf16.mxu0 %v3060
  %3380 = vmatpush1.bf16.msra.mxu0 %v3059
  %3381 = vmatprep.subr.bf16.mxu0 %v3054
  %3382 = vmatpush1.bf16.msra.mxu0 %v3053
  %3383 = vmatprep.subr.bf16.mxu0 0
  %3384 = vmatpush2.bf16.msra.mxu0 0
  %3385 = vmatprep.subr.bf16.mxu0 0
  %3386 = vmatpush2.bf16.msra.mxu0 0
  %3387 = vmatprep.subr.bf16.mxu0 0
  %3388 = vmatpush2.bf16.msra.mxu0 0
  %3389 = vmatprep.subr.bf16.mxu0 0
  %3390 = vmatpush2.bf16.msra.mxu0 0
  %3391 = vmatprep.subr.bf16.mxu0 0
  %3392 = vmatpush2.bf16.msra.mxu0 0
  %3393 = vmatprep.subr.bf16.mxu0 0
  %3394 = vmatpush2.bf16.msra.mxu0 0
  %3395 = vmatprep.subr.bf16.mxu0 0
  %3396 = vmatpush2.bf16.msra.mxu0 0
  %3397 = vmatprep.subr.bf16.mxu0 0
  %3398 = vmatpush2.bf16.msra.mxu0 0
  %3399 = vmatprep.mubr.bf16.mxu0 0
  %3400 = vmatmul.mubr.bf16.gmra.mxu0 %v2849
  %v3401 = vpop.f32.mrf.mxu0
  %v3402 = vadd.f32 0.0, %v3401
  %v3403 = vpop.f32.mrf.mxu0
  %v3404 = vadd.f32 0.0, %v3403
  %v3405 = vpop.f32.mrf.mxu0
  %v3406 = vadd.f32 0.0, %v3405
  %v3407 = vpop.f32.mrf.mxu0
  %v3408 = vadd.f32 0.0, %v3407
  %3409 = vmatprep.mubr.bf16.mxu0 0
  %3410 = vmatmul.mubr.bf16.gmra.mxu0 %v2850
  %v3411 = vpop.f32.mrf.mxu0
  %v3412 = vadd.f32 0.0, %v3411
  %v3413 = vpop.f32.mrf.mxu0
  %v3414 = vadd.f32 0.0, %v3413
  %v3415 = vpop.f32.mrf.mxu0
  %v3416 = vadd.f32 0.0, %v3415
  %v3417 = vpop.f32.mrf.mxu0
  %v3418 = vadd.f32 0.0, %v3417
  %3419 = vmatprep.mubr.bf16.mxu0 0
  %3420 = vmatmul.mubr.bf16.gmra.mxu0 %v2851
  %v3421 = vpop.f32.mrf.mxu0
  %v3422 = vadd.f32 0.0, %v3421
  %v3423 = vpop.f32.mrf.mxu0
  %v3424 = vadd.f32 0.0, %v3423
  %v3425 = vpop.f32.mrf.mxu0
  %v3426 = vadd.f32 0.0, %v3425
  %v3427 = vpop.f32.mrf.mxu0
  %v3428 = vadd.f32 0.0, %v3427
  %3429 = vmatprep.mubr.bf16.mxu0 0
  %3430 = vmatmul.mubr.bf16.gmra.mxu0 %v2852
  %v3431 = vpop.f32.mrf.mxu0
  %v3432 = vadd.f32 0.0, %v3431
  %v3433 = vpop.f32.mrf.mxu0
  %v3434 = vadd.f32 0.0, %v3433
  %v3435 = vpop.f32.mrf.mxu0
  %v3436 = vadd.f32 0.0, %v3435
  %v3437 = vpop.f32.mrf.mxu0
  %v3438 = vadd.f32 0.0, %v3437
  %3439 = vmatprep.mubr.bf16.mxu0 0
  %3440 = vmatmul.mubr.bf16.gmra.mxu0 %v2853
  %v3441 = vpop.f32.mrf.mxu0
  %v3442 = vadd.f32 0.0, %v3441
  %v3443 = vpop.f32.mrf.mxu0
  %v3444 = vadd.f32 0.0, %v3443
  %v3445 = vpop.f32.mrf.mxu0
  %v3446 = vadd.f32 0.0, %v3445
  %v3447 = vpop.f32.mrf.mxu0
  %v3448 = vadd.f32 0.0, %v3447
  %3449 = vmatprep.mubr.bf16.mxu0 0
  %3450 = vmatmul.mubr.bf16.gmra.mxu0 %v2854
  %v3451 = vpop.f32.mrf.mxu0
  %v3452 = vadd.f32 0.0, %v3451
  %v3453 = vpop.f32.mrf.mxu0
  %v3454 = vadd.f32 0.0, %v3453
  %v3455 = vpop.f32.mrf.mxu0
  %v3456 = vadd.f32 0.0, %v3455
  %v3457 = vpop.f32.mrf.mxu0
  %v3458 = vadd.f32 0.0, %v3457
  %3459 = vmatprep.mubr.bf16.mxu0 0
  %3460 = vmatmul.mubr.bf16.gmra.mxu0 %v2855
  %v3461 = vpop.f32.mrf.mxu0
  %v3462 = vadd.f32 0.0, %v3461
  %v3463 = vpop.f32.mrf.mxu0
  %v3464 = vadd.f32 0.0, %v3463
  %v3465 = vpop.f32.mrf.mxu0
  %v3466 = vadd.f32 0.0, %v3465
  %v3467 = vpop.f32.mrf.mxu0
  %v3468 = vadd.f32 0.0, %v3467
  %3469 = vmatprep.mubr.bf16.mxu0 0
  %3470 = vmatmul.mubr.bf16.gmra.mxu0 %v2856
  %v3471 = vpop.f32.mrf.mxu0
  %v3472 = vadd.f32 0.0, %v3471
  %v3473 = vpop.f32.mrf.mxu0
  %v3474 = vadd.f32 0.0, %v3473
  %v3475 = vpop.f32.mrf.mxu0
  %v3476 = vpop.f32.mrf.mxu0
  %3477 = vdwg.mxu0
  %v3478 = vrot.slane %v3180, 7
  %v3479 = vrot.slane %v3182, 7
  %v3480 = vrot.slane %v3184, 7
  %v3481 = vrot.slane %v3186, 7
  %v3482 = vrot.slane %v3190, 7
  %v3483 = vrot.slane %v3192, 7
  %v3484 = vrot.slane %v3194, 7
  %v3485 = vrot.slane %v3196, 7
  %v3486 = vrot.slane %v3200, 7
  %v3487 = vrot.slane %v3202, 7
  %v3488 = vrot.slane %v3204, 7
  %v3489 = vrot.slane %v3206, 7
  %v3490 = vrot.slane %v3210, 7
  %v3491 = vrot.slane %v3212, 7
  %v3492 = vrot.slane %v3214, 7
  %v3493 = vrot.slane %v3216, 7
  %v3494 = vrot.slane %v3220, 7
  %v3495 = vrot.slane %v3222, 7
  %v3496 = vrot.slane %v3224, 7
  %v3497 = vrot.slane %v3226, 7
  %v3498 = vrot.slane %v3230, 7
  %v3499 = vrot.slane %v3232, 7
  %v3500 = vrot.slane %v3234, 7
  %v3501 = vrot.slane %v3236, 7
  %v3502 = vrot.slane %v3240, 7
  %v3503 = vrot.slane %v3242, 7
  %v3504 = vrot.slane %v3244, 7
  %v3505 = vrot.slane %v3246, 7
  %v3506 = vrot.slane %v3250, 7
  %v3507 = vrot.slane %v3252, 7
  %v3508 = vsel %vm1152, %v3504, %v3506
  %v3509 = vsel %vm1152, %v3505, %v3507
  %v3510 = vsel %vm1152, %v3502, %v3504
  %v3511 = vsel %vm1152, %v3503, %v3505
  %v3512 = vsel %vm1152, %v3500, %v3502
  %v3513 = vsel %vm1152, %v3501, %v3503
  %v3514 = vsel %vm1152, %v3498, %v3500
  %v3515 = vsel %vm1152, %v3499, %v3501
  %v3516 = vsel %vm1152, %v3496, %v3498
  %v3517 = vsel %vm1152, %v3497, %v3499
  %v3518 = vsel %vm1152, %v3494, %v3496
  %v3519 = vsel %vm1152, %v3495, %v3497
  %v3520 = vsel %vm1152, %v3492, %v3494
  %v3521 = vsel %vm1152, %v3493, %v3495
  %v3522 = vsel %vm1152, %v3490, %v3492
  %v3523 = vsel %vm1152, %v3491, %v3493
  %v3524 = vsel %vm1152, %v3488, %v3490
  %v3525 = vsel %vm1152, %v3489, %v3491
  %v3526 = vsel %vm1152, %v3486, %v3488
  %v3527 = vsel %vm1152, %v3487, %v3489
  %v3528 = vsel %vm1152, %v3484, %v3486
  %v3529 = vsel %vm1152, %v3485, %v3487
  %v3530 = vsel %vm1152, %v3482, %v3484
  %v3531 = vsel %vm1152, %v3483, %v3485
  %v3532 = vsel %vm1152, %v3480, %v3482
  %v3533 = vsel %vm1152, %v3481, %v3483
  %v3534 = vsel %vm1152, %v3478, %v3480
  %v3535 = vsel %vm1152, %v3479, %v3481
  %v3536 = vsel %vm1152, %v3506, %v3478
  %v3537 = vsel %vm1152, %v3507, %v3479
  %v3538 = vsel %vm1198, 0.0, %v3536
  %v3539 = vsel %vm1198, 0.0, %v3537
  %v3540 = vsel %vm1199, 0.0, %v3534
  %v3541 = vsel %vm1199, 0.0, %v3535
  %v3542 = vsel %vm1200, 0.0, %v3532
  %v3543 = vsel %vm1200, 0.0, %v3533
  %v3544 = vsel %vm1201, 0.0, %v3530
  %v3545 = vsel %vm1201, 0.0, %v3531
  %v3546 = vsel %vm1202, 0.0, %v3528
  %v3547 = vsel %vm1202, 0.0, %v3529
  %v3548 = vsel %vm1203, 0.0, %v3526
  %v3549 = vsel %vm1203, 0.0, %v3527
  %v3550 = vsel %vm1204, 0.0, %v3524
  %v3551 = vsel %vm1204, 0.0, %v3525
  %v3552 = vsel %vm1205, 0.0, %v3522
  %v3553 = vsel %vm1205, 0.0, %v3523
  %v3554 = vsel %vm1206, 0.0, %v3520
  %v3555 = vsel %vm1206, 0.0, %v3521
  %v3556 = vsel %vm1207, 0.0, %v3518
  %v3557 = vsel %vm1207, 0.0, %v3519
  %v3558 = vsel %vm1208, 0.0, %v3516
  %v3559 = vsel %vm1208, 0.0, %v3517
  %v3560 = vsel %vm1209, 0.0, %v3514
  %v3561 = vsel %vm1209, 0.0, %v3515
  %v3562 = vsel %vm1210, 0.0, %v3512
  %v3563 = vsel %vm1210, 0.0, %v3513
  %v3564 = vsel %vm1211, 0.0, %v3510
  %v3565 = vsel %vm1211, 0.0, %v3511
  %v3566 = vsel %vm1212, 0.0, %v3508
  %v3567 = vsel %vm1212, 0.0, %v3509
  %v3568 = vrot.slane %v3402, 1
  %v3569 = vrot.slane %v3404, 1
  %v3570 = vrot.slane %v3406, 1
  %v3571 = vrot.slane %v3408, 1
  %v3572 = vrot.slane %v3412, 1
  %v3573 = vrot.slane %v3414, 1
  %v3574 = vrot.slane %v3416, 1
  %v3575 = vrot.slane %v3418, 1
  %v3576 = vrot.slane %v3422, 1
  %v3577 = vrot.slane %v3424, 1
  %v3578 = vrot.slane %v3426, 1
  %v3579 = vrot.slane %v3428, 1
  %v3580 = vrot.slane %v3432, 1
  %v3581 = vrot.slane %v3434, 1
  %v3582 = vrot.slane %v3436, 1
  %v3583 = vrot.slane %v3438, 1
  %v3584 = vrot.slane %v3442, 1
  %v3585 = vrot.slane %v3444, 1
  %v3586 = vrot.slane %v3446, 1
  %v3587 = vrot.slane %v3448, 1
  %v3588 = vrot.slane %v3452, 1
  %v3589 = vrot.slane %v3454, 1
  %v3590 = vrot.slane %v3456, 1
  %v3591 = vrot.slane %v3458, 1
  %v3592 = vrot.slane %v3462, 1
  %v3593 = vrot.slane %v3464, 1
  %v3594 = vrot.slane %v3466, 1
  %v3595 = vrot.slane %v3468, 1
  %v3596 = vrot.slane %v3472, 1
  %v3597 = vrot.slane %v3474, 1
  %v3598 = vsel %vm1273, %v3594, %v3596
  %v3599 = vsel %vm1273, %v3595, %v3597
  %v3600 = vsel %vm1273, %v3592, %v3594
  %v3601 = vsel %vm1273, %v3593, %v3595
  %v3602 = vsel %vm1273, %v3590, %v3592
  %v3603 = vsel %vm1273, %v3591, %v3593
  %v3604 = vsel %vm1273, %v3588, %v3590
  %v3605 = vsel %vm1273, %v3589, %v3591
  %v3606 = vsel %vm1273, %v3586, %v3588
  %v3607 = vsel %vm1273, %v3587, %v3589
  %v3608 = vsel %vm1273, %v3584, %v3586
  %v3609 = vsel %vm1273, %v3585, %v3587
  %v3610 = vsel %vm1273, %v3582, %v3584
  %v3611 = vsel %vm1273, %v3583, %v3585
  %v3612 = vsel %vm1273, %v3580, %v3582
  %v3613 = vsel %vm1273, %v3581, %v3583
  %v3614 = vsel %vm1273, %v3578, %v3580
  %v3615 = vsel %vm1273, %v3579, %v3581
  %v3616 = vsel %vm1273, %v3576, %v3578
  %v3617 = vsel %vm1273, %v3577, %v3579
  %v3618 = vsel %vm1273, %v3574, %v3576
  %v3619 = vsel %vm1273, %v3575, %v3577
  %v3620 = vsel %vm1273, %v3572, %v3574
  %v3621 = vsel %vm1273, %v3573, %v3575
  %v3622 = vsel %vm1273, %v3570, %v3572
  %v3623 = vsel %vm1273, %v3571, %v3573
  %v3624 = vsel %vm1273, %v3568, %v3570
  %v3625 = vsel %vm1273, %v3569, %v3571
  %v3626 = vsel %vm1273, %v3596, %v3568
  %v3627 = vsel %vm1273, %v3597, %v3569
  %v3628 = vsel %vm1319, 0.0, %v3624
  %v3629 = vsel %vm1319, 0.0, %v3625
  %v3630 = vsel %vm1320, 0.0, %v3622
  %v3631 = vsel %vm1320, 0.0, %v3623
  %v3632 = vsel %vm1321, 0.0, %v3620
  %v3633 = vsel %vm1321, 0.0, %v3621
  %v3634 = vsel %vm1322, 0.0, %v3618
  %v3635 = vsel %vm1322, 0.0, %v3619
  %v3636 = vsel %vm1323, 0.0, %v3616
  %v3637 = vsel %vm1323, 0.0, %v3617
  %v3638 = vsel %vm1324, 0.0, %v3614
  %v3639 = vsel %vm1324, 0.0, %v3615
  %v3640 = vsel %vm1325, 0.0, %v3612
  %v3641 = vsel %vm1325, 0.0, %v3613
  %v3642 = vsel %vm1326, 0.0, %v3610
  %v3643 = vsel %vm1326, 0.0, %v3611
  %v3644 = vsel %vm1327, 0.0, %v3608
  %v3645 = vsel %vm1327, 0.0, %v3609
  %v3646 = vsel %vm1328, 0.0, %v3606
  %v3647 = vsel %vm1328, 0.0, %v3607
  %v3648 = vsel %vm1329, 0.0, %v3604
  %v3649 = vsel %vm1329, 0.0, %v3605
  %v3650 = vsel %vm1330, 0.0, %v3602
  %v3651 = vsel %vm1330, 0.0, %v3603
  %v3652 = vsel %vm1331, 0.0, %v3600
  %v3653 = vsel %vm1331, 0.0, %v3601
  %v3654 = vsel %vm1332, 0.0, %v3598
  %v3655 = vsel %vm1332, 0.0, %v3599
  %v3656 = vsel %vm1333, 0.0, %v3626
  %v3657 = vsel %vm1333, 0.0, %v3627
  %v3658 = vadd.f32 %v3291, %v3538
  %v3659 = vadd.f32 %v3293, %v3539
  %v3660 = vadd.f32 %v3295, %v3540
  %v3661 = vadd.f32 %v3297, %v3541
  %v3662 = vadd.f32 %v3301, %v3542
  %v3663 = vadd.f32 %v3303, %v3543
  %v3664 = vadd.f32 %v3305, %v3544
  %v3665 = vadd.f32 %v3307, %v3545
  %v3666 = vadd.f32 %v3311, %v3546
  %v3667 = vadd.f32 %v3313, %v3547
  %v3668 = vadd.f32 %v3315, %v3548
  %v3669 = vadd.f32 %v3317, %v3549
  %v3670 = vadd.f32 %v3321, %v3550
  %v3671 = vadd.f32 %v3323, %v3551
  %v3672 = vadd.f32 %v3325, %v3552
  %v3673 = vadd.f32 %v3327, %v3553
  %v3674 = vadd.f32 %v3331, %v3554
  %v3675 = vadd.f32 %v3333, %v3555
  %v3676 = vadd.f32 %v3335, %v3556
  %v3677 = vadd.f32 %v3337, %v3557
  %v3678 = vadd.f32 %v3341, %v3558
  %v3679 = vadd.f32 %v3343, %v3559
  %v3680 = vadd.f32 %v3345, %v3560
  %v3681 = vadd.f32 %v3347, %v3561
  %v3682 = vadd.f32 %v3351, %v3562
  %v3683 = vadd.f32 %v3353, %v3563
  %v3684 = vadd.f32 %v3355, %v3564
  %v3685 = vadd.f32 %v3357, %v3565
  %v3686 = vadd.f32 %v3361, %v3566
  %v3687 = vadd.f32 %v3363, %v3567
  %v3688 = vadd.f32 %v3658, %v3628
  %v3689 = vadd.f32 %v3659, %v3629
  %v3690 = vadd.f32 %v3660, %v3630
  %v3691 = vadd.f32 %v3661, %v3631
  %v3692 = vadd.f32 %v3662, %v3632
  %v3693 = vadd.f32 %v3663, %v3633
  %v3694 = vadd.f32 %v3664, %v3634
  %v3695 = vadd.f32 %v3665, %v3635
  %v3696 = vadd.f32 %v3666, %v3636
  %v3697 = vadd.f32 %v3667, %v3637
  %v3698 = vadd.f32 %v3668, %v3638
  %v3699 = vadd.f32 %v3669, %v3639
  %v3700 = vadd.f32 %v3670, %v3640
  %v3701 = vadd.f32 %v3671, %v3641
  %v3702 = vadd.f32 %v3672, %v3642
  %v3703 = vadd.f32 %v3673, %v3643
  %v3704 = vadd.f32 %v3674, %v3644
  %v3705 = vadd.f32 %v3675, %v3645
  %v3706 = vadd.f32 %v3676, %v3646
  %v3707 = vadd.f32 %v3677, %v3647
  %v3708 = vadd.f32 %v3678, %v3648
  %v3709 = vadd.f32 %v3679, %v3649
  %v3710 = vadd.f32 %v3680, %v3650
  %v3711 = vadd.f32 %v3681, %v3651
  %v3712 = vadd.f32 %v3682, %v3652
  %v3713 = vadd.f32 %v3683, %v3653
  %v3714 = vadd.f32 %v3684, %v3654
  %v3715 = vadd.f32 %v3685, %v3655
  %v3716 = vadd.f32 %v3686, %v3656
  %v3717 = vadd.f32 %v3687, %v3657
  %v3718 = vld [vmem:[%s9] sm:$0x3]
  %v3720 = vlaneseq
  %v3721 = vshrl.u32 %v3720, 7
  %v3722 = vsub.s32 0, %v3721
  %v3723 = vrot.slane %v3718, %v3722
  %v3724 = vlaneseq
  %v3725 = vshrl.u32 %v3724, 7
  %v3726 = vsub.s32 1, %v3725
  %v3727 = vrot.slane %v3718, %v3726
  %v3730 = vadd.f32 %v3688, %v3723
  %v3731 = vadd.f32 %v3689, %v3727
  %v3732 = vadd.f32 %v3690, %v3723
  %v3733 = vadd.f32 %v3691, %v3727
  %v3734 = vadd.f32 %v3692, %v3723
  %v3735 = vadd.f32 %v3693, %v3727
  %v3736 = vadd.f32 %v3694, %v3723
  %v3737 = vadd.f32 %v3695, %v3727
  %v3738 = vadd.f32 %v3696, %v3723
  %v3739 = vadd.f32 %v3697, %v3727
  %v3740 = vadd.f32 %v3698, %v3723
  %v3741 = vadd.f32 %v3699, %v3727
  %v3742 = vadd.f32 %v3700, %v3723
  %v3743 = vadd.f32 %v3701, %v3727
  %v3744 = vadd.f32 %v3702, %v3723
  %v3745 = vadd.f32 %v3703, %v3727
  %v3746 = vadd.f32 %v3704, %v3723
  %v3747 = vadd.f32 %v3705, %v3727
  %v3748 = vadd.f32 %v3706, %v3723
  %v3749 = vadd.f32 %v3707, %v3727
  %v3750 = vadd.f32 %v3708, %v3723
  %v3751 = vadd.f32 %v3709, %v3727
  %v3752 = vadd.f32 %v3710, %v3723
  %v3753 = vadd.f32 %v3711, %v3727
  %v3754 = vadd.f32 %v3712, %v3723
  %v3755 = vadd.f32 %v3713, %v3727
  %v3756 = vadd.f32 %v3714, %v3723
  %v3757 = vadd.f32 %v3715, %v3727
  %v3758 = vadd.f32 %v3716, %v3723
  %v3759 = vadd.f32 %v3717, %v3727
  %v3760 = vxor.u32 %v3731, 2147483648
  %v3761 = vxor.u32 %v3733, 2147483648
  %v3762 = vxor.u32 %v3735, 2147483648
  %v3763 = vxor.u32 %v3737, 2147483648
  %v3764 = vxor.u32 %v3739, 2147483648
  %v3765 = vxor.u32 %v3741, 2147483648
  %v3766 = vxor.u32 %v3743, 2147483648
  %v3767 = vxor.u32 %v3745, 2147483648
  %v3768 = vxor.u32 %v3747, 2147483648
  %v3769 = vxor.u32 %v3749, 2147483648
  %v3770 = vxor.u32 %v3751, 2147483648
  %v3771 = vxor.u32 %v3753, 2147483648
  %v3772 = vxor.u32 %v3755, 2147483648
  %v3773 = vxor.u32 %v3757, 2147483648
  %v3774 = vxor.u32 %v3759, 2147483648
  %v3775 = vmul.f32 %v3760, 1.442695
  %v3776 = vpow.pop %v3775
  %v3777 = vmul.f32 %v3761, 1.442695
  %v3778 = vpow.pop %v3777
  %v3779 = vmul.f32 %v3762, 1.442695
  %v3780 = vpow.pop %v3779
  %v3781 = vmul.f32 %v3763, 1.442695
  %v3782 = vpow.pop %v3781
  %v3783 = vmul.f32 %v3764, 1.442695
  %v3784 = vpow.pop %v3783
  %v3785 = vmul.f32 %v3765, 1.442695
  %v3786 = vpow.pop %v3785
  %v3787 = vmul.f32 %v3766, 1.442695
  %v3788 = vpow.pop %v3787
  %v3789 = vmul.f32 %v3767, 1.442695
  %v3790 = vpow.pop %v3789
  %v3791 = vmul.f32 %v3768, 1.442695
  %v3792 = vpow.pop %v3791
  %v3793 = vmul.f32 %v3769, 1.442695
  %v3794 = vpow.pop %v3793
  %v3795 = vmul.f32 %v3770, 1.442695
  %v3796 = vpow.pop %v3795
  %v3797 = vmul.f32 %v3771, 1.442695
  %v3798 = vpow.pop %v3797
  %v3799 = vmul.f32 %v3772, 1.442695
  %v3800 = vpow.pop %v3799
  %v3801 = vmul.f32 %v3773, 1.442695
  %v3802 = vpow.pop %v3801
  %v3803 = vmul.f32 %v3774, 1.442695
  %v3804 = vpow.pop %v3803
  %v3805 = vadd.f32 %v3776, 1.0
  %v3806 = vadd.f32 %v3778, 1.0
  %v3807 = vadd.f32 %v3780, 1.0
  %v3808 = vadd.f32 %v3782, 1.0
  %v3809 = vadd.f32 %v3784, 1.0
  %v3810 = vadd.f32 %v3786, 1.0
  %v3811 = vadd.f32 %v3788, 1.0
  %v3812 = vadd.f32 %v3790, 1.0
  %v3813 = vadd.f32 %v3792, 1.0
  %v3814 = vadd.f32 %v3794, 1.0
  %v3815 = vadd.f32 %v3796, 1.0
  %v3816 = vadd.f32 %v3798, 1.0
  %v3817 = vadd.f32 %v3800, 1.0
  %v3818 = vadd.f32 %v3802, 1.0
  %v3819 = vadd.f32 %v3804, 1.0
  %v3820 = vrcp.pop %v3805
  %v3821 = vmul.f32 1.0, %v3820
  %v3822 = vrcp.pop %v3806
  %v3823 = vmul.f32 1.0, %v3822
  %v3824 = vrcp.pop %v3807
  %v3825 = vmul.f32 1.0, %v3824
  %v3826 = vrcp.pop %v3808
  %v3827 = vmul.f32 1.0, %v3826
  %v3828 = vrcp.pop %v3809
  %v3829 = vmul.f32 1.0, %v3828
  %v3830 = vrcp.pop %v3810
  %v3831 = vmul.f32 1.0, %v3830
  %v3832 = vrcp.pop %v3811
  %v3833 = vmul.f32 1.0, %v3832
  %v3834 = vrcp.pop %v3812
  %v3835 = vmul.f32 1.0, %v3834
  %v3836 = vrcp.pop %v3813
  %v3837 = vmul.f32 1.0, %v3836
  %v3838 = vrcp.pop %v3814
  %v3839 = vmul.f32 1.0, %v3838
  %v3840 = vrcp.pop %v3815
  %v3841 = vmul.f32 1.0, %v3840
  %v3842 = vrcp.pop %v3816
  %v3843 = vmul.f32 1.0, %v3842
  %v3844 = vrcp.pop %v3817
  %v3845 = vmul.f32 1.0, %v3844
  %v3846 = vrcp.pop %v3818
  %v3847 = vmul.f32 1.0, %v3846
  %v3848 = vrcp.pop %v3819
  %v3849 = vmul.f32 1.0, %v3848
  %v3850 = vmul.f32 %v3730, %v3821
  %v3851 = vmul.f32 %v3732, %v3823
  %v3852 = vmul.f32 %v3734, %v3825
  %v3853 = vmul.f32 %v3736, %v3827
  %v3854 = vmul.f32 %v3738, %v3829
  %v3855 = vmul.f32 %v3740, %v3831
  %v3856 = vmul.f32 %v3742, %v3833
  %v3857 = vmul.f32 %v3744, %v3835
  %v3858 = vmul.f32 %v3746, %v3837
  %v3859 = vmul.f32 %v3748, %v3839
  %v3860 = vmul.f32 %v3750, %v3841
  %v3861 = vmul.f32 %v3752, %v3843
  %v3862 = vmul.f32 %v3754, %v3845
  %v3863 = vmul.f32 %v3756, %v3847
  %v3864 = vmul.f32 %v3758, %v3849
  %v3865 = vld [vmem:[%s10] sm:$0x1]
  %v3866 = vld [vmem:[%s10 + $0x1] sm:$0x1]
  %v3867 = vadd.f32 %v3850, %v3851
  %v3868 = vadd.f32 %v3867, %v3852
  %v3869 = vadd.f32 %v3868, %v3853
  %v3870 = vadd.f32 %v3869, %v3854
  %v3871 = vadd.f32 %v3870, %v3855
  %v3872 = vadd.f32 %v3871, %v3856
  %v3873 = vadd.f32 %v3872, %v3857
  %v3874 = vadd.f32 %v3873, %v3858
  %v3875 = vadd.f32 %v3874, %v3859
  %v3876 = vadd.f32 %v3875, %v3860
  %v3877 = vadd.f32 %v3876, %v3861
  %v3878 = vadd.f32 %v3877, %v3862
  %v3879 = vadd.f32 %v3878, %v3863
  %v3880 = vadd.f32 %v3879, %v3864
  %v3881 = vrot.slane %v3880, 4
  %v3882 = vadd.f32 %v3880, %v3881
  %v3883 = vrot.slane %v3882, 2
  %v3884 = vadd.f32 %v3882, %v3883
  %v3885 = vrot.slane %v3884, 1
  %v3886 = vadd.f32 %v3884, %v3885
  %v3887 = vmul.f32 %v3886, %v383
  %v3888 = vmul.f32 %v3850, %v3850
  %v3889 = vmul.f32 %v3851, %v3851
  %v3890 = vmul.f32 %v3852, %v3852
  %v3891 = vmul.f32 %v3853, %v3853
  %v3892 = vmul.f32 %v3854, %v3854
  %v3893 = vmul.f32 %v3855, %v3855
  %v3894 = vmul.f32 %v3856, %v3856
  %v3895 = vmul.f32 %v3857, %v3857
  %v3896 = vmul.f32 %v3858, %v3858
  %v3897 = vmul.f32 %v3859, %v3859
  %v3898 = vmul.f32 %v3860, %v3860
  %v3899 = vmul.f32 %v3861, %v3861
  %v3900 = vmul.f32 %v3862, %v3862
  %v3901 = vmul.f32 %v3863, %v3863
  %v3902 = vmul.f32 %v3864, %v3864
  %v3903 = vadd.f32 %v3888, %v3889
  %v3904 = vadd.f32 %v3903, %v3890
  %v3905 = vadd.f32 %v3904, %v3891
  %v3906 = vadd.f32 %v3905, %v3892
  %v3907 = vadd.f32 %v3906, %v3893
  %v3908 = vadd.f32 %v3907, %v3894
  %v3909 = vadd.f32 %v3908, %v3895
  %v3910 = vadd.f32 %v3909, %v3896
  %v3911 = vadd.f32 %v3910, %v3897
  %v3912 = vadd.f32 %v3911, %v3898
  %v3913 = vadd.f32 %v3912, %v3899
  %v3914 = vadd.f32 %v3913, %v3900
  %v3915 = vadd.f32 %v3914, %v3901
  %v3916 = vadd.f32 %v3915, %v3902
  %v3917 = vrot.slane %v3916, 4
  %v3918 = vadd.f32 %v3916, %v3917
  %v3919 = vrot.slane %v3918, 2
  %v3920 = vadd.f32 %v3918, %v3919
  %v3921 = vrot.slane %v3920, 1
  %v3922 = vadd.f32 %v3920, %v3921
  %v3923 = vmul.f32 %v3922, %v383
  %v3924 = vmul.f32 %v3887, %v3887
  %v3925 = vsub.f32 %v3923, %v3924
  %v3926 = vsub.f32 %v3850, %v3887
  %v3927 = vsub.f32 %v3851, %v3887
  %v3928 = vsub.f32 %v3852, %v3887
  %v3929 = vsub.f32 %v3853, %v3887
  %v3930 = vsub.f32 %v3854, %v3887
  %v3931 = vsub.f32 %v3855, %v3887
  %v3932 = vsub.f32 %v3856, %v3887
  %v3933 = vsub.f32 %v3857, %v3887
  %v3934 = vsub.f32 %v3858, %v3887
  %v3935 = vsub.f32 %v3859, %v3887
  %v3936 = vsub.f32 %v3860, %v3887
  %v3937 = vsub.f32 %v3861, %v3887
  %v3938 = vsub.f32 %v3862, %v3887
  %v3939 = vsub.f32 %v3863, %v3887
  %v3940 = vsub.f32 %v3864, %v3887
  %v3941 = vadd.f32 %v3925, 1e-05
  %v3942 = vrsqrt.pop %v3941
  %v3943 = vmul.f32 %v3926, %v3942
  %v3944 = vmul.f32 %v3927, %v3942
  %v3945 = vmul.f32 %v3928, %v3942
  %v3946 = vmul.f32 %v3929, %v3942
  %v3947 = vmul.f32 %v3930, %v3942
  %v3948 = vmul.f32 %v3931, %v3942
  %v3949 = vmul.f32 %v3932, %v3942
  %v3950 = vmul.f32 %v3933, %v3942
  %v3951 = vmul.f32 %v3934, %v3942
  %v3952 = vmul.f32 %v3935, %v3942
  %v3953 = vmul.f32 %v3936, %v3942
  %v3954 = vmul.f32 %v3937, %v3942
  %v3955 = vmul.f32 %v3938, %v3942
  %v3956 = vmul.f32 %v3939, %v3942
  %v3957 = vmul.f32 %v3940, %v3942
  %v3958 = vlaneseq
  %v3959 = vshrl.u32 %v3958, 7
  %v3960 = vsub.s32 0, %v3959
  %v3961 = vrot.slane %v3865, %v3960
  %v3962 = vmul.f32 %v3943, %v3961
  %v3963 = vmul.f32 %v3944, %v3961
  %v3964 = vmul.f32 %v3945, %v3961
  %v3965 = vmul.f32 %v3946, %v3961
  %v3966 = vmul.f32 %v3947, %v3961
  %v3967 = vmul.f32 %v3948, %v3961
  %v3968 = vmul.f32 %v3949, %v3961
  %v3969 = vmul.f32 %v3950, %v3961
  %v3970 = vmul.f32 %v3951, %v3961
  %v3971 = vmul.f32 %v3952, %v3961
  %v3972 = vmul.f32 %v3953, %v3961
  %v3973 = vmul.f32 %v3954, %v3961
  %v3974 = vmul.f32 %v3955, %v3961
  %v3975 = vmul.f32 %v3956, %v3961
  %v3976 = vmul.f32 %v3957, %v3961
  %v3977 = vlaneseq
  %v3978 = vshrl.u32 %v3977, 7
  %v3979 = vsub.s32 0, %v3978
  %v3980 = vrot.slane %v3866, %v3979
  %v3981 = vadd.f32 %v3962, %v3980
  %v3982 = vadd.f32 %v3963, %v3980
  %v3983 = vadd.f32 %v3964, %v3980
  %v3984 = vadd.f32 %v3965, %v3980
  %v3985 = vadd.f32 %v3966, %v3980
  %v3986 = vadd.f32 %v3967, %v3980
  %v3987 = vadd.f32 %v3968, %v3980
  %v3988 = vadd.f32 %v3969, %v3980
  %v3989 = vadd.f32 %v3970, %v3980
  %v3990 = vadd.f32 %v3971, %v3980
  %v3991 = vadd.f32 %v3972, %v3980
  %v3992 = vadd.f32 %v3973, %v3980
  %v3993 = vadd.f32 %v3974, %v3980
  %v3994 = vadd.f32 %v3975, %v3980
  %v3995 = vadd.f32 %v3976, %v3980
  %v3996 = vpack.c.bf16 %v3982, %v3981
  %v3997 = vpack.c.bf16 %v3984, %v3983
  %v3998 = vpack.c.bf16 %v3986, %v3985
  %v3999 = vpack.c.bf16 %v3988, %v3987
  %v4000 = vpack.c.bf16 %v3990, %v3989
  %v4001 = vpack.c.bf16 %v3992, %v3991
  %v4002 = vpack.c.bf16 %v3994, %v3993
  %v4003 = vpack.c.bf16 %v3995, %v3995
  %v4004 = vld [vmem:[%s11] sm:$0xff]
  %v4005 = vld [vmem:[%s11 + $0x8] sm:$0xff]
  %v4006 = vld [vmem:[%s11 + $0x10] sm:$0xff]
  %v4007 = vld [vmem:[%s11 + $0x18] sm:$0xff]
  %v4008 = vld [vmem:[%s11 + $0x20] sm:$0xff]
  %v4009 = vld [vmem:[%s11 + $0x28] sm:$0xff]
  %v4010 = vld [vmem:[%s11 + $0x30] sm:$0xff]
  %v4011 = vld [vmem:[%s11 + $0x38] sm:$0xff]
  %v4012 = vld [vmem:[%s11 + $0x40] sm:$0xff]
  %v4013 = vld [vmem:[%s11 + $0x48] sm:$0xff]
  %v4014 = vld [vmem:[%s11 + $0x50] sm:$0xff]
  %v4015 = vld [vmem:[%s11 + $0x58] sm:$0xff]
  %v4016 = vld [vmem:[%s11 + $0x60] sm:$0xff]
  %v4017 = vld [vmem:[%s11 + $0x68] sm:$0xff]
  %v4018 = vld [vmem:[%s11 + $0x70] sm:$0xff]
  %v4019 = vld [vmem:[%s11 + $0x78] sm:$0xff]
  %v4020 = vld [vmem:[%s12] sm:$0x3]
  %v4022 = vlaneseq
  %v4023 = vshrl.u32 %v4022, 7
  %v4024 = vsub.s32 0, %v4023
  %v4025 = vrot.slane %v4020, %v4024
  %v4026 = vlaneseq
  %v4027 = vshrl.u32 %v4026, 7
  %v4028 = vsub.s32 1, %v4027
  %v4029 = vrot.slane %v4020, %v4028
  %v4048 = vunpack.c.l.b16 %v4004
  %v4049 = vunpack.c.h.b16 %v4004
  %v4050 = vunpack.c.l.b16 %v4005
  %v4051 = vunpack.c.h.b16 %v4005
  %v4052 = vunpack.c.l.b16 %v4006
  %v4053 = vunpack.c.h.b16 %v4006
  %v4054 = vunpack.c.l.b16 %v4007
  %v4055 = vunpack.c.h.b16 %v4007
  %v4056 = vunpack.c.l.b16 %v4008
  %v4057 = vunpack.c.h.b16 %v4008
  %v4058 = vunpack.c.l.b16 %v4009
  %v4059 = vunpack.c.h.b16 %v4009
  %v4060 = vunpack.c.l.b16 %v4010
  %v4061 = vunpack.c.h.b16 %v4010
  %v4062 = vunpack.c.l.b16 %v4011
  %v4063 = vunpack.c.h.b16 %v4011
  %v4064 = vunpack.c.l.b16 %v4012
  %v4065 = vunpack.c.h.b16 %v4012
  %v4066 = vunpack.c.l.b16 %v4013
  %v4067 = vunpack.c.h.b16 %v4013
  %v4068 = vunpack.c.l.b16 %v4014
  %v4069 = vunpack.c.h.b16 %v4014
  %v4070 = vunpack.c.l.b16 %v4015
  %v4071 = vunpack.c.h.b16 %v4015
  %v4072 = vunpack.c.l.b16 %v4016
  %v4073 = vunpack.c.h.b16 %v4016
  %v4074 = vunpack.c.l.b16 %v4017
  %v4075 = vunpack.c.h.b16 %v4017
  %v4076 = vunpack.c.l.b16 %v4018
  %v4077 = vunpack.c.h.b16 %v4018
  %v4078 = vunpack.c.l.b16 %v4019
  %v4079 = vunpack.c.h.b16 %v4019
  %v4080 = vpack.c.b16 %v4050, %v4048
  %v4081 = vpack.c.b16 %v4051, %v4049
  %v4082 = vpack.c.b16 %v4054, %v4052
  %v4083 = vpack.c.b16 %v4055, %v4053
  %v4084 = vpack.c.b16 %v4058, %v4056
  %v4085 = vpack.c.b16 %v4059, %v4057
  %v4086 = vpack.c.b16 %v4062, %v4060
  %v4087 = vpack.c.b16 %v4063, %v4061
  %v4088 = vpack.c.b16 %v4066, %v4064
  %v4089 = vpack.c.b16 %v4067, %v4065
  %v4090 = vpack.c.b16 %v4070, %v4068
  %v4091 = vpack.c.b16 %v4071, %v4069
  %v4092 = vpack.c.b16 %v4074, %v4072
  %v4093 = vpack.c.b16 %v4075, %v4073
  %v4094 = vpack.c.b16 %v4078, %v4076
  %v4095 = vpack.c.b16 %v4079, %v4077
  %4112 = vmatprep.subr.bf16.mxu0 %v4095
  %4113 = vmatpush1.bf16.msra.mxu0 %v4094
  %4114 = vmatprep.subr.bf16.mxu0 %v4093
  %4115 = vmatpush1.bf16.msra.mxu0 %v4092
  %4116 = vmatprep.subr.bf16.mxu0 %v4091
  %4117 = vmatpush1.bf16.msra.mxu0 %v4090
  %4118 = vmatprep.subr.bf16.mxu0 %v4089
  %4119 = vmatpush1.bf16.msra.mxu0 %v4088
  %4120 = vmatprep.subr.bf16.mxu0 %v4087
  %4121 = vmatpush1.bf16.msra.mxu0 %v4086
  %4122 = vmatprep.subr.bf16.mxu0 %v4085
  %4123 = vmatpush1.bf16.msra.mxu0 %v4084
  %4124 = vmatprep.subr.bf16.mxu0 %v4083
  %4125 = vmatpush1.bf16.msra.mxu0 %v4082
  %4126 = vmatprep.subr.bf16.mxu0 %v4081
  %4127 = vmatpush1.bf16.msra.mxu0 %v4080
  %4128 = vmatprep.subr.bf16.mxu0 0
  %4129 = vmatpush2.bf16.msra.mxu0 0
  %4130 = vmatprep.subr.bf16.mxu0 0
  %4131 = vmatpush2.bf16.msra.mxu0 0
  %4132 = vmatprep.subr.bf16.mxu0 0
  %4133 = vmatpush2.bf16.msra.mxu0 0
  %4134 = vmatprep.subr.bf16.mxu0 0
  %4135 = vmatpush2.bf16.msra.mxu0 0
  %4136 = vmatprep.subr.bf16.mxu0 0
  %4137 = vmatpush2.bf16.msra.mxu0 0
  %4138 = vmatprep.subr.bf16.mxu0 0
  %4139 = vmatpush2.bf16.msra.mxu0 0
  %4140 = vmatprep.subr.bf16.mxu0 0
  %4141 = vmatpush2.bf16.msra.mxu0 0
  %4142 = vmatprep.subr.bf16.mxu0 0
  %4143 = vmatpush2.bf16.msra.mxu0 0
  %4144 = vmatprep.mubr.bf16.mxu0 0
  %4145 = vmatmul.mubr.bf16.gmra.mxu0 %v3996
  %v4146 = vpop.f32.mrf.mxu0
  %v4147 = vadd.f32 %v4025, %v4146
  %v4148 = vpop.f32.mrf.mxu0
  %v4149 = vadd.f32 %v4029, %v4148
  %v4150 = vpop.f32.mrf.mxu0
  %v4151 = vadd.f32 %v4025, %v4150
  %v4152 = vpop.f32.mrf.mxu0
  %v4153 = vadd.f32 %v4029, %v4152
  %4154 = vmatprep.mubr.bf16.mxu0 0
  %4155 = vmatmul.mubr.bf16.gmra.mxu0 %v3997
  %v4156 = vpop.f32.mrf.mxu0
  %v4157 = vadd.f32 %v4025, %v4156
  %v4158 = vpop.f32.mrf.mxu0
  %v4159 = vadd.f32 %v4029, %v4158
  %v4160 = vpop.f32.mrf.mxu0
  %v4161 = vadd.f32 %v4025, %v4160
  %v4162 = vpop.f32.mrf.mxu0
  %v4163 = vadd.f32 %v4029, %v4162
  %4164 = vmatprep.mubr.bf16.mxu0 0
  %4165 = vmatmul.mubr.bf16.gmra.mxu0 %v3998
  %v4166 = vpop.f32.mrf.mxu0
  %v4167 = vadd.f32 %v4025, %v4166
  %v4168 = vpop.f32.mrf.mxu0
  %v4169 = vadd.f32 %v4029, %v4168
  %v4170 = vpop.f32.mrf.mxu0
  %v4171 = vadd.f32 %v4025, %v4170
  %v4172 = vpop.f32.mrf.mxu0
  %v4173 = vadd.f32 %v4029, %v4172
  %4174 = vmatprep.mubr.bf16.mxu0 0
  %4175 = vmatmul.mubr.bf16.gmra.mxu0 %v3999
  %v4176 = vpop.f32.mrf.mxu0
  %v4177 = vadd.f32 %v4025, %v4176
  %v4178 = vpop.f32.mrf.mxu0
  %v4179 = vadd.f32 %v4029, %v4178
  %v4180 = vpop.f32.mrf.mxu0
  %v4181 = vadd.f32 %v4025, %v4180
  %v4182 = vpop.f32.mrf.mxu0
  %v4183 = vadd.f32 %v4029, %v4182
  %4184 = vmatprep.mubr.bf16.mxu0 0
  %4185 = vmatmul.mubr.bf16.gmra.mxu0 %v4000
  %v4186 = vpop.f32.mrf.mxu0
  %v4187 = vadd.f32 %v4025, %v4186
  %v4188 = vpop.f32.mrf.mxu0
  %v4189 = vadd.f32 %v4029, %v4188
  %v4190 = vpop.f32.mrf.mxu0
  %v4191 = vadd.f32 %v4025, %v4190
  %v4192 = vpop.f32.mrf.mxu0
  %v4193 = vadd.f32 %v4029, %v4192
  %4194 = vmatprep.mubr.bf16.mxu0 0
  %4195 = vmatmul.mubr.bf16.gmra.mxu0 %v4001
  %v4196 = vpop.f32.mrf.mxu0
  %v4197 = vadd.f32 %v4025, %v4196
  %v4198 = vpop.f32.mrf.mxu0
  %v4199 = vadd.f32 %v4029, %v4198
  %v4200 = vpop.f32.mrf.mxu0
  %v4201 = vadd.f32 %v4025, %v4200
  %v4202 = vpop.f32.mrf.mxu0
  %v4203 = vadd.f32 %v4029, %v4202
  %4204 = vmatprep.mubr.bf16.mxu0 0
  %4205 = vmatmul.mubr.bf16.gmra.mxu0 %v4002
  %v4206 = vpop.f32.mrf.mxu0
  %v4207 = vadd.f32 %v4025, %v4206
  %v4208 = vpop.f32.mrf.mxu0
  %v4209 = vadd.f32 %v4029, %v4208
  %v4210 = vpop.f32.mrf.mxu0
  %v4211 = vadd.f32 %v4025, %v4210
  %v4212 = vpop.f32.mrf.mxu0
  %v4213 = vadd.f32 %v4029, %v4212
  %4214 = vmatprep.mubr.bf16.mxu0 0
  %4215 = vmatmul.mubr.bf16.gmra.mxu0 %v4003
  %v4216 = vpop.f32.mrf.mxu0
  %v4217 = vadd.f32 %v4025, %v4216
  %v4218 = vpop.f32.mrf.mxu0
  %v4219 = vadd.f32 %v4029, %v4218
  %v4220 = vpop.f32.mrf.mxu0
  %v4221 = vpop.f32.mrf.mxu0
  %4222 = vdwg.mxu0
  %v4223 = vxor.u32 %v4149, 2147483648
  %v4224 = vxor.u32 %v4153, 2147483648
  %v4225 = vxor.u32 %v4159, 2147483648
  %v4226 = vxor.u32 %v4163, 2147483648
  %v4227 = vxor.u32 %v4169, 2147483648
  %v4228 = vxor.u32 %v4173, 2147483648
  %v4229 = vxor.u32 %v4179, 2147483648
  %v4230 = vxor.u32 %v4183, 2147483648
  %v4231 = vxor.u32 %v4189, 2147483648
  %v4232 = vxor.u32 %v4193, 2147483648
  %v4233 = vxor.u32 %v4199, 2147483648
  %v4234 = vxor.u32 %v4203, 2147483648
  %v4235 = vxor.u32 %v4209, 2147483648
  %v4236 = vxor.u32 %v4213, 2147483648
  %v4237 = vxor.u32 %v4219, 2147483648
  %v4238 = vmul.f32 %v4223, 1.442695
  %v4239 = vpow.pop %v4238
  %v4240 = vmul.f32 %v4224, 1.442695
  %v4241 = vpow.pop %v4240
  %v4242 = vmul.f32 %v4225, 1.442695
  %v4243 = vpow.pop %v4242
  %v4244 = vmul.f32 %v4226, 1.442695
  %v4245 = vpow.pop %v4244
  %v4246 = vmul.f32 %v4227, 1.442695
  %v4247 = vpow.pop %v4246
  %v4248 = vmul.f32 %v4228, 1.442695
  %v4249 = vpow.pop %v4248
  %v4250 = vmul.f32 %v4229, 1.442695
  %v4251 = vpow.pop %v4250
  %v4252 = vmul.f32 %v4230, 1.442695
  %v4253 = vpow.pop %v4252
  %v4254 = vmul.f32 %v4231, 1.442695
  %v4255 = vpow.pop %v4254
  %v4256 = vmul.f32 %v4232, 1.442695
  %v4257 = vpow.pop %v4256
  %v4258 = vmul.f32 %v4233, 1.442695
  %v4259 = vpow.pop %v4258
  %v4260 = vmul.f32 %v4234, 1.442695
  %v4261 = vpow.pop %v4260
  %v4262 = vmul.f32 %v4235, 1.442695
  %v4263 = vpow.pop %v4262
  %v4264 = vmul.f32 %v4236, 1.442695
  %v4265 = vpow.pop %v4264
  %v4266 = vmul.f32 %v4237, 1.442695
  %v4267 = vpow.pop %v4266
  %v4268 = vadd.f32 %v4239, 1.0
  %v4269 = vadd.f32 %v4241, 1.0
  %v4270 = vadd.f32 %v4243, 1.0
  %v4271 = vadd.f32 %v4245, 1.0
  %v4272 = vadd.f32 %v4247, 1.0
  %v4273 = vadd.f32 %v4249, 1.0
  %v4274 = vadd.f32 %v4251, 1.0
  %v4275 = vadd.f32 %v4253, 1.0
  %v4276 = vadd.f32 %v4255, 1.0
  %v4277 = vadd.f32 %v4257, 1.0
  %v4278 = vadd.f32 %v4259, 1.0
  %v4279 = vadd.f32 %v4261, 1.0
  %v4280 = vadd.f32 %v4263, 1.0
  %v4281 = vadd.f32 %v4265, 1.0
  %v4282 = vadd.f32 %v4267, 1.0
  %v4283 = vrcp.pop %v4268
  %v4284 = vmul.f32 1.0, %v4283
  %v4285 = vrcp.pop %v4269
  %v4286 = vmul.f32 1.0, %v4285
  %v4287 = vrcp.pop %v4270
  %v4288 = vmul.f32 1.0, %v4287
  %v4289 = vrcp.pop %v4271
  %v4290 = vmul.f32 1.0, %v4289
  %v4291 = vrcp.pop %v4272
  %v4292 = vmul.f32 1.0, %v4291
  %v4293 = vrcp.pop %v4273
  %v4294 = vmul.f32 1.0, %v4293
  %v4295 = vrcp.pop %v4274
  %v4296 = vmul.f32 1.0, %v4295
  %v4297 = vrcp.pop %v4275
  %v4298 = vmul.f32 1.0, %v4297
  %v4299 = vrcp.pop %v4276
  %v4300 = vmul.f32 1.0, %v4299
  %v4301 = vrcp.pop %v4277
  %v4302 = vmul.f32 1.0, %v4301
  %v4303 = vrcp.pop %v4278
  %v4304 = vmul.f32 1.0, %v4303
  %v4305 = vrcp.pop %v4279
  %v4306 = vmul.f32 1.0, %v4305
  %v4307 = vrcp.pop %v4280
  %v4308 = vmul.f32 1.0, %v4307
  %v4309 = vrcp.pop %v4281
  %v4310 = vmul.f32 1.0, %v4309
  %v4311 = vrcp.pop %v4282
  %v4312 = vmul.f32 1.0, %v4311
  %v4313 = vmul.f32 %v4147, %v4284
  %v4314 = vmul.f32 %v4151, %v4286
  %v4315 = vmul.f32 %v4157, %v4288
  %v4316 = vmul.f32 %v4161, %v4290
  %v4317 = vmul.f32 %v4167, %v4292
  %v4318 = vmul.f32 %v4171, %v4294
  %v4319 = vmul.f32 %v4177, %v4296
  %v4320 = vmul.f32 %v4181, %v4298
  %v4321 = vmul.f32 %v4187, %v4300
  %v4322 = vmul.f32 %v4191, %v4302
  %v4323 = vmul.f32 %v4197, %v4304
  %v4324 = vmul.f32 %v4201, %v4306
  %v4325 = vmul.f32 %v4207, %v4308
  %v4326 = vmul.f32 %v4211, %v4310
  %v4327 = vmul.f32 %v4217, %v4312
  %4328 = vst [vmem:[%s13] sm:$0xff] %v4313
  %4329 = vst [vmem:[%s13 + $0x8] sm:$0xff] %v4314
  %4330 = vst [vmem:[%s13 + $0x10] sm:$0xff] %v4315
  %4331 = vst [vmem:[%s13 + $0x18] sm:$0xff] %v4316
  %4332 = vst [vmem:[%s13 + $0x20] sm:$0xff] %v4317
  %4333 = vst [vmem:[%s13 + $0x28] sm:$0xff] %v4318
  %4334 = vst [vmem:[%s13 + $0x30] sm:$0xff] %v4319
  %4335 = vst [vmem:[%s13 + $0x38] sm:$0xff] %v4320
  %4336 = vst [vmem:[%s13 + $0x40] sm:$0xff] %v4321
  %4337 = vst [vmem:[%s13 + $0x48] sm:$0xff] %v4322
  %4338 = vst [vmem:[%s13 + $0x50] sm:$0xff] %v4323
  %4339 = vst [vmem:[%s13 + $0x58] sm:$0xff] %v4324
  %4340 = vst [vmem:[%s13 + $0x60] sm:$0xff] %v4325
  %4341 = vst [vmem:[%s13 + $0x68] sm:$0xff] %v4326
  %4342 = vst [vmem:[%s13 + $0x70] sm:$0xff] %v4327
  // Predicated region
  $region54: #{decoder_forward.3} parent=0 // pred_check
    _
  $region55: #{decoder_forward.3} parent=0 // pred_check_branch
    %4344 = sbr.rel (0) target = $region57
  $region56: #{decoder_forward.3} parent=0 // pred_region
    _
  $region57: #{decoder_forward.3} parent=0 // pred_fallthru
    _
  // Predicated region
  $region58: #{decoder_forward.3} parent=0 // pred_check
    _
  $region59: #{decoder_forward.3} parent=0 // pred_check_branch
    %4346 = sbr.rel (0) target = $region61
  $region60: #{decoder_forward.3} parent=0 // pred_region
    _
  $region61: #{decoder_forward.3} parent=0 // pred_fallthru
    _

</llo_original>
